<compile_context>
chip_gen: v7x
topology: tpu7x:2x2x1
jax: 0.10.0
libtpu: 0.0.40
codegen_flags: <defaults>
</compile_context>

<pallas_src>
import functools

import jax
import jax.numpy as jnp
from jax import lax
from jax.experimental import pallas as pl
from jax.experimental.pallas import tpu as pltpu

# A @ B^T contraction (same dimension numbers as the TPU flash-attention kernel).
_NT_DIMS = (((1,), (1,)), ((), ()))


# ----------------------------------------------------------------------------
# Fused Pallas kernel: full GNN2 forward (all layers, all T_future steps)
# ----------------------------------------------------------------------------

def _gnn2_fused_kernel(x0_ref, adj_ref, adjn_ref,
                       w0_ref, ws0_ref, wd0_ref, b0_ref,
                       w1_ref, ws1_ref, wd1_ref, b1_ref,
                       wga_ref, wgb_ref, wgc_ref, bg_ref,
                       w2_ref, ws2_ref, wd2_ref, b2_ref,
                       out_ref):
    f32 = jnp.float32
    n, t_past = x0_ref.shape
    t_future = out_ref.shape[1]
    hidden = w1_ref.shape[0]
    temp_ch = w2_ref.shape[0]

    # ---- graph-wide constants: built once, reused across layers & time steps.
    adj = adj_ref[...]                                           # [N, N] 0/1 mask
    neg_mask = jnp.where(adj > 0.0, f32(0.0), f32(-1e30))        # additive softmax mask
    adj_gcn = adjn_ref[...]                                      # [N, N] normalized

    # shift-left matrix + one-hot last column: x_new = x @ S + y_t * e_last
    # (== concat([x[:, 1:], y_t], axis=1)) — no in-kernel concat needed.
    rows_pp = lax.broadcasted_iota(jnp.int32, (t_past, t_past), 0)
    cols_pp = lax.broadcasted_iota(jnp.int32, (t_past, t_past), 1)
    shift_left = jnp.where(cols_pp == rows_pp - 1, f32(1.0), f32(0.0))
    iota_1p = lax.broadcasted_iota(jnp.int32, (1, t_past), 1)
    last_col_p = jnp.where(iota_1p == t_past - 1, f32(1.0), f32(0.0))
    cols_tf = lax.broadcasted_iota(jnp.int32, (1, t_future), 1)  # output column ids

    # ---- parameters: load once into registers/VMEM values.
    w0, wd0, b0 = w0_ref[...], wd0_ref[...], b0_ref[...]
    w1, wd1, b1 = w1_ref[...], wd1_ref[...], b1_ref[...]
    wga, wgb, wgc, bg = wga_ref[...], wgb_ref[...], wgc_ref[...], bg_ref[...]
    w2, wd2, b2 = w2_ref[...], wd2_ref[...], b2_ref[...]

    # Folded source-attention rows, broadcast once (hoisted out of the t-loop;
    # JAX does not CSE broadcast_in_dim inside loops).
    ws0 = jnp.broadcast_to(ws0_ref[...], (n, t_past))
    ws1 = jnp.broadcast_to(ws1_ref[...], (n, hidden))
    ws2 = jnp.broadcast_to(ws2_ref[...], (n, temp_ch))

    def leaky(v, slope):
        return jnp.where(v >= 0, v, slope * v)

    def gat(x, w, ws_rows, wd_col, b):
        """Single-head GATConv over the dense adjacency mask (self loops incl.)."""
        h = jnp.dot(x, w, preferred_element_type=f32)            # [N, Cout]
        # per-target logits: e_dst[i] = att_dst · h_i = x_i · (W att_dst^T)
        e_dst = jnp.dot(x, wd_col, preferred_element_type=f32)   # [N, 1]
        # per-source logits broadcast to every row without a transpose:
        # e_src[i, j] = ws_rows[i, :] · x[j, :] = att_src · h_j  (A·Bᵀ matmul)
        e_src = lax.dot_general(ws_rows, x, _NT_DIMS,
                                preferred_element_type=f32)      # [N, N]
        logits = leaky(e_dst + e_src, 0.2)                       # GAT slope = 0.2
        masked = logits + neg_mask
        m = jnp.max(masked, axis=-1, keepdims=True)
        p = jnp.exp(masked - m)
        denom = jnp.sum(p, axis=-1, keepdims=True)               # >= 1 (self loops)
        attn = p * pl.reciprocal(denom, approx=True)             # EUP, ~free slot
        return jnp.dot(attn, h, preferred_element_type=f32) + b  # [N, Cout]

    # ---- autoregressive loop: T_future is static and small -> trace-time unroll.
    x_init = x0_ref[...]                                         # [N, T_past]
    y_out = jnp.zeros((n, t_future), f32)
    for t in range(t_future):
        y_tm = jnp.mean(x_init, axis=-1, keepdims=True)          # [N, 1]
        x1 = leaky(gat(x_init, w0, ws0, wd0, b0), 0.01)          # F.leaky_relu
        x2 = leaky(gat(x1, w1, ws1, wd1, b1), 0.01)
        # GCN on concat([x_init, x1, x2]) == sum of row-block matmuls of W_gcn
        h = (jnp.dot(x_init, wga, preferred_element_type=f32)
             + jnp.dot(x1, wgb, preferred_element_type=f32)
             + jnp.dot(x2, wgc, preferred_element_type=f32))
        x_tmp = leaky(jnp.dot(adj_gcn, h, preferred_element_type=f32) + bg, 0.01)
        y_t = y_tm + gat(x_tmp, w2, ws2, wd2, b2)                # [N, 1], un-clamped
        # place prediction into output column t (lane-dense accumulator)
        y_out = y_out + y_t * jnp.where(cols_tf == t, f32(1.0), f32(0.0))
        # autoregressive state update (include_t=False branch)
        if t_past == 1:
            x_init = y_t
        else:
            x_init = (jnp.dot(x_init, shift_left, preferred_element_type=f32)
                      + y_t * last_col_p)
    out_ref[...] = jnp.clip(y_out, 0.0, 90.0)                    # single lane-dense store


# ----------------------------------------------------------------------------
# Wrapper: one pallas_call per forward (param-only precomputes hoisted here)
# ----------------------------------------------------------------------------

def gnn2_forward(x_init, params, adj_gat, adj_gcn_norm, *, T_future):
    """x_init: [N, T_past] float32.  Returns y_pred: [N, T_future] float32."""
    N, T_past = x_init.shape
    g0, g1, gc, g2 = params["gat0"], params["gat1"], params["gcn"], params["gat_out"]
    hidden = g0["W"].shape[1]

    def fold(g):
        # Fold the attention vectors through W (once per forward):
        #   e_src_j = att_src · (W^T x_j) = x_j · (W att_src^T)  -> row [1, Cin]
        #   e_dst_i = att_dst · (W^T x_i) = x_i · (W att_dst^T)  -> col [Cin, 1]
        ws_row = g["att_src"] @ g["W"].T       # [1, Cin]
        wd_col = g["W"] @ g["att_dst"].T       # [Cin, 1]
        return g["W"], ws_row, wd_col, g["bias"]

    w0, ws0, wd0, b0 = fold(g0)
    w1, ws1, wd1, b1 = fold(g1)
    w2, ws2, wd2, b2 = fold(g2)

    # Split the GCN weight into row blocks so the in-kernel concat becomes a
    # sum of matmuls.
    wg = gc["W"]
    wga = wg[:T_past, :]
    wgb = wg[T_past:T_past + hidden, :]
    wgc = wg[T_past + hidden:T_past + 2 * hidden, :]

    vmem = pl.BlockSpec(memory_space=pltpu.MemorySpace.VMEM)
    operands = (x_init, adj_gat, adj_gcn_norm,
                w0, ws0, wd0, b0,
                w1, ws1, wd1, b1,
                wga, wgb, wgc, gc["bias"],
                w2, ws2, wd2, b2)

    return pl.pallas_call(
        _gnn2_fused_kernel,
        out_shape=jax.ShapeDtypeStruct((N, T_future), jnp.float32),
        in_specs=[vmem] * len(operands),
        out_specs=vmem,
    )(*operands)


# ----------------------------------------------------------------------------
# Deterministic parameter / graph construction
# ----------------------------------------------------------------------------

def init_gat_params(key, c_in, c_out):
    k1, k2, k3 = jax.random.split(key, 3)
    return {
        "W": 0.1 * jax.random.normal(k1, (c_in, c_out), jnp.float32),
        "att_src": 0.1 * jax.random.normal(k2, (1, c_out), jnp.float32),
        "att_dst": 0.1 * jax.random.normal(k3, (1, c_out), jnp.float32),
        "bias": jnp.zeros((1, c_out), jnp.float32),
    }


def init_gcn_params(key, c_in, c_out):
    return {
        "W": 0.1 * jax.random.normal(key, (c_in, c_out), jnp.float32),
        "bias": jnp.zeros((1, c_out), jnp.float32),
    }


def build_graph(key, n_nodes):
    """Bidirectional ring graph with random positive edge weights."""
    src = jnp.concatenate([jnp.arange(n_nodes), (jnp.arange(n_nodes) + 1) % n_nodes])
    dst = jnp.concatenate([(jnp.arange(n_nodes) + 1) % n_nodes, jnp.arange(n_nodes)])
    e_w = 0.5 + jax.random.uniform(key, (src.shape[0],), jnp.float32)

    # GAT adjacency mask: adj[target, source] = 1, plus self loops.
    adj_gat = jnp.zeros((n_nodes, n_nodes), jnp.float32)
    adj_gat = adj_gat.at[dst, src].set(1.0)
    adj_gat = adj_gat.at[jnp.arange(n_nodes), jnp.arange(n_nodes)].set(1.0)

    # GCN normalized adjacency: D^-1/2 (A_w + I) D^-1/2 (self-loop weight 1).
    a_w = jnp.zeros((n_nodes, n_nodes), jnp.float32)
    a_w = a_w.at[dst, src].set(e_w)
    a_w = a_w + jnp.eye(n_nodes, dtype=jnp.float32)
    deg = jnp.sum(a_w, axis=1)
    d_inv_sqrt = jnp.where(deg > 0, 1.0 / jnp.sqrt(deg), 0.0)
    adj_gcn_norm = d_inv_sqrt[:, None] * a_w * d_inv_sqrt[None, :]
    return adj_gat, adj_gcn_norm


if __name__ == "__main__":
    # small shapes consistent with GNN2(in_channels=T_past, hidden_channels=H)
    N_NODES = 16
    T_PAST = 4          # in_channels
    HIDDEN = 8          # hidden_channels
    NUM_LAYERS = 4
    T_FUTURE = 3
    TEMP_CH = HIDDEN * (NUM_LAYERS - 2) + T_PAST   # 8*2 + 4 = 20

    root = jax.random.PRNGKey(0)
    k_graph, k_x, k0, k1, k2, k3 = jax.random.split(root, 6)

    adj_gat, adj_gcn_norm = build_graph(k_graph, N_NODES)
    x = 50.0 * jax.random.uniform(k_x, (N_NODES, T_PAST), jnp.float32)

    params = {
        "gat0": init_gat_params(k0, T_PAST, HIDDEN),
        "gat1": init_gat_params(k1, HIDDEN, HIDDEN),
        "gcn": init_gcn_params(k2, TEMP_CH, TEMP_CH),
        "gat_out": init_gat_params(k3, TEMP_CH, 1),
    }

    fwd = jax.jit(functools.partial(gnn2_forward, T_future=T_FUTURE))
    y = fwd(x, params, adj_gat, adj_gcn_norm)
    jax.block_until_ready(y)
    assert y.shape == (N_NODES, T_FUTURE)
    assert bool(jnp.all(jnp.isfinite(y)))
    assert bool(jnp.all((y >= 0.0) & (y <= 90.0)))
    print("KERNEL_OK")
</pallas_src>

<mosaic_0001>
module attributes {stable_mosaic.version = 11 : i64} {
  func.func @_gnn2_fused_kernel(%arg0: memref<16x4xf32, #tpu.memory_space<vmem>>, %arg1: memref<16x16xf32, #tpu.memory_space<vmem>>, %arg2: memref<16x16xf32, #tpu.memory_space<vmem>>, %arg3: memref<4x8xf32, #tpu.memory_space<vmem>>, %arg4: memref<1x4xf32, #tpu.memory_space<vmem>>, %arg5: memref<4x1xf32, #tpu.memory_space<vmem>>, %arg6: memref<1x8xf32, #tpu.memory_space<vmem>>, %arg7: memref<8x8xf32, #tpu.memory_space<vmem>>, %arg8: memref<1x8xf32, #tpu.memory_space<vmem>>, %arg9: memref<8x1xf32, #tpu.memory_space<vmem>>, %arg10: memref<1x8xf32, #tpu.memory_space<vmem>>, %arg11: memref<4x20xf32, #tpu.memory_space<vmem>>, %arg12: memref<8x20xf32, #tpu.memory_space<vmem>>, %arg13: memref<8x20xf32, #tpu.memory_space<vmem>>, %arg14: memref<1x20xf32, #tpu.memory_space<vmem>>, %arg15: memref<20x1xf32, #tpu.memory_space<vmem>>, %arg16: memref<1x20xf32, #tpu.memory_space<vmem>>, %arg17: memref<20x1xf32, #tpu.memory_space<vmem>>, %arg18: memref<1x1xf32, #tpu.memory_space<vmem>>, %arg19: memref<16x3xf32, #tpu.memory_space<vmem>>) attributes {dimension_semantics = [], scalar_prefetch = 0 : i64, scratch_operands = 0 : i64, tpu.core_type = #tpu.core_type<tc>} {
    %c0 = arith.constant 0 : index
    %c0_0 = arith.constant 0 : index
    %0 = vector.load %arg1[%c0, %c0_0] : memref<16x16xf32, #tpu.memory_space<vmem>>, vector<16x16xf32>
    %cst = arith.constant 0.000000e+00 : f32
    %1 = vector.broadcast %cst : f32 to vector<16x16xf32>
    %2 = arith.cmpf ogt, %0, %1 : vector<16x16xf32>
    %cst_1 = arith.constant 0.000000e+00 : f32
    %cst_2 = arith.constant -1.000000e+30 : f32
    %3 = vector.broadcast %cst_1 : f32 to vector<16x16xf32>
    %4 = vector.broadcast %cst_2 : f32 to vector<16x16xf32>
    %5 = arith.select %2, %3, %4 : vector<16x16xi1>, vector<16x16xf32>
    %c0_3 = arith.constant 0 : index
    %c0_4 = arith.constant 0 : index
    %6 = vector.load %arg2[%c0_3, %c0_4] : memref<16x16xf32, #tpu.memory_space<vmem>>, vector<16x16xf32>
    %7 = tpu.iota {dimensions = array<i32: 0>} : vector<4x4xi32>
    %8 = tpu.iota {dimensions = array<i32: 1>} : vector<4x4xi32>
    %c1_i32 = arith.constant 1 : i32
    %9 = vector.broadcast %c1_i32 : i32 to vector<4x4xi32>
    %10 = arith.subi %7, %9 : vector<4x4xi32>
    %11 = arith.cmpi eq, %8, %10 : vector<4x4xi32>
    %cst_5 = arith.constant 1.000000e+00 : f32
    %cst_6 = arith.constant 0.000000e+00 : f32
    %12 = vector.broadcast %cst_5 : f32 to vector<4x4xf32>
    %13 = vector.broadcast %cst_6 : f32 to vector<4x4xf32>
    %14 = arith.select %11, %12, %13 : vector<4x4xi1>, vector<4x4xf32>
    %15 = tpu.iota {dimensions = array<i32: 1>} : vector<1x4xi32>
    %c3_i32 = arith.constant 3 : i32
    %16 = vector.broadcast %c3_i32 : i32 to vector<1x4xi32>
    %17 = arith.cmpi eq, %15, %16 : vector<1x4xi32>
    %cst_7 = arith.constant 1.000000e+00 : f32
    %cst_8 = arith.constant 0.000000e+00 : f32
    %18 = vector.broadcast %cst_7 : f32 to vector<1x4xf32>
    %19 = vector.broadcast %cst_8 : f32 to vector<1x4xf32>
    %20 = arith.select %17, %18, %19 : vector<1x4xi1>, vector<1x4xf32>
    %21 = tpu.iota {dimensions = array<i32: 1>} : vector<1x3xi32>
    %c0_9 = arith.constant 0 : index
    %c0_10 = arith.constant 0 : index
    %22 = vector.load %arg3[%c0_9, %c0_10] : memref<4x8xf32, #tpu.memory_space<vmem>>, vector<4x8xf32>
    %c0_11 = arith.constant 0 : index
    %c0_12 = arith.constant 0 : index
    %23 = vector.load %arg5[%c0_11, %c0_12] : memref<4x1xf32, #tpu.memory_space<vmem>>, vector<4x1xf32>
    %c0_13 = arith.constant 0 : index
    %c0_14 = arith.constant 0 : index
    %24 = vector.load %arg6[%c0_13, %c0_14] : memref<1x8xf32, #tpu.memory_space<vmem>>, vector<1x8xf32>
    %c0_15 = arith.constant 0 : index
    %c0_16 = arith.constant 0 : index
    %25 = vector.load %arg7[%c0_15, %c0_16] : memref<8x8xf32, #tpu.memory_space<vmem>>, vector<8x8xf32>
    %c0_17 = arith.constant 0 : index
    %c0_18 = arith.constant 0 : index
    %26 = vector.load %arg9[%c0_17, %c0_18] : memref<8x1xf32, #tpu.memory_space<vmem>>, vector<8x1xf32>
    %c0_19 = arith.constant 0 : index
    %c0_20 = arith.constant 0 : index
    %27 = vector.load %arg10[%c0_19, %c0_20] : memref<1x8xf32, #tpu.memory_space<vmem>>, vector<1x8xf32>
    %c0_21 = arith.constant 0 : index
    %c0_22 = arith.constant 0 : index
    %28 = vector.load %arg11[%c0_21, %c0_22] : memref<4x20xf32, #tpu.memory_space<vmem>>, vector<4x20xf32>
    %c0_23 = arith.constant 0 : index
    %c0_24 = arith.constant 0 : index
    %29 = vector.load %arg12[%c0_23, %c0_24] : memref<8x20xf32, #tpu.memory_space<vmem>>, vector<8x20xf32>
    %c0_25 = arith.constant 0 : index
    %c0_26 = arith.constant 0 : index
    %30 = vector.load %arg13[%c0_25, %c0_26] : memref<8x20xf32, #tpu.memory_space<vmem>>, vector<8x20xf32>
    %c0_27 = arith.constant 0 : index
    %c0_28 = arith.constant 0 : index
    %31 = vector.load %arg14[%c0_27, %c0_28] : memref<1x20xf32, #tpu.memory_space<vmem>>, vector<1x20xf32>
    %c0_29 = arith.constant 0 : index
    %c0_30 = arith.constant 0 : index
    %32 = vector.load %arg15[%c0_29, %c0_30] : memref<20x1xf32, #tpu.memory_space<vmem>>, vector<20x1xf32>
    %c0_31 = arith.constant 0 : index
    %c0_32 = arith.constant 0 : index
    %33 = vector.load %arg17[%c0_31, %c0_32] : memref<20x1xf32, #tpu.memory_space<vmem>>, vector<20x1xf32>
    %c0_33 = arith.constant 0 : index
    %c0_34 = arith.constant 0 : index
    %34 = vector.load %arg18[%c0_33, %c0_34] : memref<1x1xf32, #tpu.memory_space<vmem>>, vector<1x1xf32>
    %c0_35 = arith.constant 0 : index
    %c0_36 = arith.constant 0 : index
    %35 = vector.load %arg4[%c0_35, %c0_36] : memref<1x4xf32, #tpu.memory_space<vmem>>, vector<1x4xf32>
    %36 = vector.shape_cast %35 : vector<1x4xf32> to vector<1x4xf32>
    %37 = vector.broadcast %36 : vector<1x4xf32> to vector<16x4xf32>
    %c0_37 = arith.constant 0 : index
    %c0_38 = arith.constant 0 : index
    %38 = vector.load %arg8[%c0_37, %c0_38] : memref<1x8xf32, #tpu.memory_space<vmem>>, vector<1x8xf32>
    %39 = vector.shape_cast %38 : vector<1x8xf32> to vector<1x8xf32>
    %40 = vector.broadcast %39 : vector<1x8xf32> to vector<16x8xf32>
    %c0_39 = arith.constant 0 : index
    %c0_40 = arith.constant 0 : index
    %41 = vector.load %arg16[%c0_39, %c0_40] : memref<1x20xf32, #tpu.memory_space<vmem>>, vector<1x20xf32>
    %42 = vector.shape_cast %41 : vector<1x20xf32> to vector<1x20xf32>
    %43 = vector.broadcast %42 : vector<1x20xf32> to vector<16x20xf32>
    %c0_41 = arith.constant 0 : index
    %c0_42 = arith.constant 0 : index
    %44 = vector.load %arg0[%c0_41, %c0_42] : memref<16x4xf32, #tpu.memory_space<vmem>>, vector<16x4xf32>
    %cst_43 = arith.constant 0.000000e+00 : f32
    %45 = vector.broadcast %cst_43 : f32 to vector<16x3xf32>
    %cst_44 = arith.constant dense<0.000000e+00> : vector<16xf32>
    %46 = vector.multi_reduction <add>, %44, %cst_44 [1] : vector<16x4xf32> to vector<16xf32>
    %47 = vector.shape_cast %46 : vector<16xf32> to vector<16x1xf32>
    %cst_45 = arith.constant 4.000000e+00 : f32
    %48 = vector.broadcast %cst_45 : f32 to vector<16x1xf32>
    %49 = arith.divf %47, %48 : vector<16x1xf32>
    %cst_46 = arith.constant dense<0.000000e+00> : vector<16x8xf32>
    %50 = tpu.matmul %44, %22, %cst_46 {dimension_numbers = #tpu.dot_dimension_numbers<[1], [0], [0], [1], [0, 0, 1, 1], [], []>} : vector<16x4xf32>, vector<4x8xf32>, vector<16x8xf32> -> vector<16x8xf32>
    %cst_47 = arith.constant dense<0.000000e+00> : vector<16x1xf32>
    %51 = tpu.matmul %44, %23, %cst_47 {dimension_numbers = #tpu.dot_dimension_numbers<[1], [0], [0], [1], [0, 0, 1, 1], [], []>} : vector<16x4xf32>, vector<4x1xf32>, vector<16x1xf32> -> vector<16x1xf32>
    %cst_48 = arith.constant dense<0.000000e+00> : vector<16x16xf32>
    %52 = tpu.matmul %37, %44, %cst_48 {dimension_numbers = #tpu.dot_dimension_numbers<[1], [1], [0], [0], [0, 0, 1, 0], [], []>} : vector<16x4xf32>, vector<16x4xf32>, vector<16x16xf32> -> vector<16x16xf32>
    %53 = vector.broadcast %51 : vector<16x1xf32> to vector<16x16xf32>
    %54 = arith.addf %53, %52 : vector<16x16xf32>
    %cst_49 = arith.constant 0.000000e+00 : f32
    %55 = vector.broadcast %cst_49 : f32 to vector<16x16xf32>
    %56 = arith.cmpf oge, %54, %55 : vector<16x16xf32>
    %cst_50 = arith.constant 2.000000e-01 : f32
    %57 = vector.broadcast %cst_50 : f32 to vector<16x16xf32>
    %58 = arith.mulf %57, %54 : vector<16x16xf32>
    %59 = arith.select %56, %54, %58 : vector<16x16xi1>, vector<16x16xf32>
    %60 = arith.addf %59, %5 : vector<16x16xf32>
    %cst_51 = arith.constant dense<0xFF800000> : vector<16xf32>
    %61 = vector.multi_reduction <maximumf>, %60, %cst_51 [1] : vector<16x16xf32> to vector<16xf32>
    %62 = vector.shape_cast %61 : vector<16xf32> to vector<16x1xf32>
    %63 = vector.broadcast %62 : vector<16x1xf32> to vector<16x16xf32>
    %64 = arith.subf %60, %63 : vector<16x16xf32>
    %65 = math.exp %64 : vector<16x16xf32>
    %cst_52 = arith.constant dense<0.000000e+00> : vector<16xf32>
    %66 = vector.multi_reduction <add>, %65, %cst_52 [1] : vector<16x16xf32> to vector<16xf32>
    %67 = vector.shape_cast %66 : vector<16xf32> to vector<16x1xf32>
    %68 = tpu.reciprocal %67 {approx = true} : vector<16x1xf32> -> vector<16x1xf32>
    %69 = vector.broadcast %68 : vector<16x1xf32> to vector<16x16xf32>
    %70 = arith.mulf %65, %69 : vector<16x16xf32>
    %cst_53 = arith.constant dense<0.000000e+00> : vector<16x8xf32>
    %71 = tpu.matmul %70, %50, %cst_53 {dimension_numbers = #tpu.dot_dimension_numbers<[1], [0], [0], [1], [0, 0, 1, 1], [], []>} : vector<16x16xf32>, vector<16x8xf32>, vector<16x8xf32> -> vector<16x8xf32>
    %72 = vector.broadcast %24 : vector<1x8xf32> to vector<16x8xf32>
    %73 = arith.addf %71, %72 : vector<16x8xf32>
    %cst_54 = arith.constant 0.000000e+00 : f32
    %74 = vector.broadcast %cst_54 : f32 to vector<16x8xf32>
    %75 = arith.cmpf oge, %73, %74 : vector<16x8xf32>
    %cst_55 = arith.constant 0.00999999977 : f32
    %76 = vector.broadcast %cst_55 : f32 to vector<16x8xf32>
    %77 = arith.mulf %76, %73 : vector<16x8xf32>
    %78 = arith.select %75, %73, %77 : vector<16x8xi1>, vector<16x8xf32>
    %cst_56 = arith.constant dense<0.000000e+00> : vector<16x8xf32>
    %79 = tpu.matmul %78, %25, %cst_56 {dimension_numbers = #tpu.dot_dimension_numbers<[1], [0], [0], [1], [0, 0, 1, 1], [], []>} : vector<16x8xf32>, vector<8x8xf32>, vector<16x8xf32> -> vector<16x8xf32>
    %cst_57 = arith.constant dense<0.000000e+00> : vector<16x1xf32>
    %80 = tpu.matmul %78, %26, %cst_57 {dimension_numbers = #tpu.dot_dimension_numbers<[1], [0], [0], [1], [0, 0, 1, 1], [], []>} : vector<16x8xf32>, vector<8x1xf32>, vector<16x1xf32> -> vector<16x1xf32>
    %cst_58 = arith.constant dense<0.000000e+00> : vector<16x16xf32>
    %81 = tpu.matmul %40, %78, %cst_58 {dimension_numbers = #tpu.dot_dimension_numbers<[1], [1], [0], [0], [0, 0, 1, 0], [], []>} : vector<16x8xf32>, vector<16x8xf32>, vector<16x16xf32> -> vector<16x16xf32>
    %82 = vector.broadcast %80 : vector<16x1xf32> to vector<16x16xf32>
    %83 = arith.addf %82, %81 : vector<16x16xf32>
    %cst_59 = arith.constant 0.000000e+00 : f32
    %84 = vector.broadcast %cst_59 : f32 to vector<16x16xf32>
    %85 = arith.cmpf oge, %83, %84 : vector<16x16xf32>
    %cst_60 = arith.constant 2.000000e-01 : f32
    %86 = vector.broadcast %cst_60 : f32 to vector<16x16xf32>
    %87 = arith.mulf %86, %83 : vector<16x16xf32>
    %88 = arith.select %85, %83, %87 : vector<16x16xi1>, vector<16x16xf32>
    %89 = arith.addf %88, %5 : vector<16x16xf32>
    %cst_61 = arith.constant dense<0xFF800000> : vector<16xf32>
    %90 = vector.multi_reduction <maximumf>, %89, %cst_61 [1] : vector<16x16xf32> to vector<16xf32>
    %91 = vector.shape_cast %90 : vector<16xf32> to vector<16x1xf32>
    %92 = vector.broadcast %91 : vector<16x1xf32> to vector<16x16xf32>
    %93 = arith.subf %89, %92 : vector<16x16xf32>
    %94 = math.exp %93 : vector<16x16xf32>
    %cst_62 = arith.constant dense<0.000000e+00> : vector<16xf32>
    %95 = vector.multi_reduction <add>, %94, %cst_62 [1] : vector<16x16xf32> to vector<16xf32>
    %96 = vector.shape_cast %95 : vector<16xf32> to vector<16x1xf32>
    %97 = tpu.reciprocal %96 {approx = true} : vector<16x1xf32> -> vector<16x1xf32>
    %98 = vector.broadcast %97 : vector<16x1xf32> to vector<16x16xf32>
    %99 = arith.mulf %94, %98 : vector<16x16xf32>
    %cst_63 = arith.constant dense<0.000000e+00> : vector<16x8xf32>
    %100 = tpu.matmul %99, %79, %cst_63 {dimension_numbers = #tpu.dot_dimension_numbers<[1], [0], [0], [1], [0, 0, 1, 1], [], []>} : vector<16x16xf32>, vector<16x8xf32>, vector<16x8xf32> -> vector<16x8xf32>
    %101 = vector.broadcast %27 : vector<1x8xf32> to vector<16x8xf32>
    %102 = arith.addf %100, %101 : vector<16x8xf32>
    %cst_64 = arith.constant 0.000000e+00 : f32
    %103 = vector.broadcast %cst_64 : f32 to vector<16x8xf32>
    %104 = arith.cmpf oge, %102, %103 : vector<16x8xf32>
    %cst_65 = arith.constant 0.00999999977 : f32
    %105 = vector.broadcast %cst_65 : f32 to vector<16x8xf32>
    %106 = arith.mulf %105, %102 : vector<16x8xf32>
    %107 = arith.select %104, %102, %106 : vector<16x8xi1>, vector<16x8xf32>
    %cst_66 = arith.constant dense<0.000000e+00> : vector<16x20xf32>
    %108 = tpu.matmul %44, %28, %cst_66 {dimension_numbers = #tpu.dot_dimension_numbers<[1], [0], [0], [1], [0, 0, 1, 1], [], []>} : vector<16x4xf32>, vector<4x20xf32>, vector<16x20xf32> -> vector<16x20xf32>
    %cst_67 = arith.constant dense<0.000000e+00> : vector<16x20xf32>
    %109 = tpu.matmul %78, %29, %cst_67 {dimension_numbers = #tpu.dot_dimension_numbers<[1], [0], [0], [1], [0, 0, 1, 1], [], []>} : vector<16x8xf32>, vector<8x20xf32>, vector<16x20xf32> -> vector<16x20xf32>
    %110 = arith.addf %108, %109 : vector<16x20xf32>
    %cst_68 = arith.constant dense<0.000000e+00> : vector<16x20xf32>
    %111 = tpu.matmul %107, %30, %cst_68 {dimension_numbers = #tpu.dot_dimension_numbers<[1], [0], [0], [1], [0, 0, 1, 1], [], []>} : vector<16x8xf32>, vector<8x20xf32>, vector<16x20xf32> -> vector<16x20xf32>
    %112 = arith.addf %110, %111 : vector<16x20xf32>
    %cst_69 = arith.constant dense<0.000000e+00> : vector<16x20xf32>
    %113 = tpu.matmul %6, %112, %cst_69 {dimension_numbers = #tpu.dot_dimension_numbers<[1], [0], [0], [1], [0, 0, 1, 1], [], []>} : vector<16x16xf32>, vector<16x20xf32>, vector<16x20xf32> -> vector<16x20xf32>
    %114 = vector.broadcast %31 : vector<1x20xf32> to vector<16x20xf32>
    %115 = arith.addf %113, %114 : vector<16x20xf32>
    %cst_70 = arith.constant 0.000000e+00 : f32
    %116 = vector.broadcast %cst_70 : f32 to vector<16x20xf32>
    %117 = arith.cmpf oge, %115, %116 : vector<16x20xf32>
    %cst_71 = arith.constant 0.00999999977 : f32
    %118 = vector.broadcast %cst_71 : f32 to vector<16x20xf32>
    %119 = arith.mulf %118, %115 : vector<16x20xf32>
    %120 = arith.select %117, %115, %119 : vector<16x20xi1>, vector<16x20xf32>
    %cst_72 = arith.constant dense<0.000000e+00> : vector<16x1xf32>
    %121 = tpu.matmul %120, %32, %cst_72 {dimension_numbers = #tpu.dot_dimension_numbers<[1], [0], [0], [1], [0, 0, 1, 1], [], []>} : vector<16x20xf32>, vector<20x1xf32>, vector<16x1xf32> -> vector<16x1xf32>
    %cst_73 = arith.constant dense<0.000000e+00> : vector<16x1xf32>
    %122 = tpu.matmul %120, %33, %cst_73 {dimension_numbers = #tpu.dot_dimension_numbers<[1], [0], [0], [1], [0, 0, 1, 1], [], []>} : vector<16x20xf32>, vector<20x1xf32>, vector<16x1xf32> -> vector<16x1xf32>
    %cst_74 = arith.constant dense<0.000000e+00> : vector<16x16xf32>
    %123 = tpu.matmul %43, %120, %cst_74 {dimension_numbers = #tpu.dot_dimension_numbers<[1], [1], [0], [0], [0, 0, 1, 0], [], []>} : vector<16x20xf32>, vector<16x20xf32>, vector<16x16xf32> -> vector<16x16xf32>
    %124 = vector.broadcast %122 : vector<16x1xf32> to vector<16x16xf32>
    %125 = arith.addf %124, %123 : vector<16x16xf32>
    %cst_75 = arith.constant 0.000000e+00 : f32
    %126 = vector.broadcast %cst_75 : f32 to vector<16x16xf32>
    %127 = arith.cmpf oge, %125, %126 : vector<16x16xf32>
    %cst_76 = arith.constant 2.000000e-01 : f32
    %128 = vector.broadcast %cst_76 : f32 to vector<16x16xf32>
    %129 = arith.mulf %128, %125 : vector<16x16xf32>
    %130 = arith.select %127, %125, %129 : vector<16x16xi1>, vector<16x16xf32>
    %131 = arith.addf %130, %5 : vector<16x16xf32>
    %cst_77 = arith.constant dense<0xFF800000> : vector<16xf32>
    %132 = vector.multi_reduction <maximumf>, %131, %cst_77 [1] : vector<16x16xf32> to vector<16xf32>
    %133 = vector.shape_cast %132 : vector<16xf32> to vector<16x1xf32>
    %134 = vector.broadcast %133 : vector<16x1xf32> to vector<16x16xf32>
    %135 = arith.subf %131, %134 : vector<16x16xf32>
    %136 = math.exp %135 : vector<16x16xf32>
    %cst_78 = arith.constant dense<0.000000e+00> : vector<16xf32>
    %137 = vector.multi_reduction <add>, %136, %cst_78 [1] : vector<16x16xf32> to vector<16xf32>
    %138 = vector.shape_cast %137 : vector<16xf32> to vector<16x1xf32>
    %139 = tpu.reciprocal %138 {approx = true} : vector<16x1xf32> -> vector<16x1xf32>
    %140 = vector.broadcast %139 : vector<16x1xf32> to vector<16x16xf32>
    %141 = arith.mulf %136, %140 : vector<16x16xf32>
    %cst_79 = arith.constant dense<0.000000e+00> : vector<16x1xf32>
    %142 = tpu.matmul %141, %121, %cst_79 {dimension_numbers = #tpu.dot_dimension_numbers<[1], [0], [0], [1], [0, 0, 1, 1], [], []>} : vector<16x16xf32>, vector<16x1xf32>, vector<16x1xf32> -> vector<16x1xf32>
    %143 = vector.broadcast %34 : vector<1x1xf32> to vector<16x1xf32>
    %144 = arith.addf %142, %143 : vector<16x1xf32>
    %145 = arith.addf %49, %144 : vector<16x1xf32>
    %c0_i32 = arith.constant 0 : i32
    %146 = vector.broadcast %c0_i32 : i32 to vector<1x3xi32>
    %147 = arith.cmpi eq, %21, %146 : vector<1x3xi32>
    %cst_80 = arith.constant 1.000000e+00 : f32
    %cst_81 = arith.constant 0.000000e+00 : f32
    %148 = vector.broadcast %cst_80 : f32 to vector<1x3xf32>
    %149 = vector.broadcast %cst_81 : f32 to vector<1x3xf32>
    %150 = arith.select %147, %148, %149 : vector<1x3xi1>, vector<1x3xf32>
    %151 = vector.broadcast %145 : vector<16x1xf32> to vector<16x3xf32>
    %152 = vector.broadcast %150 : vector<1x3xf32> to vector<16x3xf32>
    %153 = arith.mulf %151, %152 : vector<16x3xf32>
    %154 = arith.addf %45, %153 : vector<16x3xf32>
    %cst_82 = arith.constant dense<0.000000e+00> : vector<16x4xf32>
    %155 = tpu.matmul %44, %14, %cst_82 {dimension_numbers = #tpu.dot_dimension_numbers<[1], [0], [0], [1], [0, 0, 1, 1], [], []>} : vector<16x4xf32>, vector<4x4xf32>, vector<16x4xf32> -> vector<16x4xf32>
    %156 = vector.broadcast %145 : vector<16x1xf32> to vector<16x4xf32>
    %157 = vector.broadcast %20 : vector<1x4xf32> to vector<16x4xf32>
    %158 = arith.mulf %156, %157 : vector<16x4xf32>
    %159 = arith.addf %155, %158 : vector<16x4xf32>
    %cst_83 = arith.constant dense<0.000000e+00> : vector<16xf32>
    %160 = vector.multi_reduction <add>, %159, %cst_83 [1] : vector<16x4xf32> to vector<16xf32>
    %161 = vector.shape_cast %160 : vector<16xf32> to vector<16x1xf32>
    %cst_84 = arith.constant 4.000000e+00 : f32
    %162 = vector.broadcast %cst_84 : f32 to vector<16x1xf32>
    %163 = arith.divf %161, %162 : vector<16x1xf32>
    %cst_85 = arith.constant dense<0.000000e+00> : vector<16x8xf32>
    %164 = tpu.matmul %159, %22, %cst_85 {dimension_numbers = #tpu.dot_dimension_numbers<[1], [0], [0], [1], [0, 0, 1, 1], [], []>} : vector<16x4xf32>, vector<4x8xf32>, vector<16x8xf32> -> vector<16x8xf32>
    %cst_86 = arith.constant dense<0.000000e+00> : vector<16x1xf32>
    %165 = tpu.matmul %159, %23, %cst_86 {dimension_numbers = #tpu.dot_dimension_numbers<[1], [0], [0], [1], [0, 0, 1, 1], [], []>} : vector<16x4xf32>, vector<4x1xf32>, vector<16x1xf32> -> vector<16x1xf32>
    %cst_87 = arith.constant dense<0.000000e+00> : vector<16x16xf32>
    %166 = tpu.matmul %37, %159, %cst_87 {dimension_numbers = #tpu.dot_dimension_numbers<[1], [1], [0], [0], [0, 0, 1, 0], [], []>} : vector<16x4xf32>, vector<16x4xf32>, vector<16x16xf32> -> vector<16x16xf32>
    %167 = vector.broadcast %165 : vector<16x1xf32> to vector<16x16xf32>
    %168 = arith.addf %167, %166 : vector<16x16xf32>
    %cst_88 = arith.constant 0.000000e+00 : f32
    %169 = vector.broadcast %cst_88 : f32 to vector<16x16xf32>
    %170 = arith.cmpf oge, %168, %169 : vector<16x16xf32>
    %cst_89 = arith.constant 2.000000e-01 : f32
    %171 = vector.broadcast %cst_89 : f32 to vector<16x16xf32>
    %172 = arith.mulf %171, %168 : vector<16x16xf32>
    %173 = arith.select %170, %168, %172 : vector<16x16xi1>, vector<16x16xf32>
    %174 = arith.addf %173, %5 : vector<16x16xf32>
    %cst_90 = arith.constant dense<0xFF800000> : vector<16xf32>
    %175 = vector.multi_reduction <maximumf>, %174, %cst_90 [1] : vector<16x16xf32> to vector<16xf32>
    %176 = vector.shape_cast %175 : vector<16xf32> to vector<16x1xf32>
    %177 = vector.broadcast %176 : vector<16x1xf32> to vector<16x16xf32>
    %178 = arith.subf %174, %177 : vector<16x16xf32>
    %179 = math.exp %178 : vector<16x16xf32>
    %cst_91 = arith.constant dense<0.000000e+00> : vector<16xf32>
    %180 = vector.multi_reduction <add>, %179, %cst_91 [1] : vector<16x16xf32> to vector<16xf32>
    %181 = vector.shape_cast %180 : vector<16xf32> to vector<16x1xf32>
    %182 = tpu.reciprocal %181 {approx = true} : vector<16x1xf32> -> vector<16x1xf32>
    %183 = vector.broadcast %182 : vector<16x1xf32> to vector<16x16xf32>
    %184 = arith.mulf %179, %183 : vector<16x16xf32>
    %cst_92 = arith.constant dense<0.000000e+00> : vector<16x8xf32>
    %185 = tpu.matmul %184, %164, %cst_92 {dimension_numbers = #tpu.dot_dimension_numbers<[1], [0], [0], [1], [0, 0, 1, 1], [], []>} : vector<16x16xf32>, vector<16x8xf32>, vector<16x8xf32> -> vector<16x8xf32>
    %186 = vector.broadcast %24 : vector<1x8xf32> to vector<16x8xf32>
    %187 = arith.addf %185, %186 : vector<16x8xf32>
    %cst_93 = arith.constant 0.000000e+00 : f32
    %188 = vector.broadcast %cst_93 : f32 to vector<16x8xf32>
    %189 = arith.cmpf oge, %187, %188 : vector<16x8xf32>
    %cst_94 = arith.constant 0.00999999977 : f32
    %190 = vector.broadcast %cst_94 : f32 to vector<16x8xf32>
    %191 = arith.mulf %190, %187 : vector<16x8xf32>
    %192 = arith.select %189, %187, %191 : vector<16x8xi1>, vector<16x8xf32>
    %cst_95 = arith.constant dense<0.000000e+00> : vector<16x8xf32>
    %193 = tpu.matmul %192, %25, %cst_95 {dimension_numbers = #tpu.dot_dimension_numbers<[1], [0], [0], [1], [0, 0, 1, 1], [], []>} : vector<16x8xf32>, vector<8x8xf32>, vector<16x8xf32> -> vector<16x8xf32>
    %cst_96 = arith.constant dense<0.000000e+00> : vector<16x1xf32>
    %194 = tpu.matmul %192, %26, %cst_96 {dimension_numbers = #tpu.dot_dimension_numbers<[1], [0], [0], [1], [0, 0, 1, 1], [], []>} : vector<16x8xf32>, vector<8x1xf32>, vector<16x1xf32> -> vector<16x1xf32>
    %cst_97 = arith.constant dense<0.000000e+00> : vector<16x16xf32>
    %195 = tpu.matmul %40, %192, %cst_97 {dimension_numbers = #tpu.dot_dimension_numbers<[1], [1], [0], [0], [0, 0, 1, 0], [], []>} : vector<16x8xf32>, vector<16x8xf32>, vector<16x16xf32> -> vector<16x16xf32>
    %196 = vector.broadcast %194 : vector<16x1xf32> to vector<16x16xf32>
    %197 = arith.addf %196, %195 : vector<16x16xf32>
    %cst_98 = arith.constant 0.000000e+00 : f32
    %198 = vector.broadcast %cst_98 : f32 to vector<16x16xf32>
    %199 = arith.cmpf oge, %197, %198 : vector<16x16xf32>
    %cst_99 = arith.constant 2.000000e-01 : f32
    %200 = vector.broadcast %cst_99 : f32 to vector<16x16xf32>
    %201 = arith.mulf %200, %197 : vector<16x16xf32>
    %202 = arith.select %199, %197, %201 : vector<16x16xi1>, vector<16x16xf32>
    %203 = arith.addf %202, %5 : vector<16x16xf32>
    %cst_100 = arith.constant dense<0xFF800000> : vector<16xf32>
    %204 = vector.multi_reduction <maximumf>, %203, %cst_100 [1] : vector<16x16xf32> to vector<16xf32>
    %205 = vector.shape_cast %204 : vector<16xf32> to vector<16x1xf32>
    %206 = vector.broadcast %205 : vector<16x1xf32> to vector<16x16xf32>
    %207 = arith.subf %203, %206 : vector<16x16xf32>
    %208 = math.exp %207 : vector<16x16xf32>
    %cst_101 = arith.constant dense<0.000000e+00> : vector<16xf32>
    %209 = vector.multi_reduction <add>, %208, %cst_101 [1] : vector<16x16xf32> to vector<16xf32>
    %210 = vector.shape_cast %209 : vector<16xf32> to vector<16x1xf32>
    %211 = tpu.reciprocal %210 {approx = true} : vector<16x1xf32> -> vector<16x1xf32>
    %212 = vector.broadcast %211 : vector<16x1xf32> to vector<16x16xf32>
    %213 = arith.mulf %208, %212 : vector<16x16xf32>
    %cst_102 = arith.constant dense<0.000000e+00> : vector<16x8xf32>
    %214 = tpu.matmul %213, %193, %cst_102 {dimension_numbers = #tpu.dot_dimension_numbers<[1], [0], [0], [1], [0, 0, 1, 1], [], []>} : vector<16x16xf32>, vector<16x8xf32>, vector<16x8xf32> -> vector<16x8xf32>
    %215 = vector.broadcast %27 : vector<1x8xf32> to vector<16x8xf32>
    %216 = arith.addf %214, %215 : vector<16x8xf32>
    %cst_103 = arith.constant 0.000000e+00 : f32
    %217 = vector.broadcast %cst_103 : f32 to vector<16x8xf32>
    %218 = arith.cmpf oge, %216, %217 : vector<16x8xf32>
    %cst_104 = arith.constant 0.00999999977 : f32
    %219 = vector.broadcast %cst_104 : f32 to vector<16x8xf32>
    %220 = arith.mulf %219, %216 : vector<16x8xf32>
    %221 = arith.select %218, %216, %220 : vector<16x8xi1>, vector<16x8xf32>
    %cst_105 = arith.constant dense<0.000000e+00> : vector<16x20xf32>
    %222 = tpu.matmul %159, %28, %cst_105 {dimension_numbers = #tpu.dot_dimension_numbers<[1], [0], [0], [1], [0, 0, 1, 1], [], []>} : vector<16x4xf32>, vector<4x20xf32>, vector<16x20xf32> -> vector<16x20xf32>
    %cst_106 = arith.constant dense<0.000000e+00> : vector<16x20xf32>
    %223 = tpu.matmul %192, %29, %cst_106 {dimension_numbers = #tpu.dot_dimension_numbers<[1], [0], [0], [1], [0, 0, 1, 1], [], []>} : vector<16x8xf32>, vector<8x20xf32>, vector<16x20xf32> -> vector<16x20xf32>
    %224 = arith.addf %222, %223 : vector<16x20xf32>
    %cst_107 = arith.constant dense<0.000000e+00> : vector<16x20xf32>
    %225 = tpu.matmul %221, %30, %cst_107 {dimension_numbers = #tpu.dot_dimension_numbers<[1], [0], [0], [1], [0, 0, 1, 1], [], []>} : vector<16x8xf32>, vector<8x20xf32>, vector<16x20xf32> -> vector<16x20xf32>
    %226 = arith.addf %224, %225 : vector<16x20xf32>
    %cst_108 = arith.constant dense<0.000000e+00> : vector<16x20xf32>
    %227 = tpu.matmul %6, %226, %cst_108 {dimension_numbers = #tpu.dot_dimension_numbers<[1], [0], [0], [1], [0, 0, 1, 1], [], []>} : vector<16x16xf32>, vector<16x20xf32>, vector<16x20xf32> -> vector<16x20xf32>
    %228 = vector.broadcast %31 : vector<1x20xf32> to vector<16x20xf32>
    %229 = arith.addf %227, %228 : vector<16x20xf32>
    %cst_109 = arith.constant 0.000000e+00 : f32
    %230 = vector.broadcast %cst_109 : f32 to vector<16x20xf32>
    %231 = arith.cmpf oge, %229, %230 : vector<16x20xf32>
    %cst_110 = arith.constant 0.00999999977 : f32
    %232 = vector.broadcast %cst_110 : f32 to vector<16x20xf32>
    %233 = arith.mulf %232, %229 : vector<16x20xf32>
    %234 = arith.select %231, %229, %233 : vector<16x20xi1>, vector<16x20xf32>
    %cst_111 = arith.constant dense<0.000000e+00> : vector<16x1xf32>
    %235 = tpu.matmul %234, %32, %cst_111 {dimension_numbers = #tpu.dot_dimension_numbers<[1], [0], [0], [1], [0, 0, 1, 1], [], []>} : vector<16x20xf32>, vector<20x1xf32>, vector<16x1xf32> -> vector<16x1xf32>
    %cst_112 = arith.constant dense<0.000000e+00> : vector<16x1xf32>
    %236 = tpu.matmul %234, %33, %cst_112 {dimension_numbers = #tpu.dot_dimension_numbers<[1], [0], [0], [1], [0, 0, 1, 1], [], []>} : vector<16x20xf32>, vector<20x1xf32>, vector<16x1xf32> -> vector<16x1xf32>
    %cst_113 = arith.constant dense<0.000000e+00> : vector<16x16xf32>
    %237 = tpu.matmul %43, %234, %cst_113 {dimension_numbers = #tpu.dot_dimension_numbers<[1], [1], [0], [0], [0, 0, 1, 0], [], []>} : vector<16x20xf32>, vector<16x20xf32>, vector<16x16xf32> -> vector<16x16xf32>
    %238 = vector.broadcast %236 : vector<16x1xf32> to vector<16x16xf32>
    %239 = arith.addf %238, %237 : vector<16x16xf32>
    %cst_114 = arith.constant 0.000000e+00 : f32
    %240 = vector.broadcast %cst_114 : f32 to vector<16x16xf32>
    %241 = arith.cmpf oge, %239, %240 : vector<16x16xf32>
    %cst_115 = arith.constant 2.000000e-01 : f32
    %242 = vector.broadcast %cst_115 : f32 to vector<16x16xf32>
    %243 = arith.mulf %242, %239 : vector<16x16xf32>
    %244 = arith.select %241, %239, %243 : vector<16x16xi1>, vector<16x16xf32>
    %245 = arith.addf %244, %5 : vector<16x16xf32>
    %cst_116 = arith.constant dense<0xFF800000> : vector<16xf32>
    %246 = vector.multi_reduction <maximumf>, %245, %cst_116 [1] : vector<16x16xf32> to vector<16xf32>
    %247 = vector.shape_cast %246 : vector<16xf32> to vector<16x1xf32>
    %248 = vector.broadcast %247 : vector<16x1xf32> to vector<16x16xf32>
    %249 = arith.subf %245, %248 : vector<16x16xf32>
    %250 = math.exp %249 : vector<16x16xf32>
    %cst_117 = arith.constant dense<0.000000e+00> : vector<16xf32>
    %251 = vector.multi_reduction <add>, %250, %cst_117 [1] : vector<16x16xf32> to vector<16xf32>
    %252 = vector.shape_cast %251 : vector<16xf32> to vector<16x1xf32>
    %253 = tpu.reciprocal %252 {approx = true} : vector<16x1xf32> -> vector<16x1xf32>
    %254 = vector.broadcast %253 : vector<16x1xf32> to vector<16x16xf32>
    %255 = arith.mulf %250, %254 : vector<16x16xf32>
    %cst_118 = arith.constant dense<0.000000e+00> : vector<16x1xf32>
    %256 = tpu.matmul %255, %235, %cst_118 {dimension_numbers = #tpu.dot_dimension_numbers<[1], [0], [0], [1], [0, 0, 1, 1], [], []>} : vector<16x16xf32>, vector<16x1xf32>, vector<16x1xf32> -> vector<16x1xf32>
    %257 = vector.broadcast %34 : vector<1x1xf32> to vector<16x1xf32>
    %258 = arith.addf %256, %257 : vector<16x1xf32>
    %259 = arith.addf %163, %258 : vector<16x1xf32>
    %c1_i32_119 = arith.constant 1 : i32
    %260 = vector.broadcast %c1_i32_119 : i32 to vector<1x3xi32>
    %261 = arith.cmpi eq, %21, %260 : vector<1x3xi32>
    %cst_120 = arith.constant 1.000000e+00 : f32
    %cst_121 = arith.constant 0.000000e+00 : f32
    %262 = vector.broadcast %cst_120 : f32 to vector<1x3xf32>
    %263 = vector.broadcast %cst_121 : f32 to vector<1x3xf32>
    %264 = arith.select %261, %262, %263 : vector<1x3xi1>, vector<1x3xf32>
    %265 = vector.broadcast %259 : vector<16x1xf32> to vector<16x3xf32>
    %266 = vector.broadcast %264 : vector<1x3xf32> to vector<16x3xf32>
    %267 = arith.mulf %265, %266 : vector<16x3xf32>
    %268 = arith.addf %154, %267 : vector<16x3xf32>
    %cst_122 = arith.constant dense<0.000000e+00> : vector<16x4xf32>
    %269 = tpu.matmul %159, %14, %cst_122 {dimension_numbers = #tpu.dot_dimension_numbers<[1], [0], [0], [1], [0, 0, 1, 1], [], []>} : vector<16x4xf32>, vector<4x4xf32>, vector<16x4xf32> -> vector<16x4xf32>
    %270 = vector.broadcast %259 : vector<16x1xf32> to vector<16x4xf32>
    %271 = vector.broadcast %20 : vector<1x4xf32> to vector<16x4xf32>
    %272 = arith.mulf %270, %271 : vector<16x4xf32>
    %273 = arith.addf %269, %272 : vector<16x4xf32>
    %cst_123 = arith.constant dense<0.000000e+00> : vector<16xf32>
    %274 = vector.multi_reduction <add>, %273, %cst_123 [1] : vector<16x4xf32> to vector<16xf32>
    %275 = vector.shape_cast %274 : vector<16xf32> to vector<16x1xf32>
    %cst_124 = arith.constant 4.000000e+00 : f32
    %276 = vector.broadcast %cst_124 : f32 to vector<16x1xf32>
    %277 = arith.divf %275, %276 : vector<16x1xf32>
    %cst_125 = arith.constant dense<0.000000e+00> : vector<16x8xf32>
    %278 = tpu.matmul %273, %22, %cst_125 {dimension_numbers = #tpu.dot_dimension_numbers<[1], [0], [0], [1], [0, 0, 1, 1], [], []>} : vector<16x4xf32>, vector<4x8xf32>, vector<16x8xf32> -> vector<16x8xf32>
    %cst_126 = arith.constant dense<0.000000e+00> : vector<16x1xf32>
    %279 = tpu.matmul %273, %23, %cst_126 {dimension_numbers = #tpu.dot_dimension_numbers<[1], [0], [0], [1], [0, 0, 1, 1], [], []>} : vector<16x4xf32>, vector<4x1xf32>, vector<16x1xf32> -> vector<16x1xf32>
    %cst_127 = arith.constant dense<0.000000e+00> : vector<16x16xf32>
    %280 = tpu.matmul %37, %273, %cst_127 {dimension_numbers = #tpu.dot_dimension_numbers<[1], [1], [0], [0], [0, 0, 1, 0], [], []>} : vector<16x4xf32>, vector<16x4xf32>, vector<16x16xf32> -> vector<16x16xf32>
    %281 = vector.broadcast %279 : vector<16x1xf32> to vector<16x16xf32>
    %282 = arith.addf %281, %280 : vector<16x16xf32>
    %cst_128 = arith.constant 0.000000e+00 : f32
    %283 = vector.broadcast %cst_128 : f32 to vector<16x16xf32>
    %284 = arith.cmpf oge, %282, %283 : vector<16x16xf32>
    %cst_129 = arith.constant 2.000000e-01 : f32
    %285 = vector.broadcast %cst_129 : f32 to vector<16x16xf32>
    %286 = arith.mulf %285, %282 : vector<16x16xf32>
    %287 = arith.select %284, %282, %286 : vector<16x16xi1>, vector<16x16xf32>
    %288 = arith.addf %287, %5 : vector<16x16xf32>
    %cst_130 = arith.constant dense<0xFF800000> : vector<16xf32>
    %289 = vector.multi_reduction <maximumf>, %288, %cst_130 [1] : vector<16x16xf32> to vector<16xf32>
    %290 = vector.shape_cast %289 : vector<16xf32> to vector<16x1xf32>
    %291 = vector.broadcast %290 : vector<16x1xf32> to vector<16x16xf32>
    %292 = arith.subf %288, %291 : vector<16x16xf32>
    %293 = math.exp %292 : vector<16x16xf32>
    %cst_131 = arith.constant dense<0.000000e+00> : vector<16xf32>
    %294 = vector.multi_reduction <add>, %293, %cst_131 [1] : vector<16x16xf32> to vector<16xf32>
    %295 = vector.shape_cast %294 : vector<16xf32> to vector<16x1xf32>
    %296 = tpu.reciprocal %295 {approx = true} : vector<16x1xf32> -> vector<16x1xf32>
    %297 = vector.broadcast %296 : vector<16x1xf32> to vector<16x16xf32>
    %298 = arith.mulf %293, %297 : vector<16x16xf32>
    %cst_132 = arith.constant dense<0.000000e+00> : vector<16x8xf32>
    %299 = tpu.matmul %298, %278, %cst_132 {dimension_numbers = #tpu.dot_dimension_numbers<[1], [0], [0], [1], [0, 0, 1, 1], [], []>} : vector<16x16xf32>, vector<16x8xf32>, vector<16x8xf32> -> vector<16x8xf32>
    %300 = vector.broadcast %24 : vector<1x8xf32> to vector<16x8xf32>
    %301 = arith.addf %299, %300 : vector<16x8xf32>
    %cst_133 = arith.constant 0.000000e+00 : f32
    %302 = vector.broadcast %cst_133 : f32 to vector<16x8xf32>
    %303 = arith.cmpf oge, %301, %302 : vector<16x8xf32>
    %cst_134 = arith.constant 0.00999999977 : f32
    %304 = vector.broadcast %cst_134 : f32 to vector<16x8xf32>
    %305 = arith.mulf %304, %301 : vector<16x8xf32>
    %306 = arith.select %303, %301, %305 : vector<16x8xi1>, vector<16x8xf32>
    %cst_135 = arith.constant dense<0.000000e+00> : vector<16x8xf32>
    %307 = tpu.matmul %306, %25, %cst_135 {dimension_numbers = #tpu.dot_dimension_numbers<[1], [0], [0], [1], [0, 0, 1, 1], [], []>} : vector<16x8xf32>, vector<8x8xf32>, vector<16x8xf32> -> vector<16x8xf32>
    %cst_136 = arith.constant dense<0.000000e+00> : vector<16x1xf32>
    %308 = tpu.matmul %306, %26, %cst_136 {dimension_numbers = #tpu.dot_dimension_numbers<[1], [0], [0], [1], [0, 0, 1, 1], [], []>} : vector<16x8xf32>, vector<8x1xf32>, vector<16x1xf32> -> vector<16x1xf32>
    %cst_137 = arith.constant dense<0.000000e+00> : vector<16x16xf32>
    %309 = tpu.matmul %40, %306, %cst_137 {dimension_numbers = #tpu.dot_dimension_numbers<[1], [1], [0], [0], [0, 0, 1, 0], [], []>} : vector<16x8xf32>, vector<16x8xf32>, vector<16x16xf32> -> vector<16x16xf32>
    %310 = vector.broadcast %308 : vector<16x1xf32> to vector<16x16xf32>
    %311 = arith.addf %310, %309 : vector<16x16xf32>
    %cst_138 = arith.constant 0.000000e+00 : f32
    %312 = vector.broadcast %cst_138 : f32 to vector<16x16xf32>
    %313 = arith.cmpf oge, %311, %312 : vector<16x16xf32>
    %cst_139 = arith.constant 2.000000e-01 : f32
    %314 = vector.broadcast %cst_139 : f32 to vector<16x16xf32>
    %315 = arith.mulf %314, %311 : vector<16x16xf32>
    %316 = arith.select %313, %311, %315 : vector<16x16xi1>, vector<16x16xf32>
    %317 = arith.addf %316, %5 : vector<16x16xf32>
    %cst_140 = arith.constant dense<0xFF800000> : vector<16xf32>
    %318 = vector.multi_reduction <maximumf>, %317, %cst_140 [1] : vector<16x16xf32> to vector<16xf32>
    %319 = vector.shape_cast %318 : vector<16xf32> to vector<16x1xf32>
    %320 = vector.broadcast %319 : vector<16x1xf32> to vector<16x16xf32>
    %321 = arith.subf %317, %320 : vector<16x16xf32>
    %322 = math.exp %321 : vector<16x16xf32>
    %cst_141 = arith.constant dense<0.000000e+00> : vector<16xf32>
    %323 = vector.multi_reduction <add>, %322, %cst_141 [1] : vector<16x16xf32> to vector<16xf32>
    %324 = vector.shape_cast %323 : vector<16xf32> to vector<16x1xf32>
    %325 = tpu.reciprocal %324 {approx = true} : vector<16x1xf32> -> vector<16x1xf32>
    %326 = vector.broadcast %325 : vector<16x1xf32> to vector<16x16xf32>
    %327 = arith.mulf %322, %326 : vector<16x16xf32>
    %cst_142 = arith.constant dense<0.000000e+00> : vector<16x8xf32>
    %328 = tpu.matmul %327, %307, %cst_142 {dimension_numbers = #tpu.dot_dimension_numbers<[1], [0], [0], [1], [0, 0, 1, 1], [], []>} : vector<16x16xf32>, vector<16x8xf32>, vector<16x8xf32> -> vector<16x8xf32>
    %329 = vector.broadcast %27 : vector<1x8xf32> to vector<16x8xf32>
    %330 = arith.addf %328, %329 : vector<16x8xf32>
    %cst_143 = arith.constant 0.000000e+00 : f32
    %331 = vector.broadcast %cst_143 : f32 to vector<16x8xf32>
    %332 = arith.cmpf oge, %330, %331 : vector<16x8xf32>
    %cst_144 = arith.constant 0.00999999977 : f32
    %333 = vector.broadcast %cst_144 : f32 to vector<16x8xf32>
    %334 = arith.mulf %333, %330 : vector<16x8xf32>
    %335 = arith.select %332, %330, %334 : vector<16x8xi1>, vector<16x8xf32>
    %cst_145 = arith.constant dense<0.000000e+00> : vector<16x20xf32>
    %336 = tpu.matmul %273, %28, %cst_145 {dimension_numbers = #tpu.dot_dimension_numbers<[1], [0], [0], [1], [0, 0, 1, 1], [], []>} : vector<16x4xf32>, vector<4x20xf32>, vector<16x20xf32> -> vector<16x20xf32>
    %cst_146 = arith.constant dense<0.000000e+00> : vector<16x20xf32>
    %337 = tpu.matmul %306, %29, %cst_146 {dimension_numbers = #tpu.dot_dimension_numbers<[1], [0], [0], [1], [0, 0, 1, 1], [], []>} : vector<16x8xf32>, vector<8x20xf32>, vector<16x20xf32> -> vector<16x20xf32>
    %338 = arith.addf %336, %337 : vector<16x20xf32>
    %cst_147 = arith.constant dense<0.000000e+00> : vector<16x20xf32>
    %339 = tpu.matmul %335, %30, %cst_147 {dimension_numbers = #tpu.dot_dimension_numbers<[1], [0], [0], [1], [0, 0, 1, 1], [], []>} : vector<16x8xf32>, vector<8x20xf32>, vector<16x20xf32> -> vector<16x20xf32>
    %340 = arith.addf %338, %339 : vector<16x20xf32>
    %cst_148 = arith.constant dense<0.000000e+00> : vector<16x20xf32>
    %341 = tpu.matmul %6, %340, %cst_148 {dimension_numbers = #tpu.dot_dimension_numbers<[1], [0], [0], [1], [0, 0, 1, 1], [], []>} : vector<16x16xf32>, vector<16x20xf32>, vector<16x20xf32> -> vector<16x20xf32>
    %342 = vector.broadcast %31 : vector<1x20xf32> to vector<16x20xf32>
    %343 = arith.addf %341, %342 : vector<16x20xf32>
    %cst_149 = arith.constant 0.000000e+00 : f32
    %344 = vector.broadcast %cst_149 : f32 to vector<16x20xf32>
    %345 = arith.cmpf oge, %343, %344 : vector<16x20xf32>
    %cst_150 = arith.constant 0.00999999977 : f32
    %346 = vector.broadcast %cst_150 : f32 to vector<16x20xf32>
    %347 = arith.mulf %346, %343 : vector<16x20xf32>
    %348 = arith.select %345, %343, %347 : vector<16x20xi1>, vector<16x20xf32>
    %cst_151 = arith.constant dense<0.000000e+00> : vector<16x1xf32>
    %349 = tpu.matmul %348, %32, %cst_151 {dimension_numbers = #tpu.dot_dimension_numbers<[1], [0], [0], [1], [0, 0, 1, 1], [], []>} : vector<16x20xf32>, vector<20x1xf32>, vector<16x1xf32> -> vector<16x1xf32>
    %cst_152 = arith.constant dense<0.000000e+00> : vector<16x1xf32>
    %350 = tpu.matmul %348, %33, %cst_152 {dimension_numbers = #tpu.dot_dimension_numbers<[1], [0], [0], [1], [0, 0, 1, 1], [], []>} : vector<16x20xf32>, vector<20x1xf32>, vector<16x1xf32> -> vector<16x1xf32>
    %cst_153 = arith.constant dense<0.000000e+00> : vector<16x16xf32>
    %351 = tpu.matmul %43, %348, %cst_153 {dimension_numbers = #tpu.dot_dimension_numbers<[1], [1], [0], [0], [0, 0, 1, 0], [], []>} : vector<16x20xf32>, vector<16x20xf32>, vector<16x16xf32> -> vector<16x16xf32>
    %352 = vector.broadcast %350 : vector<16x1xf32> to vector<16x16xf32>
    %353 = arith.addf %352, %351 : vector<16x16xf32>
    %cst_154 = arith.constant 0.000000e+00 : f32
    %354 = vector.broadcast %cst_154 : f32 to vector<16x16xf32>
    %355 = arith.cmpf oge, %353, %354 : vector<16x16xf32>
    %cst_155 = arith.constant 2.000000e-01 : f32
    %356 = vector.broadcast %cst_155 : f32 to vector<16x16xf32>
    %357 = arith.mulf %356, %353 : vector<16x16xf32>
    %358 = arith.select %355, %353, %357 : vector<16x16xi1>, vector<16x16xf32>
    %359 = arith.addf %358, %5 : vector<16x16xf32>
    %cst_156 = arith.constant dense<0xFF800000> : vector<16xf32>
    %360 = vector.multi_reduction <maximumf>, %359, %cst_156 [1] : vector<16x16xf32> to vector<16xf32>
    %361 = vector.shape_cast %360 : vector<16xf32> to vector<16x1xf32>
    %362 = vector.broadcast %361 : vector<16x1xf32> to vector<16x16xf32>
    %363 = arith.subf %359, %362 : vector<16x16xf32>
    %364 = math.exp %363 : vector<16x16xf32>
    %cst_157 = arith.constant dense<0.000000e+00> : vector<16xf32>
    %365 = vector.multi_reduction <add>, %364, %cst_157 [1] : vector<16x16xf32> to vector<16xf32>
    %366 = vector.shape_cast %365 : vector<16xf32> to vector<16x1xf32>
    %367 = tpu.reciprocal %366 {approx = true} : vector<16x1xf32> -> vector<16x1xf32>
    %368 = vector.broadcast %367 : vector<16x1xf32> to vector<16x16xf32>
    %369 = arith.mulf %364, %368 : vector<16x16xf32>
    %cst_158 = arith.constant dense<0.000000e+00> : vector<16x1xf32>
    %370 = tpu.matmul %369, %349, %cst_158 {dimension_numbers = #tpu.dot_dimension_numbers<[1], [0], [0], [1], [0, 0, 1, 1], [], []>} : vector<16x16xf32>, vector<16x1xf32>, vector<16x1xf32> -> vector<16x1xf32>
    %371 = vector.broadcast %34 : vector<1x1xf32> to vector<16x1xf32>
    %372 = arith.addf %370, %371 : vector<16x1xf32>
    %373 = arith.addf %277, %372 : vector<16x1xf32>
    %c2_i32 = arith.constant 2 : i32
    %374 = vector.broadcast %c2_i32 : i32 to vector<1x3xi32>
    %375 = arith.cmpi eq, %21, %374 : vector<1x3xi32>
    %cst_159 = arith.constant 1.000000e+00 : f32
    %cst_160 = arith.constant 0.000000e+00 : f32
    %376 = vector.broadcast %cst_159 : f32 to vector<1x3xf32>
    %377 = vector.broadcast %cst_160 : f32 to vector<1x3xf32>
    %378 = arith.select %375, %376, %377 : vector<1x3xi1>, vector<1x3xf32>
    %379 = vector.broadcast %373 : vector<16x1xf32> to vector<16x3xf32>
    %380 = vector.broadcast %378 : vector<1x3xf32> to vector<16x3xf32>
    %381 = arith.mulf %379, %380 : vector<16x3xf32>
    %382 = arith.addf %268, %381 : vector<16x3xf32>
    %cst_161 = arith.constant 0.000000e+00 : f32
    %cst_162 = arith.constant 9.000000e+01 : f32
    %383 = vector.broadcast %cst_161 : f32 to vector<16x3xf32>
    %384 = arith.maximumf %383, %382 : vector<16x3xf32>
    %385 = vector.broadcast %cst_162 : f32 to vector<16x3xf32>
    %386 = arith.minimumf %385, %384 : vector<16x3xf32>
    %c0_163 = arith.constant 0 : index
    %c0_164 = arith.constant 0 : index
    %387 = vector.load %arg19[%c0_163, %c0_164] : memref<16x3xf32, #tpu.memory_space<vmem>>, vector<16x3xf32>
    tpu.vector_store %arg19[%c0_163, %c0_164], %386 {strides = array<i32>} : memref<16x3xf32, #tpu.memory_space<vmem>>, vector<16x3xf32>,
    return
  }
}

</mosaic_0001>

<llo_original>
// kernel: gnn2_forward.1
$region0: #{gnn2_forward.1}
  #allocation0 [shape = 'u32[]', space=smem, size = 0x4, offset = 0x4, fixed_abs, tag = 'smem constant byte address 0x4 - core index']
  #allocation1 [shape = 'u32[144,128]{1,0:T(1,128)}', space=vmem, size = 0x12000, scoped, tag = 'internal scratch']
  #allocation2 [shape = 'f32[1,1]{1,0:T(1,128)S(1)}', space=vmem, size = 0x200, scoped, tag = 'scoped memory for gnn2_forward.1']
  %s0 = inlined_call_operand.vmem [shape: f32[16,4], index: 0, kind: input, shape index: {}]
  %s1 = inlined_call_operand.vmem [shape: f32[16,16], index: 1, kind: input, shape index: {}]
  %s2 = inlined_call_operand.vmem [shape: f32[16,16], index: 2, kind: input, shape index: {}]
  %s3 = inlined_call_operand.vmem [shape: f32[4,8], index: 3, kind: input, shape index: {}]
  %s4 = inlined_call_operand.vmem [shape: f32[1,4], index: 4, kind: input, shape index: {}]
  %s5 = inlined_call_operand.vmem [shape: f32[4,1], index: 5, kind: input, shape index: {}]
  %s6 = inlined_call_operand.vmem [shape: f32[1,8], index: 6, kind: input, shape index: {}]
  %s7 = inlined_call_operand.vmem [shape: f32[8,8], index: 7, kind: input, shape index: {}]
  %s8 = inlined_call_operand.vmem [shape: f32[1,8], index: 8, kind: input, shape index: {}]
  %s9 = inlined_call_operand.vmem [shape: f32[8,1], index: 9, kind: input, shape index: {}]
  %s10 = inlined_call_operand.vmem [shape: f32[1,8], index: 10, kind: input, shape index: {}]
  %s11 = inlined_call_operand.vmem [shape: f32[4,20], index: 11, kind: input, shape index: {}]
  %s12 = inlined_call_operand.vmem [shape: f32[8,20], index: 12, kind: input, shape index: {}]
  %s13 = inlined_call_operand.vmem [shape: f32[8,20], index: 13, kind: input, shape index: {}]
  %s14 = inlined_call_operand.vmem [shape: f32[1,20], index: 14, kind: input, shape index: {}]
  %s15 = inlined_call_operand.vmem [shape: f32[20,1], index: 15, kind: input, shape index: {}]
  %s16 = inlined_call_operand.vmem [shape: f32[1,20], index: 16, kind: input, shape index: {}]
  %s17 = inlined_call_operand.vmem [shape: f32[20,1], index: 17, kind: input, shape index: {}]
  %s18 = inlined_call_operand.<no memory space> [shape: f32[1,1], index: 18, kind: input, shape index: {}]
  %s19 = inlined_call_operand.vmem [shape: f32[16,3], index: 19, kind: output, shape index: {}]
  %s20 = sld [smem:[#allocation0]]
  $region86: #{gnn2_forward.1} parent=0
    _
  %s22 = ssub.s32 1, %s20
  %s23 = scalar_select 0, %s22, %s20
  %v24 = vstv %s18
  %25 = vst [vmem:[#allocation2] sm:$0x1] %v24
  // Predicated region
  $region2: #{gnn2_forward.1} parent=0 // pred_check
    _
  $region3: #{gnn2_forward.1} parent=0 // pred_check_branch
    %27 = sbr.rel (0) target = $region5
  $region4: #{gnn2_forward.1} parent=0 // pred_region
    _
  $region5: #{gnn2_forward.1} parent=0 // pred_fallthru
    _
  // Predicated region
  $region6: #{gnn2_forward.1} parent=0 // pred_check
    _
  $region7: #{gnn2_forward.1} parent=0 // pred_check_branch
    %29 = sbr.rel (0) target = $region9
  $region8: #{gnn2_forward.1} parent=0 // pred_region
    _
  $region9: #{gnn2_forward.1} parent=0 // pred_fallthru
    _
  // Predicated region
  $region10: #{gnn2_forward.1} parent=0 // pred_check
    _
  $region11: #{gnn2_forward.1} parent=0 // pred_check_branch
    %31 = sbr.rel (0) target = $region13
  $region12: #{gnn2_forward.1} parent=0 // pred_region
    _
  $region13: #{gnn2_forward.1} parent=0 // pred_fallthru
    _
  // Predicated region
  $region14: #{gnn2_forward.1} parent=0 // pred_check
    _
  $region15: #{gnn2_forward.1} parent=0 // pred_check_branch
    %33 = sbr.rel (0) target = $region17
  $region16: #{gnn2_forward.1} parent=0 // pred_region
    _
  $region17: #{gnn2_forward.1} parent=0 // pred_fallthru
    _
  // Predicated region
  $region18: #{gnn2_forward.1} parent=0 // pred_check
    _
  $region19: #{gnn2_forward.1} parent=0 // pred_check_branch
    %35 = sbr.rel (0) target = $region21
  $region20: #{gnn2_forward.1} parent=0 // pred_region
    _
  $region21: #{gnn2_forward.1} parent=0 // pred_fallthru
    _
  // Predicated region
  $region22: #{gnn2_forward.1} parent=0 // pred_check
    _
  $region23: #{gnn2_forward.1} parent=0 // pred_check_branch
    %37 = sbr.rel (0) target = $region25
  $region24: #{gnn2_forward.1} parent=0 // pred_region
    _
  $region25: #{gnn2_forward.1} parent=0 // pred_fallthru
    _
  // Predicated region
  $region26: #{gnn2_forward.1} parent=0 // pred_check
    _
  $region27: #{gnn2_forward.1} parent=0 // pred_check_branch
    %39 = sbr.rel (0) target = $region29
  $region28: #{gnn2_forward.1} parent=0 // pred_region
    _
  $region29: #{gnn2_forward.1} parent=0 // pred_fallthru
    _
  // Predicated region
  $region30: #{gnn2_forward.1} parent=0 // pred_check
    _
  $region31: #{gnn2_forward.1} parent=0 // pred_check_branch
    %41 = sbr.rel (0) target = $region33
  $region32: #{gnn2_forward.1} parent=0 // pred_region
    _
  $region33: #{gnn2_forward.1} parent=0 // pred_fallthru
    _
  // Predicated region
  $region34: #{gnn2_forward.1} parent=0 // pred_check
    _
  $region35: #{gnn2_forward.1} parent=0 // pred_check_branch
    %43 = sbr.rel (0) target = $region37
  $region36: #{gnn2_forward.1} parent=0 // pred_region
    _
  $region37: #{gnn2_forward.1} parent=0 // pred_fallthru
    _
  // Predicated region
  $region38: #{gnn2_forward.1} parent=0 // pred_check
    _
  $region39: #{gnn2_forward.1} parent=0 // pred_check_branch
    %45 = sbr.rel (0) target = $region41
  $region40: #{gnn2_forward.1} parent=0 // pred_region
    _
  $region41: #{gnn2_forward.1} parent=0 // pred_fallthru
    _
  // Predicated region
  $region42: #{gnn2_forward.1} parent=0 // pred_check
    _
  $region43: #{gnn2_forward.1} parent=0 // pred_check_branch
    %47 = sbr.rel (0) target = $region45
  $region44: #{gnn2_forward.1} parent=0 // pred_region
    _
  $region45: #{gnn2_forward.1} parent=0 // pred_fallthru
    _
  // Predicated region
  $region46: #{gnn2_forward.1} parent=0 // pred_check
    _
  $region47: #{gnn2_forward.1} parent=0 // pred_check_branch
    %49 = sbr.rel (0) target = $region49
  $region48: #{gnn2_forward.1} parent=0 // pred_region
    _
  $region49: #{gnn2_forward.1} parent=0 // pred_fallthru
    _
  // Predicated region
  $region50: #{gnn2_forward.1} parent=0 // pred_check
    _
  $region51: #{gnn2_forward.1} parent=0 // pred_check_branch
    %51 = sbr.rel (0) target = $region53
  $region52: #{gnn2_forward.1} parent=0 // pred_region
    _
  $region53: #{gnn2_forward.1} parent=0 // pred_fallthru
    _
  // Predicated region
  $region54: #{gnn2_forward.1} parent=0 // pred_check
    _
  $region55: #{gnn2_forward.1} parent=0 // pred_check_branch
    %53 = sbr.rel (0) target = $region57
  $region56: #{gnn2_forward.1} parent=0 // pred_region
    _
  $region57: #{gnn2_forward.1} parent=0 // pred_fallthru
    _
  // Predicated region
  $region58: #{gnn2_forward.1} parent=0 // pred_check
    _
  $region59: #{gnn2_forward.1} parent=0 // pred_check_branch
    %55 = sbr.rel (0) target = $region61
  $region60: #{gnn2_forward.1} parent=0 // pred_region
    _
  $region61: #{gnn2_forward.1} parent=0 // pred_fallthru
    _
  // Predicated region
  $region62: #{gnn2_forward.1} parent=0 // pred_check
    _
  $region63: #{gnn2_forward.1} parent=0 // pred_check_branch
    %57 = sbr.rel (0) target = $region65
  $region64: #{gnn2_forward.1} parent=0 // pred_region
    _
  $region65: #{gnn2_forward.1} parent=0 // pred_fallthru
    _
  // Predicated region
  $region66: #{gnn2_forward.1} parent=0 // pred_check
    _
  $region67: #{gnn2_forward.1} parent=0 // pred_check_branch
    %59 = sbr.rel (0) target = $region69
  $region68: #{gnn2_forward.1} parent=0 // pred_region
    _
  $region69: #{gnn2_forward.1} parent=0 // pred_fallthru
    _
  // Predicated region
  $region70: #{gnn2_forward.1} parent=0 // pred_check
    _
  $region71: #{gnn2_forward.1} parent=0 // pred_check_branch
    %61 = sbr.rel (0) target = $region73
  $region72: #{gnn2_forward.1} parent=0 // pred_region
    _
  $region73: #{gnn2_forward.1} parent=0 // pred_fallthru
    _
  // Predicated region
  $region74: #{gnn2_forward.1} parent=0 // pred_check
    _
  $region75: #{gnn2_forward.1} parent=0 // pred_check_branch
    %63 = sbr.rel (0) target = $region77
  $region76: #{gnn2_forward.1} parent=0 // pred_region
    _
  $region77: #{gnn2_forward.1} parent=0 // pred_fallthru
    _
  %v64 = vld [vmem:[%s1] sm:$0xff]
  %v65 = vld [vmem:[%s1 + $0x8] sm:$0xff]
  %vm66 = vcmp.gt.f32.partialorder %v64, 0.0
  %vm67 = vcmp.gt.f32.partialorder %v65, 0.0
  %v68 = vsel %vm66, 0.0, -1e+30
  %v69 = vsel %vm67, 0.0, -1e+30
  %v70 = vld [vmem:[%s2] sm:$0xff]
  %v71 = vld [vmem:[%s2 + $0x8] sm:$0xff]
  %v72 = vlaneseq
  %v73 = vshrl.u32 %v72, 7
  %v74 = vlaneseq
  %v75 = vand.u32 %v74, 127
  %v76 = vsub.s32 %v73, 1
  %vm77 = vcmp.eq.s32.totalorder %v75, %v76
  %v78 = vsel %vm77, 1.0, 0.0
  %vm79 = vcmp.eq.s32.totalorder %v75, 3
  %v80 = vsel %vm79, 1.0, 0.0
  %v81 = vld [vmem:[%s3] sm:$0xf]
  %v82 = vld [vmem:[%s5] sm:$0xf]
  %v83 = vld [vmem:[%s6] sm:$0x1]
  %v84 = vld [vmem:[%s7] sm:$0xff]
  %v85 = vld [vmem:[%s9] sm:$0xff]
  %v86 = vld [vmem:[%s10] sm:$0x1]
  %v87 = vld [vmem:[%s11] sm:$0xf]
  %v88 = vld [vmem:[%s12] sm:$0xff]
  %v89 = vld [vmem:[%s13] sm:$0xff]
  %v90 = vld [vmem:[%s14] sm:$0x1]
  %v91 = vld [vmem:[%s15] sm:$0xff]
  %v92 = vld [vmem:[%s15 + $0x8] sm:$0xff]
  %v93 = vld [vmem:[%s15 + $0x10] sm:$0xf]
  %v94 = vld [vmem:[%s17] sm:$0xff]
  %v95 = vld [vmem:[%s17 + $0x8] sm:$0xff]
  %v96 = vld [vmem:[%s17 + $0x10] sm:$0xf]
  %v97 = vld [vmem:[#allocation2] sm:$0x1]
  %v98 = vld [vmem:[%s4] sm:$0x1]
  %v100 = vlaneseq
  %v101 = vshrl.u32 %v100, 7
  %v102 = vsub.s32 0, %v101
  %v103 = vrot.slane %v98, %v102
  %v104 = vld [vmem:[%s8] sm:$0x1]
  %v106 = vlaneseq
  %v107 = vshrl.u32 %v106, 7
  %v108 = vsub.s32 0, %v107
  %v109 = vrot.slane %v104, %v108
  %v110 = vld [vmem:[%s16] sm:$0x1]
  %v112 = vlaneseq
  %v113 = vshrl.u32 %v112, 7
  %v114 = vsub.s32 0, %v113
  %v115 = vrot.slane %v110, %v114
  %v116 = vld [vmem:[%s0] sm:$0xff]
  %v117 = vld [vmem:[%s0 + $0x8] sm:$0xff]
  %vm118 = vcmask 31744
  %v119 = vsel %vm118, %v116, 0.0
  %120 = vadd.xlane.f32.xlu0 %v119
  %v121 = vpop.xlane.xlu0 %120
  %v122 = vsel %vm118, %v117, 0.0
  %123 = vadd.xlane.f32.xlu0 %v122
  %v124 = vpop.xlane.xlu0 %123
  %v125 = vrcp.pop 4.0
  %v126 = vmul.f32 %v121, %v125
  %v127 = vmul.f32 %v124, %v125
  %v129 = vsel %vm118, %v116, 0
  %v132 = vsel %vm118, %v117, 0
  %vm134 = vcmask 1043456
  %v136 = vsel %vm134, %v81, 0
  %138 = vmatprep.subr.mxu0 0.0
  %139 = vmatpush1.msra.mxu0 %v136
  %140 = vmatprep.subr.mxu0 0.0
  %141 = vmatpush1.msra.mxu0 0.0
  %142 = vmatprep.subr.mxu0 0.0
  %143 = vmatpush1.msra.mxu0 0.0
  %144 = vmatprep.subr.mxu0 0.0
  %145 = vmatpush1.msra.mxu0 0.0
  %146 = vmatprep.subr.mxu0 0.0
  %147 = vmatpush1.msra.mxu0 0.0
  %148 = vmatprep.subr.mxu0 0.0
  %149 = vmatpush1.msra.mxu0 0.0
  %150 = vmatprep.subr.mxu0 0.0
  %151 = vmatpush1.msra.mxu0 0.0
  %152 = vmatprep.subr.mxu0 0.0
  %153 = vmatpush1.msra.mxu0 0.0
  %154 = vmatprep.subr.mxu0 0.0
  %155 = vmatpush1.msra.mxu0 0.0
  %156 = vmatprep.subr.mxu0 0.0
  %157 = vmatpush1.msra.mxu0 0.0
  %158 = vmatprep.subr.mxu0 0.0
  %159 = vmatpush1.msra.mxu0 0.0
  %160 = vmatprep.subr.mxu0 0.0
  %161 = vmatpush1.msra.mxu0 0.0
  %162 = vmatprep.subr.mxu0 0.0
  %163 = vmatpush1.msra.mxu0 0.0
  %164 = vmatprep.subr.mxu0 0.0
  %165 = vmatpush1.msra.mxu0 0.0
  %166 = vmatprep.subr.mxu0 0.0
  %167 = vmatpush1.msra.mxu0 0.0
  %168 = vmatprep.subr.mxu0 0.0
  %169 = vmatpush1.msra.mxu0 0.0
  %170 = vmatprep.subr.mxu0 0.0
  %171 = vmatpush1.msra.mxu0 0.0
  %172 = vmatprep.subr.mxu0 0.0
  %173 = vmatpush1.msra.mxu0 0.0
  %174 = vmatprep.subr.mxu0 0.0
  %175 = vmatpush1.msra.mxu0 0.0
  %176 = vmatprep.subr.mxu0 0.0
  %177 = vmatpush1.msra.mxu0 0.0
  %178 = vmatprep.subr.mxu0 0.0
  %179 = vmatpush1.msra.mxu0 0.0
  %180 = vmatprep.subr.mxu0 0.0
  %181 = vmatpush1.msra.mxu0 0.0
  %182 = vmatprep.subr.mxu0 0.0
  %183 = vmatpush1.msra.mxu0 0.0
  %184 = vmatprep.subr.mxu0 0.0
  %185 = vmatpush1.msra.mxu0 0.0
  %186 = vmatprep.subr.mxu0 0.0
  %187 = vmatpush1.msra.mxu0 0.0
  %188 = vmatprep.subr.mxu0 0.0
  %189 = vmatpush1.msra.mxu0 0.0
  %190 = vmatprep.subr.mxu0 0.0
  %191 = vmatpush1.msra.mxu0 0.0
  %192 = vmatprep.subr.mxu0 0.0
  %193 = vmatpush1.msra.mxu0 0.0
  %194 = vmatprep.subr.mxu0 0.0
  %195 = vmatpush1.msra.mxu0 0.0
  %196 = vmatprep.subr.mxu0 0.0
  %197 = vmatpush1.msra.mxu0 0.0
  %198 = vmatprep.subr.mxu0 0.0
  %199 = vmatpush1.msra.mxu0 0.0
  %200 = vmatprep.subr.mxu0 0.0
  %201 = vmatpush1.msra.mxu0 0.0
  %202 = vmatprep.mubr.f32.mxu0 0.0
  %203 = vmatmul.mubr.f32.gmra.mrb[0].mxu0 %v129
  %v204 = vpop.f32.mrb[0].mxu0
  %v205 = vadd.f32 0.0, %v204
  %v206 = vpop.f32.mrb[0].mxu0
  %207 = vmatprep.mubr.f32.mxu0 0.0
  %208 = vmatmul.mubr.f32.gmra.mrb[0].mxu0 %v132
  %v209 = vpop.f32.mrb[0].mxu0
  %v210 = vadd.f32 0.0, %v209
  %v211 = vpop.f32.mrb[0].mxu0
  %212 = vdwg.mxu0
  %v214 = vsel %vm134, %v82, 0
  %216 = vmatprep.subr.mxu0 0.0
  %217 = vmatpush1.msra.mxu0 %v214
  %218 = vmatprep.subr.mxu0 0.0
  %219 = vmatpush1.msra.mxu0 0.0
  %220 = vmatprep.subr.mxu0 0.0
  %221 = vmatpush1.msra.mxu0 0.0
  %222 = vmatprep.subr.mxu0 0.0
  %223 = vmatpush1.msra.mxu0 0.0
  %224 = vmatprep.subr.mxu0 0.0
  %225 = vmatpush1.msra.mxu0 0.0
  %226 = vmatprep.subr.mxu0 0.0
  %227 = vmatpush1.msra.mxu0 0.0
  %228 = vmatprep.subr.mxu0 0.0
  %229 = vmatpush1.msra.mxu0 0.0
  %230 = vmatprep.subr.mxu0 0.0
  %231 = vmatpush1.msra.mxu0 0.0
  %232 = vmatprep.subr.mxu0 0.0
  %233 = vmatpush1.msra.mxu0 0.0
  %234 = vmatprep.subr.mxu0 0.0
  %235 = vmatpush1.msra.mxu0 0.0
  %236 = vmatprep.subr.mxu0 0.0
  %237 = vmatpush1.msra.mxu0 0.0
  %238 = vmatprep.subr.mxu0 0.0
  %239 = vmatpush1.msra.mxu0 0.0
  %240 = vmatprep.subr.mxu0 0.0
  %241 = vmatpush1.msra.mxu0 0.0
  %242 = vmatprep.subr.mxu0 0.0
  %243 = vmatpush1.msra.mxu0 0.0
  %244 = vmatprep.subr.mxu0 0.0
  %245 = vmatpush1.msra.mxu0 0.0
  %246 = vmatprep.subr.mxu0 0.0
  %247 = vmatpush1.msra.mxu0 0.0
  %248 = vmatprep.subr.mxu0 0.0
  %249 = vmatpush1.msra.mxu0 0.0
  %250 = vmatprep.subr.mxu0 0.0
  %251 = vmatpush1.msra.mxu0 0.0
  %252 = vmatprep.subr.mxu0 0.0
  %253 = vmatpush1.msra.mxu0 0.0
  %254 = vmatprep.subr.mxu0 0.0
  %255 = vmatpush1.msra.mxu0 0.0
  %256 = vmatprep.subr.mxu0 0.0
  %257 = vmatpush1.msra.mxu0 0.0
  %258 = vmatprep.subr.mxu0 0.0
  %259 = vmatpush1.msra.mxu0 0.0
  %260 = vmatprep.subr.mxu0 0.0
  %261 = vmatpush1.msra.mxu0 0.0
  %262 = vmatprep.subr.mxu0 0.0
  %263 = vmatpush1.msra.mxu0 0.0
  %264 = vmatprep.subr.mxu0 0.0
  %265 = vmatpush1.msra.mxu0 0.0
  %266 = vmatprep.subr.mxu0 0.0
  %267 = vmatpush1.msra.mxu0 0.0
  %268 = vmatprep.subr.mxu0 0.0
  %269 = vmatpush1.msra.mxu0 0.0
  %270 = vmatprep.subr.mxu0 0.0
  %271 = vmatpush1.msra.mxu0 0.0
  %272 = vmatprep.subr.mxu0 0.0
  %273 = vmatpush1.msra.mxu0 0.0
  %274 = vmatprep.subr.mxu0 0.0
  %275 = vmatpush1.msra.mxu0 0.0
  %276 = vmatprep.subr.mxu0 0.0
  %277 = vmatpush1.msra.mxu0 0.0
  %278 = vmatprep.subr.mxu0 0.0
  %279 = vmatpush1.msra.mxu0 0.0
  %280 = vmatprep.mubr.f32.mxu0 0.0
  %281 = vmatmul.mubr.f32.gmra.mrb[0].mxu0 %v129
  %v282 = vpop.f32.mrb[0].mxu0
  %v283 = vadd.f32 0.0, %v282
  %v284 = vpop.f32.mrb[0].mxu0
  %285 = vmatprep.mubr.f32.mxu0 0.0
  %286 = vmatmul.mubr.f32.gmra.mrb[0].mxu0 %v132
  %v287 = vpop.f32.mrb[0].mxu0
  %v288 = vadd.f32 0.0, %v287
  %v289 = vpop.f32.mrb[0].mxu0
  %290 = vdwg.mxu0
  %v291 = vsel %vm118, %v103, 0
  %293 = vmatprep.subr.mxu0 0.0
  %294 = vmatpush1.xpose.msra.mxu0 %v129
  %295 = vmatprep.subr.mxu0 0.0
  %296 = vmatpush1.xpose.msra.mxu0 %v132
  %297 = vmatprep.subr.mxu0 0.0
  %298 = vmatpush1.xpose.msra.mxu0 0.0
  %299 = vmatprep.subr.mxu0 0.0
  %300 = vmatpush1.xpose.msra.mxu0 0.0
  %301 = vmatprep.subr.mxu0 0.0
  %302 = vmatpush1.xpose.msra.mxu0 0.0
  %303 = vmatprep.subr.mxu0 0.0
  %304 = vmatpush1.xpose.msra.mxu0 0.0
  %305 = vmatprep.subr.mxu0 0.0
  %306 = vmatpush1.xpose.msra.mxu0 0.0
  %307 = vmatprep.subr.mxu0 0.0
  %308 = vmatpush1.xpose.msra.mxu0 0.0
  %309 = vmatprep.subr.mxu0 0.0
  %310 = vmatpush1.xpose.msra.mxu0 0.0
  %311 = vmatprep.subr.mxu0 0.0
  %312 = vmatpush1.xpose.msra.mxu0 0.0
  %313 = vmatprep.subr.mxu0 0.0
  %314 = vmatpush1.xpose.msra.mxu0 0.0
  %315 = vmatprep.subr.mxu0 0.0
  %316 = vmatpush1.xpose.msra.mxu0 0.0
  %317 = vmatprep.subr.mxu0 0.0
  %318 = vmatpush1.xpose.msra.mxu0 0.0
  %319 = vmatprep.subr.mxu0 0.0
  %320 = vmatpush1.xpose.msra.mxu0 0.0
  %321 = vmatprep.subr.mxu0 0.0
  %322 = vmatpush1.xpose.msra.mxu0 0.0
  %323 = vmatprep.subr.mxu0 0.0
  %324 = vmatpush1.xpose.msra.mxu0 0.0
  %325 = vmatprep.subr.mxu0 0.0
  %326 = vmatpush1.xpose.msra.mxu0 0.0
  %327 = vmatprep.subr.mxu0 0.0
  %328 = vmatpush1.xpose.msra.mxu0 0.0
  %329 = vmatprep.subr.mxu0 0.0
  %330 = vmatpush1.xpose.msra.mxu0 0.0
  %331 = vmatprep.subr.mxu0 0.0
  %332 = vmatpush1.xpose.msra.mxu0 0.0
  %333 = vmatprep.subr.mxu0 0.0
  %334 = vmatpush1.xpose.msra.mxu0 0.0
  %335 = vmatprep.subr.mxu0 0.0
  %336 = vmatpush1.xpose.msra.mxu0 0.0
  %337 = vmatprep.subr.mxu0 0.0
  %338 = vmatpush1.xpose.msra.mxu0 0.0
  %339 = vmatprep.subr.mxu0 0.0
  %340 = vmatpush1.xpose.msra.mxu0 0.0
  %341 = vmatprep.subr.mxu0 0.0
  %342 = vmatpush1.xpose.msra.mxu0 0.0
  %343 = vmatprep.subr.mxu0 0.0
  %344 = vmatpush1.xpose.msra.mxu0 0.0
  %345 = vmatprep.subr.mxu0 0.0
  %346 = vmatpush1.xpose.msra.mxu0 0.0
  %347 = vmatprep.subr.mxu0 0.0
  %348 = vmatpush1.xpose.msra.mxu0 0.0
  %349 = vmatprep.subr.mxu0 0.0
  %350 = vmatpush1.xpose.msra.mxu0 0.0
  %351 = vmatprep.subr.mxu0 0.0
  %352 = vmatpush1.xpose.msra.mxu0 0.0
  %353 = vmatprep.subr.mxu0 0.0
  %354 = vmatpush1.xpose.msra.mxu0 0.0
  %355 = vmatprep.subr.mxu0 0.0
  %356 = vmatpush1.xpose.msra.mxu0 0.0
  %357 = vmatprep.mubr.f32.mxu0 0.0
  %358 = vmatmul.mubr.f32.gmra.mrb[0].mxu0 %v291
  %v359 = vpop.f32.mrb[0].mxu0
  %v360 = vadd.f32 0.0, %v359
  %v361 = vpop.f32.mrb[0].mxu0
  %362 = vmatprep.mubr.f32.mxu0 0.0
  %363 = vmatmul.mubr.f32.gmra.mrb[0].mxu0 %v291
  %v364 = vpop.f32.mrb[0].mxu0
  %v365 = vadd.f32 0.0, %v364
  %v366 = vpop.f32.mrb[0].mxu0
  %367 = vdwg.mxu0
  %369 = vset.pattern.permute.xlu0 0
  %370 = vperm.xlu0 %369, %v283
  %v371 = vpop.permute.xlu0 %370
  %374 = vset.pattern.permute.xlu0 0
  %375 = vperm.xlu0 %374, %v288
  %v376 = vpop.permute.xlu0 %375
  %v378 = vadd.f32 %v371, %v360
  %v379 = vadd.f32 %v376, %v365
  %vm380 = vcmp.ge.f32.partialorder %v378, 0.0
  %vm381 = vcmp.ge.f32.partialorder %v379, 0.0
  %v382 = vmul.f32 %v378, 0.2
  %v383 = vmul.f32 %v379, 0.2
  %v384 = vsel %vm380, %v378, %v382
  %v385 = vsel %vm381, %v379, %v383
  %v386 = vadd.f32 %v384, %v68
  %v387 = vadd.f32 %v385, %v69
  %vm388 = vcmask 130048
  %v389 = vsel %vm388, %v386, -inf
  %390 = vmax.xlane.f32.xlu0 %v389
  %v391 = vpop.xlane.xlu0 %390
  %v392 = vsel %vm388, %v387, -inf
  %393 = vmax.xlane.f32.xlu0 %v392
  %v394 = vpop.xlane.xlu0 %393
  %v395 = vsub.f32 %v386, %v391
  %v396 = vsub.f32 %v387, %v394
  %v397 = vmul.f32 %v395, 1.442695
  %v398 = vpow.pop %v397
  %v399 = vmul.f32 %v396, 1.442695
  %v400 = vpow.pop %v399
  %v401 = vsel %vm388, %v398, 0.0
  %402 = vadd.xlane.f32.xlu0 %v401
  %v403 = vpop.xlane.xlu0 %402
  %v404 = vsel %vm388, %v400, 0.0
  %405 = vadd.xlane.f32.xlu0 %v404
  %v406 = vpop.xlane.xlu0 %405
  %v407 = vrcp.pop %v403
  %v408 = vrcp.pop %v406
  %v409 = vmul.f32 %v398, %v407
  %v410 = vmul.f32 %v400, %v408
  %v412 = vlaneseq
  %v413 = vshrl.u32 %v412, 7
  %v414 = vsub.s32 0, %v413
  %v415 = vrot.slane %v83, %v414
  %v418 = vsel %vm388, %v409, 0
  %v421 = vsel %vm388, %v410, 0
  %423 = vmatprep.subr.mxu0 0.0
  %424 = vmatpush1.msra.mxu0 %v205
  %425 = vmatprep.subr.mxu0 0.0
  %426 = vmatpush1.msra.mxu0 %v210
  %427 = vmatprep.subr.mxu0 0.0
  %428 = vmatpush1.msra.mxu0 0.0
  %429 = vmatprep.subr.mxu0 0.0
  %430 = vmatpush1.msra.mxu0 0.0
  %431 = vmatprep.subr.mxu0 0.0
  %432 = vmatpush1.msra.mxu0 0.0
  %433 = vmatprep.subr.mxu0 0.0
  %434 = vmatpush1.msra.mxu0 0.0
  %435 = vmatprep.subr.mxu0 0.0
  %436 = vmatpush1.msra.mxu0 0.0
  %437 = vmatprep.subr.mxu0 0.0
  %438 = vmatpush1.msra.mxu0 0.0
  %439 = vmatprep.subr.mxu0 0.0
  %440 = vmatpush1.msra.mxu0 0.0
  %441 = vmatprep.subr.mxu0 0.0
  %442 = vmatpush1.msra.mxu0 0.0
  %443 = vmatprep.subr.mxu0 0.0
  %444 = vmatpush1.msra.mxu0 0.0
  %445 = vmatprep.subr.mxu0 0.0
  %446 = vmatpush1.msra.mxu0 0.0
  %447 = vmatprep.subr.mxu0 0.0
  %448 = vmatpush1.msra.mxu0 0.0
  %449 = vmatprep.subr.mxu0 0.0
  %450 = vmatpush1.msra.mxu0 0.0
  %451 = vmatprep.subr.mxu0 0.0
  %452 = vmatpush1.msra.mxu0 0.0
  %453 = vmatprep.subr.mxu0 0.0
  %454 = vmatpush1.msra.mxu0 0.0
  %455 = vmatprep.subr.mxu0 0.0
  %456 = vmatpush1.msra.mxu0 0.0
  %457 = vmatprep.subr.mxu0 0.0
  %458 = vmatpush1.msra.mxu0 0.0
  %459 = vmatprep.subr.mxu0 0.0
  %460 = vmatpush1.msra.mxu0 0.0
  %461 = vmatprep.subr.mxu0 0.0
  %462 = vmatpush1.msra.mxu0 0.0
  %463 = vmatprep.subr.mxu0 0.0
  %464 = vmatpush1.msra.mxu0 0.0
  %465 = vmatprep.subr.mxu0 0.0
  %466 = vmatpush1.msra.mxu0 0.0
  %467 = vmatprep.subr.mxu0 0.0
  %468 = vmatpush1.msra.mxu0 0.0
  %469 = vmatprep.subr.mxu0 0.0
  %470 = vmatpush1.msra.mxu0 0.0
  %471 = vmatprep.subr.mxu0 0.0
  %472 = vmatpush1.msra.mxu0 0.0
  %473 = vmatprep.subr.mxu0 0.0
  %474 = vmatpush1.msra.mxu0 0.0
  %475 = vmatprep.subr.mxu0 0.0
  %476 = vmatpush1.msra.mxu0 0.0
  %477 = vmatprep.subr.mxu0 0.0
  %478 = vmatpush1.msra.mxu0 0.0
  %479 = vmatprep.subr.mxu0 0.0
  %480 = vmatpush1.msra.mxu0 0.0
  %481 = vmatprep.subr.mxu0 0.0
  %482 = vmatpush1.msra.mxu0 0.0
  %483 = vmatprep.subr.mxu0 0.0
  %484 = vmatpush1.msra.mxu0 0.0
  %485 = vmatprep.subr.mxu0 0.0
  %486 = vmatpush1.msra.mxu0 0.0
  %487 = vmatprep.mubr.f32.mxu0 0.0
  %488 = vmatmul.mubr.f32.gmra.mrb[0].mxu0 %v418
  %v489 = vpop.f32.mrb[0].mxu0
  %v490 = vadd.f32 %v415, %v489
  %v491 = vpop.f32.mrb[0].mxu0
  %492 = vmatprep.mubr.f32.mxu0 0.0
  %493 = vmatmul.mubr.f32.gmra.mrb[0].mxu0 %v421
  %v494 = vpop.f32.mrb[0].mxu0
  %v495 = vadd.f32 %v415, %v494
  %v496 = vpop.f32.mrb[0].mxu0
  %497 = vdwg.mxu0
  %vm498 = vcmp.ge.f32.partialorder %v490, 0.0
  %vm499 = vcmp.ge.f32.partialorder %v495, 0.0
  %v500 = vmul.f32 %v490, 0.01
  %v501 = vmul.f32 %v495, 0.01
  %v502 = vsel %vm498, %v490, %v500
  %v503 = vsel %vm499, %v495, %v501
  %vm504 = vcmask 64512
  %v506 = vsel %vm504, %v502, 0
  %v509 = vsel %vm504, %v503, 0
  %511 = vmatprep.subr.mxu0 0.0
  %512 = vmatpush1.msra.mxu0 %v84
  %513 = vmatprep.subr.mxu0 0.0
  %514 = vmatpush1.msra.mxu0 0.0
  %515 = vmatprep.subr.mxu0 0.0
  %516 = vmatpush1.msra.mxu0 0.0
  %517 = vmatprep.subr.mxu0 0.0
  %518 = vmatpush1.msra.mxu0 0.0
  %519 = vmatprep.subr.mxu0 0.0
  %520 = vmatpush1.msra.mxu0 0.0
  %521 = vmatprep.subr.mxu0 0.0
  %522 = vmatpush1.msra.mxu0 0.0
  %523 = vmatprep.subr.mxu0 0.0
  %524 = vmatpush1.msra.mxu0 0.0
  %525 = vmatprep.subr.mxu0 0.0
  %526 = vmatpush1.msra.mxu0 0.0
  %527 = vmatprep.subr.mxu0 0.0
  %528 = vmatpush1.msra.mxu0 0.0
  %529 = vmatprep.subr.mxu0 0.0
  %530 = vmatpush1.msra.mxu0 0.0
  %531 = vmatprep.subr.mxu0 0.0
  %532 = vmatpush1.msra.mxu0 0.0
  %533 = vmatprep.subr.mxu0 0.0
  %534 = vmatpush1.msra.mxu0 0.0
  %535 = vmatprep.subr.mxu0 0.0
  %536 = vmatpush1.msra.mxu0 0.0
  %537 = vmatprep.subr.mxu0 0.0
  %538 = vmatpush1.msra.mxu0 0.0
  %539 = vmatprep.subr.mxu0 0.0
  %540 = vmatpush1.msra.mxu0 0.0
  %541 = vmatprep.subr.mxu0 0.0
  %542 = vmatpush1.msra.mxu0 0.0
  %543 = vmatprep.subr.mxu0 0.0
  %544 = vmatpush1.msra.mxu0 0.0
  %545 = vmatprep.subr.mxu0 0.0
  %546 = vmatpush1.msra.mxu0 0.0
  %547 = vmatprep.subr.mxu0 0.0
  %548 = vmatpush1.msra.mxu0 0.0
  %549 = vmatprep.subr.mxu0 0.0
  %550 = vmatpush1.msra.mxu0 0.0
  %551 = vmatprep.subr.mxu0 0.0
  %552 = vmatpush1.msra.mxu0 0.0
  %553 = vmatprep.subr.mxu0 0.0
  %554 = vmatpush1.msra.mxu0 0.0
  %555 = vmatprep.subr.mxu0 0.0
  %556 = vmatpush1.msra.mxu0 0.0
  %557 = vmatprep.subr.mxu0 0.0
  %558 = vmatpush1.msra.mxu0 0.0
  %559 = vmatprep.subr.mxu0 0.0
  %560 = vmatpush1.msra.mxu0 0.0
  %561 = vmatprep.subr.mxu0 0.0
  %562 = vmatpush1.msra.mxu0 0.0
  %563 = vmatprep.subr.mxu0 0.0
  %564 = vmatpush1.msra.mxu0 0.0
  %565 = vmatprep.subr.mxu0 0.0
  %566 = vmatpush1.msra.mxu0 0.0
  %567 = vmatprep.subr.mxu0 0.0
  %568 = vmatpush1.msra.mxu0 0.0
  %569 = vmatprep.subr.mxu0 0.0
  %570 = vmatpush1.msra.mxu0 0.0
  %571 = vmatprep.subr.mxu0 0.0
  %572 = vmatpush1.msra.mxu0 0.0
  %573 = vmatprep.subr.mxu0 0.0
  %574 = vmatpush1.msra.mxu0 0.0
  %575 = vmatprep.mubr.f32.mxu0 0.0
  %576 = vmatmul.mubr.f32.gmra.mrb[0].mxu0 %v506
  %v577 = vpop.f32.mrb[0].mxu0
  %v578 = vadd.f32 0.0, %v577
  %v579 = vpop.f32.mrb[0].mxu0
  %580 = vmatprep.mubr.f32.mxu0 0.0
  %581 = vmatmul.mubr.f32.gmra.mrb[0].mxu0 %v509
  %v582 = vpop.f32.mrb[0].mxu0
  %v583 = vadd.f32 0.0, %v582
  %v584 = vpop.f32.mrb[0].mxu0
  %585 = vdwg.mxu0
  %586 = vmatprep.subr.mxu0 0.0
  %587 = vmatpush1.msra.mxu0 %v85
  %588 = vmatprep.subr.mxu0 0.0
  %589 = vmatpush1.msra.mxu0 0.0
  %590 = vmatprep.subr.mxu0 0.0
  %591 = vmatpush1.msra.mxu0 0.0
  %592 = vmatprep.subr.mxu0 0.0
  %593 = vmatpush1.msra.mxu0 0.0
  %594 = vmatprep.subr.mxu0 0.0
  %595 = vmatpush1.msra.mxu0 0.0
  %596 = vmatprep.subr.mxu0 0.0
  %597 = vmatpush1.msra.mxu0 0.0
  %598 = vmatprep.subr.mxu0 0.0
  %599 = vmatpush1.msra.mxu0 0.0
  %600 = vmatprep.subr.mxu0 0.0
  %601 = vmatpush1.msra.mxu0 0.0
  %602 = vmatprep.subr.mxu0 0.0
  %603 = vmatpush1.msra.mxu0 0.0
  %604 = vmatprep.subr.mxu0 0.0
  %605 = vmatpush1.msra.mxu0 0.0
  %606 = vmatprep.subr.mxu0 0.0
  %607 = vmatpush1.msra.mxu0 0.0
  %608 = vmatprep.subr.mxu0 0.0
  %609 = vmatpush1.msra.mxu0 0.0
  %610 = vmatprep.subr.mxu0 0.0
  %611 = vmatpush1.msra.mxu0 0.0
  %612 = vmatprep.subr.mxu0 0.0
  %613 = vmatpush1.msra.mxu0 0.0
  %614 = vmatprep.subr.mxu0 0.0
  %615 = vmatpush1.msra.mxu0 0.0
  %616 = vmatprep.subr.mxu0 0.0
  %617 = vmatpush1.msra.mxu0 0.0
  %618 = vmatprep.subr.mxu0 0.0
  %619 = vmatpush1.msra.mxu0 0.0
  %620 = vmatprep.subr.mxu0 0.0
  %621 = vmatpush1.msra.mxu0 0.0
  %622 = vmatprep.subr.mxu0 0.0
  %623 = vmatpush1.msra.mxu0 0.0
  %624 = vmatprep.subr.mxu0 0.0
  %625 = vmatpush1.msra.mxu0 0.0
  %626 = vmatprep.subr.mxu0 0.0
  %627 = vmatpush1.msra.mxu0 0.0
  %628 = vmatprep.subr.mxu0 0.0
  %629 = vmatpush1.msra.mxu0 0.0
  %630 = vmatprep.subr.mxu0 0.0
  %631 = vmatpush1.msra.mxu0 0.0
  %632 = vmatprep.subr.mxu0 0.0
  %633 = vmatpush1.msra.mxu0 0.0
  %634 = vmatprep.subr.mxu0 0.0
  %635 = vmatpush1.msra.mxu0 0.0
  %636 = vmatprep.subr.mxu0 0.0
  %637 = vmatpush1.msra.mxu0 0.0
  %638 = vmatprep.subr.mxu0 0.0
  %639 = vmatpush1.msra.mxu0 0.0
  %640 = vmatprep.subr.mxu0 0.0
  %641 = vmatpush1.msra.mxu0 0.0
  %642 = vmatprep.subr.mxu0 0.0
  %643 = vmatpush1.msra.mxu0 0.0
  %644 = vmatprep.subr.mxu0 0.0
  %645 = vmatpush1.msra.mxu0 0.0
  %646 = vmatprep.subr.mxu0 0.0
  %647 = vmatpush1.msra.mxu0 0.0
  %648 = vmatprep.subr.mxu0 0.0
  %649 = vmatpush1.msra.mxu0 0.0
  %650 = vmatprep.mubr.f32.mxu0 0.0
  %651 = vmatmul.mubr.f32.gmra.mrb[0].mxu0 %v506
  %v652 = vpop.f32.mrb[0].mxu0
  %v653 = vadd.f32 0.0, %v652
  %v654 = vpop.f32.mrb[0].mxu0
  %655 = vmatprep.mubr.f32.mxu0 0.0
  %656 = vmatmul.mubr.f32.gmra.mrb[0].mxu0 %v509
  %v657 = vpop.f32.mrb[0].mxu0
  %v658 = vadd.f32 0.0, %v657
  %v659 = vpop.f32.mrb[0].mxu0
  %660 = vdwg.mxu0
  %v661 = vsel %vm504, %v109, 0
  %663 = vmatprep.subr.mxu0 0.0
  %664 = vmatpush1.xpose.msra.mxu0 %v506
  %665 = vmatprep.subr.mxu0 0.0
  %666 = vmatpush1.xpose.msra.mxu0 %v509
  %667 = vmatprep.subr.mxu0 0.0
  %668 = vmatpush1.xpose.msra.mxu0 0.0
  %669 = vmatprep.subr.mxu0 0.0
  %670 = vmatpush1.xpose.msra.mxu0 0.0
  %671 = vmatprep.subr.mxu0 0.0
  %672 = vmatpush1.xpose.msra.mxu0 0.0
  %673 = vmatprep.subr.mxu0 0.0
  %674 = vmatpush1.xpose.msra.mxu0 0.0
  %675 = vmatprep.subr.mxu0 0.0
  %676 = vmatpush1.xpose.msra.mxu0 0.0
  %677 = vmatprep.subr.mxu0 0.0
  %678 = vmatpush1.xpose.msra.mxu0 0.0
  %679 = vmatprep.subr.mxu0 0.0
  %680 = vmatpush1.xpose.msra.mxu0 0.0
  %681 = vmatprep.subr.mxu0 0.0
  %682 = vmatpush1.xpose.msra.mxu0 0.0
  %683 = vmatprep.subr.mxu0 0.0
  %684 = vmatpush1.xpose.msra.mxu0 0.0
  %685 = vmatprep.subr.mxu0 0.0
  %686 = vmatpush1.xpose.msra.mxu0 0.0
  %687 = vmatprep.subr.mxu0 0.0
  %688 = vmatpush1.xpose.msra.mxu0 0.0
  %689 = vmatprep.subr.mxu0 0.0
  %690 = vmatpush1.xpose.msra.mxu0 0.0
  %691 = vmatprep.subr.mxu0 0.0
  %692 = vmatpush1.xpose.msra.mxu0 0.0
  %693 = vmatprep.subr.mxu0 0.0
  %694 = vmatpush1.xpose.msra.mxu0 0.0
  %695 = vmatprep.subr.mxu0 0.0
  %696 = vmatpush1.xpose.msra.mxu0 0.0
  %697 = vmatprep.subr.mxu0 0.0
  %698 = vmatpush1.xpose.msra.mxu0 0.0
  %699 = vmatprep.subr.mxu0 0.0
  %700 = vmatpush1.xpose.msra.mxu0 0.0
  %701 = vmatprep.subr.mxu0 0.0
  %702 = vmatpush1.xpose.msra.mxu0 0.0
  %703 = vmatprep.subr.mxu0 0.0
  %704 = vmatpush1.xpose.msra.mxu0 0.0
  %705 = vmatprep.subr.mxu0 0.0
  %706 = vmatpush1.xpose.msra.mxu0 0.0
  %707 = vmatprep.subr.mxu0 0.0
  %708 = vmatpush1.xpose.msra.mxu0 0.0
  %709 = vmatprep.subr.mxu0 0.0
  %710 = vmatpush1.xpose.msra.mxu0 0.0
  %711 = vmatprep.subr.mxu0 0.0
  %712 = vmatpush1.xpose.msra.mxu0 0.0
  %713 = vmatprep.subr.mxu0 0.0
  %714 = vmatpush1.xpose.msra.mxu0 0.0
  %715 = vmatprep.subr.mxu0 0.0
  %716 = vmatpush1.xpose.msra.mxu0 0.0
  %717 = vmatprep.subr.mxu0 0.0
  %718 = vmatpush1.xpose.msra.mxu0 0.0
  %719 = vmatprep.subr.mxu0 0.0
  %720 = vmatpush1.xpose.msra.mxu0 0.0
  %721 = vmatprep.subr.mxu0 0.0
  %722 = vmatpush1.xpose.msra.mxu0 0.0
  %723 = vmatprep.subr.mxu0 0.0
  %724 = vmatpush1.xpose.msra.mxu0 0.0
  %725 = vmatprep.subr.mxu0 0.0
  %726 = vmatpush1.xpose.msra.mxu0 0.0
  %727 = vmatprep.mubr.f32.mxu0 0.0
  %728 = vmatmul.mubr.f32.gmra.mrb[0].mxu0 %v661
  %v729 = vpop.f32.mrb[0].mxu0
  %v730 = vadd.f32 0.0, %v729
  %v731 = vpop.f32.mrb[0].mxu0
  %732 = vmatprep.mubr.f32.mxu0 0.0
  %733 = vmatmul.mubr.f32.gmra.mrb[0].mxu0 %v661
  %v734 = vpop.f32.mrb[0].mxu0
  %v735 = vadd.f32 0.0, %v734
  %v736 = vpop.f32.mrb[0].mxu0
  %737 = vdwg.mxu0
  %739 = vset.pattern.permute.xlu0 0
  %740 = vperm.xlu0 %739, %v653
  %v741 = vpop.permute.xlu0 %740
  %744 = vset.pattern.permute.xlu0 0
  %745 = vperm.xlu0 %744, %v658
  %v746 = vpop.permute.xlu0 %745
  %v748 = vadd.f32 %v741, %v730
  %v749 = vadd.f32 %v746, %v735
  %vm750 = vcmp.ge.f32.partialorder %v748, 0.0
  %vm751 = vcmp.ge.f32.partialorder %v749, 0.0
  %v752 = vmul.f32 %v748, 0.2
  %v753 = vmul.f32 %v749, 0.2
  %v754 = vsel %vm750, %v748, %v752
  %v755 = vsel %vm751, %v749, %v753
  %v756 = vadd.f32 %v754, %v68
  %v757 = vadd.f32 %v755, %v69
  %v758 = vsel %vm388, %v756, -inf
  %759 = vmax.xlane.f32.xlu0 %v758
  %v760 = vpop.xlane.xlu0 %759
  %v761 = vsel %vm388, %v757, -inf
  %762 = vmax.xlane.f32.xlu0 %v761
  %v763 = vpop.xlane.xlu0 %762
  %v764 = vsub.f32 %v756, %v760
  %v765 = vsub.f32 %v757, %v763
  %v766 = vmul.f32 %v764, 1.442695
  %v767 = vpow.pop %v766
  %v768 = vmul.f32 %v765, 1.442695
  %v769 = vpow.pop %v768
  %v770 = vsel %vm388, %v767, 0.0
  %771 = vadd.xlane.f32.xlu0 %v770
  %v772 = vpop.xlane.xlu0 %771
  %v773 = vsel %vm388, %v769, 0.0
  %774 = vadd.xlane.f32.xlu0 %v773
  %v775 = vpop.xlane.xlu0 %774
  %v776 = vrcp.pop %v772
  %v777 = vrcp.pop %v775
  %v778 = vmul.f32 %v767, %v776
  %v779 = vmul.f32 %v769, %v777
  %v781 = vlaneseq
  %v782 = vshrl.u32 %v781, 7
  %v783 = vsub.s32 0, %v782
  %v784 = vrot.slane %v86, %v783
  %v787 = vsel %vm388, %v778, 0
  %v790 = vsel %vm388, %v779, 0
  %792 = vmatprep.subr.mxu0 0.0
  %793 = vmatpush1.msra.mxu0 %v578
  %794 = vmatprep.subr.mxu0 0.0
  %795 = vmatpush1.msra.mxu0 %v583
  %796 = vmatprep.subr.mxu0 0.0
  %797 = vmatpush1.msra.mxu0 0.0
  %798 = vmatprep.subr.mxu0 0.0
  %799 = vmatpush1.msra.mxu0 0.0
  %800 = vmatprep.subr.mxu0 0.0
  %801 = vmatpush1.msra.mxu0 0.0
  %802 = vmatprep.subr.mxu0 0.0
  %803 = vmatpush1.msra.mxu0 0.0
  %804 = vmatprep.subr.mxu0 0.0
  %805 = vmatpush1.msra.mxu0 0.0
  %806 = vmatprep.subr.mxu0 0.0
  %807 = vmatpush1.msra.mxu0 0.0
  %808 = vmatprep.subr.mxu0 0.0
  %809 = vmatpush1.msra.mxu0 0.0
  %810 = vmatprep.subr.mxu0 0.0
  %811 = vmatpush1.msra.mxu0 0.0
  %812 = vmatprep.subr.mxu0 0.0
  %813 = vmatpush1.msra.mxu0 0.0
  %814 = vmatprep.subr.mxu0 0.0
  %815 = vmatpush1.msra.mxu0 0.0
  %816 = vmatprep.subr.mxu0 0.0
  %817 = vmatpush1.msra.mxu0 0.0
  %818 = vmatprep.subr.mxu0 0.0
  %819 = vmatpush1.msra.mxu0 0.0
  %820 = vmatprep.subr.mxu0 0.0
  %821 = vmatpush1.msra.mxu0 0.0
  %822 = vmatprep.subr.mxu0 0.0
  %823 = vmatpush1.msra.mxu0 0.0
  %824 = vmatprep.subr.mxu0 0.0
  %825 = vmatpush1.msra.mxu0 0.0
  %826 = vmatprep.subr.mxu0 0.0
  %827 = vmatpush1.msra.mxu0 0.0
  %828 = vmatprep.subr.mxu0 0.0
  %829 = vmatpush1.msra.mxu0 0.0
  %830 = vmatprep.subr.mxu0 0.0
  %831 = vmatpush1.msra.mxu0 0.0
  %832 = vmatprep.subr.mxu0 0.0
  %833 = vmatpush1.msra.mxu0 0.0
  %834 = vmatprep.subr.mxu0 0.0
  %835 = vmatpush1.msra.mxu0 0.0
  %836 = vmatprep.subr.mxu0 0.0
  %837 = vmatpush1.msra.mxu0 0.0
  %838 = vmatprep.subr.mxu0 0.0
  %839 = vmatpush1.msra.mxu0 0.0
  %840 = vmatprep.subr.mxu0 0.0
  %841 = vmatpush1.msra.mxu0 0.0
  %842 = vmatprep.subr.mxu0 0.0
  %843 = vmatpush1.msra.mxu0 0.0
  %844 = vmatprep.subr.mxu0 0.0
  %845 = vmatpush1.msra.mxu0 0.0
  %846 = vmatprep.subr.mxu0 0.0
  %847 = vmatpush1.msra.mxu0 0.0
  %848 = vmatprep.subr.mxu0 0.0
  %849 = vmatpush1.msra.mxu0 0.0
  %850 = vmatprep.subr.mxu0 0.0
  %851 = vmatpush1.msra.mxu0 0.0
  %852 = vmatprep.subr.mxu0 0.0
  %853 = vmatpush1.msra.mxu0 0.0
  %854 = vmatprep.subr.mxu0 0.0
  %855 = vmatpush1.msra.mxu0 0.0
  %856 = vmatprep.mubr.f32.mxu0 0.0
  %857 = vmatmul.mubr.f32.gmra.mrb[0].mxu0 %v787
  %v858 = vpop.f32.mrb[0].mxu0
  %v859 = vadd.f32 %v784, %v858
  %v860 = vpop.f32.mrb[0].mxu0
  %861 = vmatprep.mubr.f32.mxu0 0.0
  %862 = vmatmul.mubr.f32.gmra.mrb[0].mxu0 %v790
  %v863 = vpop.f32.mrb[0].mxu0
  %v864 = vadd.f32 %v784, %v863
  %v865 = vpop.f32.mrb[0].mxu0
  %866 = vdwg.mxu0
  %vm867 = vcmp.ge.f32.partialorder %v859, 0.0
  %vm868 = vcmp.ge.f32.partialorder %v864, 0.0
  %v869 = vmul.f32 %v859, 0.01
  %v870 = vmul.f32 %v864, 0.01
  %v871 = vsel %vm867, %v859, %v869
  %v872 = vsel %vm868, %v864, %v870
  %873 = vmatprep.subr.mxu0 0.0
  %874 = vmatpush1.msra.mxu0 %v88
  %875 = vmatprep.subr.mxu0 0.0
  %876 = vmatpush1.msra.mxu0 0.0
  %877 = vmatprep.subr.mxu0 0.0
  %878 = vmatpush1.msra.mxu0 0.0
  %879 = vmatprep.subr.mxu0 0.0
  %880 = vmatpush1.msra.mxu0 0.0
  %881 = vmatprep.subr.mxu0 0.0
  %882 = vmatpush1.msra.mxu0 0.0
  %883 = vmatprep.subr.mxu0 0.0
  %884 = vmatpush1.msra.mxu0 0.0
  %885 = vmatprep.subr.mxu0 0.0
  %886 = vmatpush1.msra.mxu0 0.0
  %887 = vmatprep.subr.mxu0 0.0
  %888 = vmatpush1.msra.mxu0 0.0
  %889 = vmatprep.subr.mxu0 0.0
  %890 = vmatpush1.msra.mxu0 0.0
  %891 = vmatprep.subr.mxu0 0.0
  %892 = vmatpush1.msra.mxu0 0.0
  %893 = vmatprep.subr.mxu0 0.0
  %894 = vmatpush1.msra.mxu0 0.0
  %895 = vmatprep.subr.mxu0 0.0
  %896 = vmatpush1.msra.mxu0 0.0
  %897 = vmatprep.subr.mxu0 0.0
  %898 = vmatpush1.msra.mxu0 0.0
  %899 = vmatprep.subr.mxu0 0.0
  %900 = vmatpush1.msra.mxu0 0.0
  %901 = vmatprep.subr.mxu0 0.0
  %902 = vmatpush1.msra.mxu0 0.0
  %903 = vmatprep.subr.mxu0 0.0
  %904 = vmatpush1.msra.mxu0 0.0
  %905 = vmatprep.subr.mxu0 0.0
  %906 = vmatpush1.msra.mxu0 0.0
  %907 = vmatprep.subr.mxu0 0.0
  %908 = vmatpush1.msra.mxu0 0.0
  %909 = vmatprep.subr.mxu0 0.0
  %910 = vmatpush1.msra.mxu0 0.0
  %911 = vmatprep.subr.mxu0 0.0
  %912 = vmatpush1.msra.mxu0 0.0
  %913 = vmatprep.subr.mxu0 0.0
  %914 = vmatpush1.msra.mxu0 0.0
  %915 = vmatprep.subr.mxu0 0.0
  %916 = vmatpush1.msra.mxu0 0.0
  %917 = vmatprep.subr.mxu0 0.0
  %918 = vmatpush1.msra.mxu0 0.0
  %919 = vmatprep.subr.mxu0 0.0
  %920 = vmatpush1.msra.mxu0 0.0
  %921 = vmatprep.subr.mxu0 0.0
  %922 = vmatpush1.msra.mxu0 0.0
  %923 = vmatprep.subr.mxu0 0.0
  %924 = vmatpush1.msra.mxu0 0.0
  %925 = vmatprep.subr.mxu0 0.0
  %926 = vmatpush1.msra.mxu0 0.0
  %927 = vmatprep.subr.mxu0 0.0
  %928 = vmatpush1.msra.mxu0 0.0
  %929 = vmatprep.subr.mxu0 0.0
  %930 = vmatpush1.msra.mxu0 0.0
  %931 = vmatprep.subr.mxu0 0.0
  %932 = vmatpush1.msra.mxu0 0.0
  %933 = vmatprep.subr.mxu0 0.0
  %934 = vmatpush1.msra.mxu0 0.0
  %935 = vmatprep.subr.mxu0 0.0
  %936 = vmatpush1.msra.mxu0 0.0
  %937 = vmatprep.mubr.f32.mxu0 0.0
  %938 = vmatmul.mubr.f32.gmra.mrb[0].mxu0 %v506
  %v939 = vpop.f32.mrb[0].mxu0
  %v940 = vadd.f32 0.0, %v939
  %v941 = vpop.f32.mrb[0].mxu0
  %942 = vmatprep.mubr.f32.mxu0 0.0
  %943 = vmatmul.mubr.f32.gmra.mrb[0].mxu0 %v509
  %v944 = vpop.f32.mrb[0].mxu0
  %v945 = vadd.f32 0.0, %v944
  %v946 = vpop.f32.mrb[0].mxu0
  %947 = vdwg.mxu0
  %v949 = vsel %vm134, %v87, 0
  %951 = vmatprep.subr.mxu0 0.0
  %952 = vmatpush1.msra.mxu0 %v949
  %953 = vmatprep.subr.mxu0 0.0
  %954 = vmatpush1.msra.mxu0 0.0
  %955 = vmatprep.subr.mxu0 0.0
  %956 = vmatpush1.msra.mxu0 0.0
  %957 = vmatprep.subr.mxu0 0.0
  %958 = vmatpush1.msra.mxu0 0.0
  %959 = vmatprep.subr.mxu0 0.0
  %960 = vmatpush1.msra.mxu0 0.0
  %961 = vmatprep.subr.mxu0 0.0
  %962 = vmatpush1.msra.mxu0 0.0
  %963 = vmatprep.subr.mxu0 0.0
  %964 = vmatpush1.msra.mxu0 0.0
  %965 = vmatprep.subr.mxu0 0.0
  %966 = vmatpush1.msra.mxu0 0.0
  %967 = vmatprep.subr.mxu0 0.0
  %968 = vmatpush1.msra.mxu0 0.0
  %969 = vmatprep.subr.mxu0 0.0
  %970 = vmatpush1.msra.mxu0 0.0
  %971 = vmatprep.subr.mxu0 0.0
  %972 = vmatpush1.msra.mxu0 0.0
  %973 = vmatprep.subr.mxu0 0.0
  %974 = vmatpush1.msra.mxu0 0.0
  %975 = vmatprep.subr.mxu0 0.0
  %976 = vmatpush1.msra.mxu0 0.0
  %977 = vmatprep.subr.mxu0 0.0
  %978 = vmatpush1.msra.mxu0 0.0
  %979 = vmatprep.subr.mxu0 0.0
  %980 = vmatpush1.msra.mxu0 0.0
  %981 = vmatprep.subr.mxu0 0.0
  %982 = vmatpush1.msra.mxu0 0.0
  %983 = vmatprep.subr.mxu0 0.0
  %984 = vmatpush1.msra.mxu0 0.0
  %985 = vmatprep.subr.mxu0 0.0
  %986 = vmatpush1.msra.mxu0 0.0
  %987 = vmatprep.subr.mxu0 0.0
  %988 = vmatpush1.msra.mxu0 0.0
  %989 = vmatprep.subr.mxu0 0.0
  %990 = vmatpush1.msra.mxu0 0.0
  %991 = vmatprep.subr.mxu0 0.0
  %992 = vmatpush1.msra.mxu0 0.0
  %993 = vmatprep.subr.mxu0 0.0
  %994 = vmatpush1.msra.mxu0 0.0
  %995 = vmatprep.subr.mxu0 0.0
  %996 = vmatpush1.msra.mxu0 0.0
  %997 = vmatprep.subr.mxu0 0.0
  %998 = vmatpush1.msra.mxu0 0.0
  %999 = vmatprep.subr.mxu0 0.0
  %1000 = vmatpush1.msra.mxu0 0.0
  %1001 = vmatprep.subr.mxu0 0.0
  %1002 = vmatpush1.msra.mxu0 0.0
  %1003 = vmatprep.subr.mxu0 0.0
  %1004 = vmatpush1.msra.mxu0 0.0
  %1005 = vmatprep.subr.mxu0 0.0
  %1006 = vmatpush1.msra.mxu0 0.0
  %1007 = vmatprep.subr.mxu0 0.0
  %1008 = vmatpush1.msra.mxu0 0.0
  %1009 = vmatprep.subr.mxu0 0.0
  %1010 = vmatpush1.msra.mxu0 0.0
  %1011 = vmatprep.subr.mxu0 0.0
  %1012 = vmatpush1.msra.mxu0 0.0
  %1013 = vmatprep.subr.mxu0 0.0
  %1014 = vmatpush1.msra.mxu0 0.0
  %1015 = vmatprep.mubr.f32.mxu0 0.0
  %1016 = vmatmul.mubr.f32.gmra.mrb[0].mxu0 %v129
  %v1017 = vpop.f32.mrb[0].mxu0
  %v1018 = vadd.f32 %v940, %v1017
  %v1019 = vpop.f32.mrb[0].mxu0
  %1020 = vmatprep.mubr.f32.mxu0 0.0
  %1021 = vmatmul.mubr.f32.gmra.mrb[0].mxu0 %v132
  %v1022 = vpop.f32.mrb[0].mxu0
  %v1023 = vadd.f32 %v945, %v1022
  %v1024 = vpop.f32.mrb[0].mxu0
  %1025 = vdwg.mxu0
  %v1027 = vsel %vm504, %v871, 0
  %v1030 = vsel %vm504, %v872, 0
  %1032 = vmatprep.subr.mxu0 0.0
  %1033 = vmatpush1.msra.mxu0 %v89
  %1034 = vmatprep.subr.mxu0 0.0
  %1035 = vmatpush1.msra.mxu0 0.0
  %1036 = vmatprep.subr.mxu0 0.0
  %1037 = vmatpush1.msra.mxu0 0.0
  %1038 = vmatprep.subr.mxu0 0.0
  %1039 = vmatpush1.msra.mxu0 0.0
  %1040 = vmatprep.subr.mxu0 0.0
  %1041 = vmatpush1.msra.mxu0 0.0
  %1042 = vmatprep.subr.mxu0 0.0
  %1043 = vmatpush1.msra.mxu0 0.0
  %1044 = vmatprep.subr.mxu0 0.0
  %1045 = vmatpush1.msra.mxu0 0.0
  %1046 = vmatprep.subr.mxu0 0.0
  %1047 = vmatpush1.msra.mxu0 0.0
  %1048 = vmatprep.subr.mxu0 0.0
  %1049 = vmatpush1.msra.mxu0 0.0
  %1050 = vmatprep.subr.mxu0 0.0
  %1051 = vmatpush1.msra.mxu0 0.0
  %1052 = vmatprep.subr.mxu0 0.0
  %1053 = vmatpush1.msra.mxu0 0.0
  %1054 = vmatprep.subr.mxu0 0.0
  %1055 = vmatpush1.msra.mxu0 0.0
  %1056 = vmatprep.subr.mxu0 0.0
  %1057 = vmatpush1.msra.mxu0 0.0
  %1058 = vmatprep.subr.mxu0 0.0
  %1059 = vmatpush1.msra.mxu0 0.0
  %1060 = vmatprep.subr.mxu0 0.0
  %1061 = vmatpush1.msra.mxu0 0.0
  %1062 = vmatprep.subr.mxu0 0.0
  %1063 = vmatpush1.msra.mxu0 0.0
  %1064 = vmatprep.subr.mxu0 0.0
  %1065 = vmatpush1.msra.mxu0 0.0
  %1066 = vmatprep.subr.mxu0 0.0
  %1067 = vmatpush1.msra.mxu0 0.0
  %1068 = vmatprep.subr.mxu0 0.0
  %1069 = vmatpush1.msra.mxu0 0.0
  %1070 = vmatprep.subr.mxu0 0.0
  %1071 = vmatpush1.msra.mxu0 0.0
  %1072 = vmatprep.subr.mxu0 0.0
  %1073 = vmatpush1.msra.mxu0 0.0
  %1074 = vmatprep.subr.mxu0 0.0
  %1075 = vmatpush1.msra.mxu0 0.0
  %1076 = vmatprep.subr.mxu0 0.0
  %1077 = vmatpush1.msra.mxu0 0.0
  %1078 = vmatprep.subr.mxu0 0.0
  %1079 = vmatpush1.msra.mxu0 0.0
  %1080 = vmatprep.subr.mxu0 0.0
  %1081 = vmatpush1.msra.mxu0 0.0
  %1082 = vmatprep.subr.mxu0 0.0
  %1083 = vmatpush1.msra.mxu0 0.0
  %1084 = vmatprep.subr.mxu0 0.0
  %1085 = vmatpush1.msra.mxu0 0.0
  %1086 = vmatprep.subr.mxu0 0.0
  %1087 = vmatpush1.msra.mxu0 0.0
  %1088 = vmatprep.subr.mxu0 0.0
  %1089 = vmatpush1.msra.mxu0 0.0
  %1090 = vmatprep.subr.mxu0 0.0
  %1091 = vmatpush1.msra.mxu0 0.0
  %1092 = vmatprep.subr.mxu0 0.0
  %1093 = vmatpush1.msra.mxu0 0.0
  %1094 = vmatprep.subr.mxu0 0.0
  %1095 = vmatpush1.msra.mxu0 0.0
  %1096 = vmatprep.mubr.f32.mxu0 0.0
  %1097 = vmatmul.mubr.f32.gmra.mrb[0].mxu0 %v1027
  %v1098 = vpop.f32.mrb[0].mxu0
  %v1099 = vadd.f32 0.0, %v1098
  %v1100 = vpop.f32.mrb[0].mxu0
  %1101 = vmatprep.mubr.f32.mxu0 0.0
  %1102 = vmatmul.mubr.f32.gmra.mrb[0].mxu0 %v1030
  %v1103 = vpop.f32.mrb[0].mxu0
  %v1104 = vadd.f32 0.0, %v1103
  %v1105 = vpop.f32.mrb[0].mxu0
  %1106 = vdwg.mxu0
  %v1107 = vadd.f32 %v1018, %v1099
  %v1108 = vadd.f32 %v1023, %v1104
  %v1110 = vlaneseq
  %v1111 = vshrl.u32 %v1110, 7
  %v1112 = vsub.s32 0, %v1111
  %v1113 = vrot.slane %v90, %v1112
  %v1116 = vsel %vm388, %v70, 0
  %v1119 = vsel %vm388, %v71, 0
  %1121 = vmatprep.subr.mxu0 0.0
  %1122 = vmatpush1.msra.mxu0 %v1107
  %1123 = vmatprep.subr.mxu0 0.0
  %1124 = vmatpush1.msra.mxu0 %v1108
  %1125 = vmatprep.subr.mxu0 0.0
  %1126 = vmatpush1.msra.mxu0 0.0
  %1127 = vmatprep.subr.mxu0 0.0
  %1128 = vmatpush1.msra.mxu0 0.0
  %1129 = vmatprep.subr.mxu0 0.0
  %1130 = vmatpush1.msra.mxu0 0.0
  %1131 = vmatprep.subr.mxu0 0.0
  %1132 = vmatpush1.msra.mxu0 0.0
  %1133 = vmatprep.subr.mxu0 0.0
  %1134 = vmatpush1.msra.mxu0 0.0
  %1135 = vmatprep.subr.mxu0 0.0
  %1136 = vmatpush1.msra.mxu0 0.0
  %1137 = vmatprep.subr.mxu0 0.0
  %1138 = vmatpush1.msra.mxu0 0.0
  %1139 = vmatprep.subr.mxu0 0.0
  %1140 = vmatpush1.msra.mxu0 0.0
  %1141 = vmatprep.subr.mxu0 0.0
  %1142 = vmatpush1.msra.mxu0 0.0
  %1143 = vmatprep.subr.mxu0 0.0
  %1144 = vmatpush1.msra.mxu0 0.0
  %1145 = vmatprep.subr.mxu0 0.0
  %1146 = vmatpush1.msra.mxu0 0.0
  %1147 = vmatprep.subr.mxu0 0.0
  %1148 = vmatpush1.msra.mxu0 0.0
  %1149 = vmatprep.subr.mxu0 0.0
  %1150 = vmatpush1.msra.mxu0 0.0
  %1151 = vmatprep.subr.mxu0 0.0
  %1152 = vmatpush1.msra.mxu0 0.0
  %1153 = vmatprep.subr.mxu0 0.0
  %1154 = vmatpush1.msra.mxu0 0.0
  %1155 = vmatprep.subr.mxu0 0.0
  %1156 = vmatpush1.msra.mxu0 0.0
  %1157 = vmatprep.subr.mxu0 0.0
  %1158 = vmatpush1.msra.mxu0 0.0
  %1159 = vmatprep.subr.mxu0 0.0
  %1160 = vmatpush1.msra.mxu0 0.0
  %1161 = vmatprep.subr.mxu0 0.0
  %1162 = vmatpush1.msra.mxu0 0.0
  %1163 = vmatprep.subr.mxu0 0.0
  %1164 = vmatpush1.msra.mxu0 0.0
  %1165 = vmatprep.subr.mxu0 0.0
  %1166 = vmatpush1.msra.mxu0 0.0
  %1167 = vmatprep.subr.mxu0 0.0
  %1168 = vmatpush1.msra.mxu0 0.0
  %1169 = vmatprep.subr.mxu0 0.0
  %1170 = vmatpush1.msra.mxu0 0.0
  %1171 = vmatprep.subr.mxu0 0.0
  %1172 = vmatpush1.msra.mxu0 0.0
  %1173 = vmatprep.subr.mxu0 0.0
  %1174 = vmatpush1.msra.mxu0 0.0
  %1175 = vmatprep.subr.mxu0 0.0
  %1176 = vmatpush1.msra.mxu0 0.0
  %1177 = vmatprep.subr.mxu0 0.0
  %1178 = vmatpush1.msra.mxu0 0.0
  %1179 = vmatprep.subr.mxu0 0.0
  %1180 = vmatpush1.msra.mxu0 0.0
  %1181 = vmatprep.subr.mxu0 0.0
  %1182 = vmatpush1.msra.mxu0 0.0
  %1183 = vmatprep.subr.mxu0 0.0
  %1184 = vmatpush1.msra.mxu0 0.0
  %1185 = vmatprep.mubr.f32.mxu0 0.0
  %1186 = vmatmul.mubr.f32.gmra.mrb[0].mxu0 %v1116
  %v1187 = vpop.f32.mrb[0].mxu0
  %v1188 = vadd.f32 %v1113, %v1187
  %v1189 = vpop.f32.mrb[0].mxu0
  %1190 = vmatprep.mubr.f32.mxu0 0.0
  %1191 = vmatmul.mubr.f32.gmra.mrb[0].mxu0 %v1119
  %v1192 = vpop.f32.mrb[0].mxu0
  %v1193 = vadd.f32 %v1113, %v1192
  %v1194 = vpop.f32.mrb[0].mxu0
  %1195 = vdwg.mxu0
  %vm1196 = vcmp.ge.f32.partialorder %v1188, 0.0
  %vm1197 = vcmp.ge.f32.partialorder %v1193, 0.0
  %v1198 = vmul.f32 %v1188, 0.01
  %v1199 = vmul.f32 %v1193, 0.01
  %v1200 = vsel %vm1196, %v1188, %v1198
  %v1201 = vsel %vm1197, %v1193, %v1199
  %vm1202 = vcmask 162816
  %v1204 = vsel %vm1202, %v1200, 0
  %v1207 = vsel %vm1202, %v1201, 0
  %v1210 = vsel %vm134, %v93, 0
  %1212 = vmatprep.subr.mxu0 0.0
  %1213 = vmatpush1.msra.mxu0 %v91
  %1214 = vmatprep.subr.mxu0 0.0
  %1215 = vmatpush1.msra.mxu0 %v92
  %1216 = vmatprep.subr.mxu0 0.0
  %1217 = vmatpush1.msra.mxu0 %v1210
  %1218 = vmatprep.subr.mxu0 0.0
  %1219 = vmatpush1.msra.mxu0 0.0
  %1220 = vmatprep.subr.mxu0 0.0
  %1221 = vmatpush1.msra.mxu0 0.0
  %1222 = vmatprep.subr.mxu0 0.0
  %1223 = vmatpush1.msra.mxu0 0.0
  %1224 = vmatprep.subr.mxu0 0.0
  %1225 = vmatpush1.msra.mxu0 0.0
  %1226 = vmatprep.subr.mxu0 0.0
  %1227 = vmatpush1.msra.mxu0 0.0
  %1228 = vmatprep.subr.mxu0 0.0
  %1229 = vmatpush1.msra.mxu0 0.0
  %1230 = vmatprep.subr.mxu0 0.0
  %1231 = vmatpush1.msra.mxu0 0.0
  %1232 = vmatprep.subr.mxu0 0.0
  %1233 = vmatpush1.msra.mxu0 0.0
  %1234 = vmatprep.subr.mxu0 0.0
  %1235 = vmatpush1.msra.mxu0 0.0
  %1236 = vmatprep.subr.mxu0 0.0
  %1237 = vmatpush1.msra.mxu0 0.0
  %1238 = vmatprep.subr.mxu0 0.0
  %1239 = vmatpush1.msra.mxu0 0.0
  %1240 = vmatprep.subr.mxu0 0.0
  %1241 = vmatpush1.msra.mxu0 0.0
  %1242 = vmatprep.subr.mxu0 0.0
  %1243 = vmatpush1.msra.mxu0 0.0
  %1244 = vmatprep.subr.mxu0 0.0
  %1245 = vmatpush1.msra.mxu0 0.0
  %1246 = vmatprep.subr.mxu0 0.0
  %1247 = vmatpush1.msra.mxu0 0.0
  %1248 = vmatprep.subr.mxu0 0.0
  %1249 = vmatpush1.msra.mxu0 0.0
  %1250 = vmatprep.subr.mxu0 0.0
  %1251 = vmatpush1.msra.mxu0 0.0
  %1252 = vmatprep.subr.mxu0 0.0
  %1253 = vmatpush1.msra.mxu0 0.0
  %1254 = vmatprep.subr.mxu0 0.0
  %1255 = vmatpush1.msra.mxu0 0.0
  %1256 = vmatprep.subr.mxu0 0.0
  %1257 = vmatpush1.msra.mxu0 0.0
  %1258 = vmatprep.subr.mxu0 0.0
  %1259 = vmatpush1.msra.mxu0 0.0
  %1260 = vmatprep.subr.mxu0 0.0
  %1261 = vmatpush1.msra.mxu0 0.0
  %1262 = vmatprep.subr.mxu0 0.0
  %1263 = vmatpush1.msra.mxu0 0.0
  %1264 = vmatprep.subr.mxu0 0.0
  %1265 = vmatpush1.msra.mxu0 0.0
  %1266 = vmatprep.subr.mxu0 0.0
  %1267 = vmatpush1.msra.mxu0 0.0
  %1268 = vmatprep.subr.mxu0 0.0
  %1269 = vmatpush1.msra.mxu0 0.0
  %1270 = vmatprep.subr.mxu0 0.0
  %1271 = vmatpush1.msra.mxu0 0.0
  %1272 = vmatprep.subr.mxu0 0.0
  %1273 = vmatpush1.msra.mxu0 0.0
  %1274 = vmatprep.subr.mxu0 0.0
  %1275 = vmatpush1.msra.mxu0 0.0
  %1276 = vmatprep.mubr.f32.mxu0 0.0
  %1277 = vmatmul.mubr.f32.gmra.mrb[0].mxu0 %v1204
  %v1278 = vpop.f32.mrb[0].mxu0
  %v1279 = vadd.f32 0.0, %v1278
  %v1280 = vpop.f32.mrb[0].mxu0
  %1281 = vmatprep.mubr.f32.mxu0 0.0
  %1282 = vmatmul.mubr.f32.gmra.mrb[0].mxu0 %v1207
  %v1283 = vpop.f32.mrb[0].mxu0
  %v1284 = vadd.f32 0.0, %v1283
  %v1285 = vpop.f32.mrb[0].mxu0
  %1286 = vdwg.mxu0
  %v1288 = vsel %vm134, %v96, 0
  %1290 = vmatprep.subr.mxu0 0.0
  %1291 = vmatpush1.msra.mxu0 %v94
  %1292 = vmatprep.subr.mxu0 0.0
  %1293 = vmatpush1.msra.mxu0 %v95
  %1294 = vmatprep.subr.mxu0 0.0
  %1295 = vmatpush1.msra.mxu0 %v1288
  %1296 = vmatprep.subr.mxu0 0.0
  %1297 = vmatpush1.msra.mxu0 0.0
  %1298 = vmatprep.subr.mxu0 0.0
  %1299 = vmatpush1.msra.mxu0 0.0
  %1300 = vmatprep.subr.mxu0 0.0
  %1301 = vmatpush1.msra.mxu0 0.0
  %1302 = vmatprep.subr.mxu0 0.0
  %1303 = vmatpush1.msra.mxu0 0.0
  %1304 = vmatprep.subr.mxu0 0.0
  %1305 = vmatpush1.msra.mxu0 0.0
  %1306 = vmatprep.subr.mxu0 0.0
  %1307 = vmatpush1.msra.mxu0 0.0
  %1308 = vmatprep.subr.mxu0 0.0
  %1309 = vmatpush1.msra.mxu0 0.0
  %1310 = vmatprep.subr.mxu0 0.0
  %1311 = vmatpush1.msra.mxu0 0.0
  %1312 = vmatprep.subr.mxu0 0.0
  %1313 = vmatpush1.msra.mxu0 0.0
  %1314 = vmatprep.subr.mxu0 0.0
  %1315 = vmatpush1.msra.mxu0 0.0
  %1316 = vmatprep.subr.mxu0 0.0
  %1317 = vmatpush1.msra.mxu0 0.0
  %1318 = vmatprep.subr.mxu0 0.0
  %1319 = vmatpush1.msra.mxu0 0.0
  %1320 = vmatprep.subr.mxu0 0.0
  %1321 = vmatpush1.msra.mxu0 0.0
  %1322 = vmatprep.subr.mxu0 0.0
  %1323 = vmatpush1.msra.mxu0 0.0
  %1324 = vmatprep.subr.mxu0 0.0
  %1325 = vmatpush1.msra.mxu0 0.0
  %1326 = vmatprep.subr.mxu0 0.0
  %1327 = vmatpush1.msra.mxu0 0.0
  %1328 = vmatprep.subr.mxu0 0.0
  %1329 = vmatpush1.msra.mxu0 0.0
  %1330 = vmatprep.subr.mxu0 0.0
  %1331 = vmatpush1.msra.mxu0 0.0
  %1332 = vmatprep.subr.mxu0 0.0
  %1333 = vmatpush1.msra.mxu0 0.0
  %1334 = vmatprep.subr.mxu0 0.0
  %1335 = vmatpush1.msra.mxu0 0.0
  %1336 = vmatprep.subr.mxu0 0.0
  %1337 = vmatpush1.msra.mxu0 0.0
  %1338 = vmatprep.subr.mxu0 0.0
  %1339 = vmatpush1.msra.mxu0 0.0
  %1340 = vmatprep.subr.mxu0 0.0
  %1341 = vmatpush1.msra.mxu0 0.0
  %1342 = vmatprep.subr.mxu0 0.0
  %1343 = vmatpush1.msra.mxu0 0.0
  %1344 = vmatprep.subr.mxu0 0.0
  %1345 = vmatpush1.msra.mxu0 0.0
  %1346 = vmatprep.subr.mxu0 0.0
  %1347 = vmatpush1.msra.mxu0 0.0
  %1348 = vmatprep.subr.mxu0 0.0
  %1349 = vmatpush1.msra.mxu0 0.0
  %1350 = vmatprep.subr.mxu0 0.0
  %1351 = vmatpush1.msra.mxu0 0.0
  %1352 = vmatprep.subr.mxu0 0.0
  %1353 = vmatpush1.msra.mxu0 0.0
  %1354 = vmatprep.mubr.f32.mxu0 0.0
  %1355 = vmatmul.mubr.f32.gmra.mrb[0].mxu0 %v1204
  %v1356 = vpop.f32.mrb[0].mxu0
  %v1357 = vadd.f32 0.0, %v1356
  %v1358 = vpop.f32.mrb[0].mxu0
  %1359 = vmatprep.mubr.f32.mxu0 0.0
  %1360 = vmatmul.mubr.f32.gmra.mrb[0].mxu0 %v1207
  %v1361 = vpop.f32.mrb[0].mxu0
  %v1362 = vadd.f32 0.0, %v1361
  %v1363 = vpop.f32.mrb[0].mxu0
  %1364 = vdwg.mxu0
  %v1365 = vsel %vm1202, %v115, 0
  %1367 = vmatprep.subr.mxu0 0.0
  %1368 = vmatpush1.xpose.msra.mxu0 %v1204
  %1369 = vmatprep.subr.mxu0 0.0
  %1370 = vmatpush1.xpose.msra.mxu0 %v1207
  %1371 = vmatprep.subr.mxu0 0.0
  %1372 = vmatpush1.xpose.msra.mxu0 0.0
  %1373 = vmatprep.subr.mxu0 0.0
  %1374 = vmatpush1.xpose.msra.mxu0 0.0
  %1375 = vmatprep.subr.mxu0 0.0
  %1376 = vmatpush1.xpose.msra.mxu0 0.0
  %1377 = vmatprep.subr.mxu0 0.0
  %1378 = vmatpush1.xpose.msra.mxu0 0.0
  %1379 = vmatprep.subr.mxu0 0.0
  %1380 = vmatpush1.xpose.msra.mxu0 0.0
  %1381 = vmatprep.subr.mxu0 0.0
  %1382 = vmatpush1.xpose.msra.mxu0 0.0
  %1383 = vmatprep.subr.mxu0 0.0
  %1384 = vmatpush1.xpose.msra.mxu0 0.0
  %1385 = vmatprep.subr.mxu0 0.0
  %1386 = vmatpush1.xpose.msra.mxu0 0.0
  %1387 = vmatprep.subr.mxu0 0.0
  %1388 = vmatpush1.xpose.msra.mxu0 0.0
  %1389 = vmatprep.subr.mxu0 0.0
  %1390 = vmatpush1.xpose.msra.mxu0 0.0
  %1391 = vmatprep.subr.mxu0 0.0
  %1392 = vmatpush1.xpose.msra.mxu0 0.0
  %1393 = vmatprep.subr.mxu0 0.0
  %1394 = vmatpush1.xpose.msra.mxu0 0.0
  %1395 = vmatprep.subr.mxu0 0.0
  %1396 = vmatpush1.xpose.msra.mxu0 0.0
  %1397 = vmatprep.subr.mxu0 0.0
  %1398 = vmatpush1.xpose.msra.mxu0 0.0
  %1399 = vmatprep.subr.mxu0 0.0
  %1400 = vmatpush1.xpose.msra.mxu0 0.0
  %1401 = vmatprep.subr.mxu0 0.0
  %1402 = vmatpush1.xpose.msra.mxu0 0.0
  %1403 = vmatprep.subr.mxu0 0.0
  %1404 = vmatpush1.xpose.msra.mxu0 0.0
  %1405 = vmatprep.subr.mxu0 0.0
  %1406 = vmatpush1.xpose.msra.mxu0 0.0
  %1407 = vmatprep.subr.mxu0 0.0
  %1408 = vmatpush1.xpose.msra.mxu0 0.0
  %1409 = vmatprep.subr.mxu0 0.0
  %1410 = vmatpush1.xpose.msra.mxu0 0.0
  %1411 = vmatprep.subr.mxu0 0.0
  %1412 = vmatpush1.xpose.msra.mxu0 0.0
  %1413 = vmatprep.subr.mxu0 0.0
  %1414 = vmatpush1.xpose.msra.mxu0 0.0
  %1415 = vmatprep.subr.mxu0 0.0
  %1416 = vmatpush1.xpose.msra.mxu0 0.0
  %1417 = vmatprep.subr.mxu0 0.0
  %1418 = vmatpush1.xpose.msra.mxu0 0.0
  %1419 = vmatprep.subr.mxu0 0.0
  %1420 = vmatpush1.xpose.msra.mxu0 0.0
  %1421 = vmatprep.subr.mxu0 0.0
  %1422 = vmatpush1.xpose.msra.mxu0 0.0
  %1423 = vmatprep.subr.mxu0 0.0
  %1424 = vmatpush1.xpose.msra.mxu0 0.0
  %1425 = vmatprep.subr.mxu0 0.0
  %1426 = vmatpush1.xpose.msra.mxu0 0.0
  %1427 = vmatprep.subr.mxu0 0.0
  %1428 = vmatpush1.xpose.msra.mxu0 0.0
  %1429 = vmatprep.subr.mxu0 0.0
  %1430 = vmatpush1.xpose.msra.mxu0 0.0
  %1431 = vmatprep.mubr.f32.mxu0 0.0
  %1432 = vmatmul.mubr.f32.gmra.mrb[0].mxu0 %v1365
  %v1433 = vpop.f32.mrb[0].mxu0
  %v1434 = vadd.f32 0.0, %v1433
  %v1435 = vpop.f32.mrb[0].mxu0
  %1436 = vmatprep.mubr.f32.mxu0 0.0
  %1437 = vmatmul.mubr.f32.gmra.mrb[0].mxu0 %v1365
  %v1438 = vpop.f32.mrb[0].mxu0
  %v1439 = vadd.f32 0.0, %v1438
  %v1440 = vpop.f32.mrb[0].mxu0
  %1441 = vdwg.mxu0
  %1443 = vset.pattern.permute.xlu0 0
  %1444 = vperm.xlu0 %1443, %v1357
  %v1445 = vpop.permute.xlu0 %1444
  %1448 = vset.pattern.permute.xlu0 0
  %1449 = vperm.xlu0 %1448, %v1362
  %v1450 = vpop.permute.xlu0 %1449
  %v1452 = vadd.f32 %v1445, %v1434
  %v1453 = vadd.f32 %v1450, %v1439
  %vm1454 = vcmp.ge.f32.partialorder %v1452, 0.0
  %vm1455 = vcmp.ge.f32.partialorder %v1453, 0.0
  %v1456 = vmul.f32 %v1452, 0.2
  %v1457 = vmul.f32 %v1453, 0.2
  %v1458 = vsel %vm1454, %v1452, %v1456
  %v1459 = vsel %vm1455, %v1453, %v1457
  %v1460 = vadd.f32 %v1458, %v68
  %v1461 = vadd.f32 %v1459, %v69
  %v1462 = vsel %vm388, %v1460, -inf
  %1463 = vmax.xlane.f32.xlu0 %v1462
  %v1464 = vpop.xlane.xlu0 %1463
  %v1465 = vsel %vm388, %v1461, -inf
  %1466 = vmax.xlane.f32.xlu0 %v1465
  %v1467 = vpop.xlane.xlu0 %1466
  %v1468 = vsub.f32 %v1460, %v1464
  %v1469 = vsub.f32 %v1461, %v1467
  %v1470 = vmul.f32 %v1468, 1.442695
  %v1471 = vpow.pop %v1470
  %v1472 = vmul.f32 %v1469, 1.442695
  %v1473 = vpow.pop %v1472
  %v1474 = vsel %vm388, %v1471, 0.0
  %1475 = vadd.xlane.f32.xlu0 %v1474
  %v1476 = vpop.xlane.xlu0 %1475
  %v1477 = vsel %vm388, %v1473, 0.0
  %1478 = vadd.xlane.f32.xlu0 %v1477
  %v1479 = vpop.xlane.xlu0 %1478
  %v1480 = vrcp.pop %v1476
  %v1481 = vrcp.pop %v1479
  %v1482 = vmul.f32 %v1471, %v1480
  %v1483 = vmul.f32 %v1473, %v1481
  %v1485 = vlaneseq
  %v1486 = vshrl.u32 %v1485, 7
  %v1487 = vsub.s32 0, %v1486
  %v1488 = vrot.slane %v97, %v1487
  %v1491 = vsel %vm388, %v1482, 0
  %v1494 = vsel %vm388, %v1483, 0
  %1496 = vmatprep.subr.mxu0 0.0
  %1497 = vmatpush1.msra.mxu0 %v1279
  %1498 = vmatprep.subr.mxu0 0.0
  %1499 = vmatpush1.msra.mxu0 %v1284
  %1500 = vmatprep.subr.mxu0 0.0
  %1501 = vmatpush1.msra.mxu0 0.0
  %1502 = vmatprep.subr.mxu0 0.0
  %1503 = vmatpush1.msra.mxu0 0.0
  %1504 = vmatprep.subr.mxu0 0.0
  %1505 = vmatpush1.msra.mxu0 0.0
  %1506 = vmatprep.subr.mxu0 0.0
  %1507 = vmatpush1.msra.mxu0 0.0
  %1508 = vmatprep.subr.mxu0 0.0
  %1509 = vmatpush1.msra.mxu0 0.0
  %1510 = vmatprep.subr.mxu0 0.0
  %1511 = vmatpush1.msra.mxu0 0.0
  %1512 = vmatprep.subr.mxu0 0.0
  %1513 = vmatpush1.msra.mxu0 0.0
  %1514 = vmatprep.subr.mxu0 0.0
  %1515 = vmatpush1.msra.mxu0 0.0
  %1516 = vmatprep.subr.mxu0 0.0
  %1517 = vmatpush1.msra.mxu0 0.0
  %1518 = vmatprep.subr.mxu0 0.0
  %1519 = vmatpush1.msra.mxu0 0.0
  %1520 = vmatprep.subr.mxu0 0.0
  %1521 = vmatpush1.msra.mxu0 0.0
  %1522 = vmatprep.subr.mxu0 0.0
  %1523 = vmatpush1.msra.mxu0 0.0
  %1524 = vmatprep.subr.mxu0 0.0
  %1525 = vmatpush1.msra.mxu0 0.0
  %1526 = vmatprep.subr.mxu0 0.0
  %1527 = vmatpush1.msra.mxu0 0.0
  %1528 = vmatprep.subr.mxu0 0.0
  %1529 = vmatpush1.msra.mxu0 0.0
  %1530 = vmatprep.subr.mxu0 0.0
  %1531 = vmatpush1.msra.mxu0 0.0
  %1532 = vmatprep.subr.mxu0 0.0
  %1533 = vmatpush1.msra.mxu0 0.0
  %1534 = vmatprep.subr.mxu0 0.0
  %1535 = vmatpush1.msra.mxu0 0.0
  %1536 = vmatprep.subr.mxu0 0.0
  %1537 = vmatpush1.msra.mxu0 0.0
  %1538 = vmatprep.subr.mxu0 0.0
  %1539 = vmatpush1.msra.mxu0 0.0
  %1540 = vmatprep.subr.mxu0 0.0
  %1541 = vmatpush1.msra.mxu0 0.0
  %1542 = vmatprep.subr.mxu0 0.0
  %1543 = vmatpush1.msra.mxu0 0.0
  %1544 = vmatprep.subr.mxu0 0.0
  %1545 = vmatpush1.msra.mxu0 0.0
  %1546 = vmatprep.subr.mxu0 0.0
  %1547 = vmatpush1.msra.mxu0 0.0
  %1548 = vmatprep.subr.mxu0 0.0
  %1549 = vmatpush1.msra.mxu0 0.0
  %1550 = vmatprep.subr.mxu0 0.0
  %1551 = vmatpush1.msra.mxu0 0.0
  %1552 = vmatprep.subr.mxu0 0.0
  %1553 = vmatpush1.msra.mxu0 0.0
  %1554 = vmatprep.subr.mxu0 0.0
  %1555 = vmatpush1.msra.mxu0 0.0
  %1556 = vmatprep.subr.mxu0 0.0
  %1557 = vmatpush1.msra.mxu0 0.0
  %1558 = vmatprep.subr.mxu0 0.0
  %1559 = vmatpush1.msra.mxu0 0.0
  %1560 = vmatprep.mubr.f32.mxu0 0.0
  %1561 = vmatmul.mubr.f32.gmra.mrb[0].mxu0 %v1491
  %v1562 = vpop.f32.mrb[0].mxu0
  %v1563 = vadd.f32 %v1488, %v1562
  %v1564 = vpop.f32.mrb[0].mxu0
  %1565 = vmatprep.mubr.f32.mxu0 0.0
  %1566 = vmatmul.mubr.f32.gmra.mrb[0].mxu0 %v1494
  %v1567 = vpop.f32.mrb[0].mxu0
  %v1568 = vadd.f32 %v1488, %v1567
  %v1569 = vpop.f32.mrb[0].mxu0
  %1570 = vdwg.mxu0
  %v1571 = vadd.f32 %v126, %v1563
  %v1572 = vadd.f32 %v127, %v1568
  %vm1573 = vcmp.eq.s32.totalorder %v75, 0
  %v1574 = vsel %vm1573, 1.0, 0.0
  %1576 = vset.pattern.permute.xlu0 0
  %1577 = vperm.xlu0 %1576, %v1571
  %v1578 = vpop.permute.xlu0 %1577
  %1581 = vset.pattern.permute.xlu0 0
  %1582 = vperm.xlu0 %1581, %v1572
  %v1583 = vpop.permute.xlu0 %1582
  %v1585 = vmul.f32 %v1578, %v1574
  %v1586 = vmul.f32 %v1583, %v1574
  %v1587 = vadd.f32 %v1585, 0.0
  %v1588 = vadd.f32 %v1586, 0.0
  %v1589 = vmul.f32 %v1578, %v80
  %v1590 = vmul.f32 %v1583, %v80
  %v1592 = vsel %vm134, %v78, 0
  %1594 = vmatprep.subr.mxu0 0.0
  %1595 = vmatpush1.msra.mxu0 %v1592
  %1596 = vmatprep.subr.mxu0 0.0
  %1597 = vmatpush1.msra.mxu0 0.0
  %1598 = vmatprep.subr.mxu0 0.0
  %1599 = vmatpush1.msra.mxu0 0.0
  %1600 = vmatprep.subr.mxu0 0.0
  %1601 = vmatpush1.msra.mxu0 0.0
  %1602 = vmatprep.subr.mxu0 0.0
  %1603 = vmatpush1.msra.mxu0 0.0
  %1604 = vmatprep.subr.mxu0 0.0
  %1605 = vmatpush1.msra.mxu0 0.0
  %1606 = vmatprep.subr.mxu0 0.0
  %1607 = vmatpush1.msra.mxu0 0.0
  %1608 = vmatprep.subr.mxu0 0.0
  %1609 = vmatpush1.msra.mxu0 0.0
  %1610 = vmatprep.subr.mxu0 0.0
  %1611 = vmatpush1.msra.mxu0 0.0
  %1612 = vmatprep.subr.mxu0 0.0
  %1613 = vmatpush1.msra.mxu0 0.0
  %1614 = vmatprep.subr.mxu0 0.0
  %1615 = vmatpush1.msra.mxu0 0.0
  %1616 = vmatprep.subr.mxu0 0.0
  %1617 = vmatpush1.msra.mxu0 0.0
  %1618 = vmatprep.subr.mxu0 0.0
  %1619 = vmatpush1.msra.mxu0 0.0
  %1620 = vmatprep.subr.mxu0 0.0
  %1621 = vmatpush1.msra.mxu0 0.0
  %1622 = vmatprep.subr.mxu0 0.0
  %1623 = vmatpush1.msra.mxu0 0.0
  %1624 = vmatprep.subr.mxu0 0.0
  %1625 = vmatpush1.msra.mxu0 0.0
  %1626 = vmatprep.subr.mxu0 0.0
  %1627 = vmatpush1.msra.mxu0 0.0
  %1628 = vmatprep.subr.mxu0 0.0
  %1629 = vmatpush1.msra.mxu0 0.0
  %1630 = vmatprep.subr.mxu0 0.0
  %1631 = vmatpush1.msra.mxu0 0.0
  %1632 = vmatprep.subr.mxu0 0.0
  %1633 = vmatpush1.msra.mxu0 0.0
  %1634 = vmatprep.subr.mxu0 0.0
  %1635 = vmatpush1.msra.mxu0 0.0
  %1636 = vmatprep.subr.mxu0 0.0
  %1637 = vmatpush1.msra.mxu0 0.0
  %1638 = vmatprep.subr.mxu0 0.0
  %1639 = vmatpush1.msra.mxu0 0.0
  %1640 = vmatprep.subr.mxu0 0.0
  %1641 = vmatpush1.msra.mxu0 0.0
  %1642 = vmatprep.subr.mxu0 0.0
  %1643 = vmatpush1.msra.mxu0 0.0
  %1644 = vmatprep.subr.mxu0 0.0
  %1645 = vmatpush1.msra.mxu0 0.0
  %1646 = vmatprep.subr.mxu0 0.0
  %1647 = vmatpush1.msra.mxu0 0.0
  %1648 = vmatprep.subr.mxu0 0.0
  %1649 = vmatpush1.msra.mxu0 0.0
  %1650 = vmatprep.subr.mxu0 0.0
  %1651 = vmatpush1.msra.mxu0 0.0
  %1652 = vmatprep.subr.mxu0 0.0
  %1653 = vmatpush1.msra.mxu0 0.0
  %1654 = vmatprep.subr.mxu0 0.0
  %1655 = vmatpush1.msra.mxu0 0.0
  %1656 = vmatprep.subr.mxu0 0.0
  %1657 = vmatpush1.msra.mxu0 0.0
  %1658 = vmatprep.mubr.f32.mxu0 0.0
  %1659 = vmatmul.mubr.f32.gmra.mrb[0].mxu0 %v129
  %v1660 = vpop.f32.mrb[0].mxu0
  %v1661 = vadd.f32 %v1589, %v1660
  %v1662 = vpop.f32.mrb[0].mxu0
  %1663 = vmatprep.mubr.f32.mxu0 0.0
  %1664 = vmatmul.mubr.f32.gmra.mrb[0].mxu0 %v132
  %v1665 = vpop.f32.mrb[0].mxu0
  %v1666 = vadd.f32 %v1590, %v1665
  %v1667 = vpop.f32.mrb[0].mxu0
  %1668 = vdwg.mxu0
  %v1669 = vsel %vm118, %v1661, 0.0
  %1670 = vadd.xlane.f32.xlu0 %v1669
  %v1671 = vpop.xlane.xlu0 %1670
  %v1672 = vsel %vm118, %v1666, 0.0
  %1673 = vadd.xlane.f32.xlu0 %v1672
  %v1674 = vpop.xlane.xlu0 %1673
  %v1675 = vmul.f32 %v1671, %v125
  %v1676 = vmul.f32 %v1674, %v125
  %v1678 = vsel %vm118, %v1661, 0
  %v1681 = vsel %vm118, %v1666, 0
  %1683 = vmatprep.subr.mxu0 0.0
  %1684 = vmatpush1.msra.mxu0 %v136
  %1685 = vmatprep.subr.mxu0 0.0
  %1686 = vmatpush1.msra.mxu0 0.0
  %1687 = vmatprep.subr.mxu0 0.0
  %1688 = vmatpush1.msra.mxu0 0.0
  %1689 = vmatprep.subr.mxu0 0.0
  %1690 = vmatpush1.msra.mxu0 0.0
  %1691 = vmatprep.subr.mxu0 0.0
  %1692 = vmatpush1.msra.mxu0 0.0
  %1693 = vmatprep.subr.mxu0 0.0
  %1694 = vmatpush1.msra.mxu0 0.0
  %1695 = vmatprep.subr.mxu0 0.0
  %1696 = vmatpush1.msra.mxu0 0.0
  %1697 = vmatprep.subr.mxu0 0.0
  %1698 = vmatpush1.msra.mxu0 0.0
  %1699 = vmatprep.subr.mxu0 0.0
  %1700 = vmatpush1.msra.mxu0 0.0
  %1701 = vmatprep.subr.mxu0 0.0
  %1702 = vmatpush1.msra.mxu0 0.0
  %1703 = vmatprep.subr.mxu0 0.0
  %1704 = vmatpush1.msra.mxu0 0.0
  %1705 = vmatprep.subr.mxu0 0.0
  %1706 = vmatpush1.msra.mxu0 0.0
  %1707 = vmatprep.subr.mxu0 0.0
  %1708 = vmatpush1.msra.mxu0 0.0
  %1709 = vmatprep.subr.mxu0 0.0
  %1710 = vmatpush1.msra.mxu0 0.0
  %1711 = vmatprep.subr.mxu0 0.0
  %1712 = vmatpush1.msra.mxu0 0.0
  %1713 = vmatprep.subr.mxu0 0.0
  %1714 = vmatpush1.msra.mxu0 0.0
  %1715 = vmatprep.subr.mxu0 0.0
  %1716 = vmatpush1.msra.mxu0 0.0
  %1717 = vmatprep.subr.mxu0 0.0
  %1718 = vmatpush1.msra.mxu0 0.0
  %1719 = vmatprep.subr.mxu0 0.0
  %1720 = vmatpush1.msra.mxu0 0.0
  %1721 = vmatprep.subr.mxu0 0.0
  %1722 = vmatpush1.msra.mxu0 0.0
  %1723 = vmatprep.subr.mxu0 0.0
  %1724 = vmatpush1.msra.mxu0 0.0
  %1725 = vmatprep.subr.mxu0 0.0
  %1726 = vmatpush1.msra.mxu0 0.0
  %1727 = vmatprep.subr.mxu0 0.0
  %1728 = vmatpush1.msra.mxu0 0.0
  %1729 = vmatprep.subr.mxu0 0.0
  %1730 = vmatpush1.msra.mxu0 0.0
  %1731 = vmatprep.subr.mxu0 0.0
  %1732 = vmatpush1.msra.mxu0 0.0
  %1733 = vmatprep.subr.mxu0 0.0
  %1734 = vmatpush1.msra.mxu0 0.0
  %1735 = vmatprep.subr.mxu0 0.0
  %1736 = vmatpush1.msra.mxu0 0.0
  %1737 = vmatprep.subr.mxu0 0.0
  %1738 = vmatpush1.msra.mxu0 0.0
  %1739 = vmatprep.subr.mxu0 0.0
  %1740 = vmatpush1.msra.mxu0 0.0
  %1741 = vmatprep.subr.mxu0 0.0
  %1742 = vmatpush1.msra.mxu0 0.0
  %1743 = vmatprep.subr.mxu0 0.0
  %1744 = vmatpush1.msra.mxu0 0.0
  %1745 = vmatprep.subr.mxu0 0.0
  %1746 = vmatpush1.msra.mxu0 0.0
  %1747 = vmatprep.mubr.f32.mxu0 0.0
  %1748 = vmatmul.mubr.f32.gmra.mrb[0].mxu0 %v1678
  %v1749 = vpop.f32.mrb[0].mxu0
  %v1750 = vadd.f32 0.0, %v1749
  %v1751 = vpop.f32.mrb[0].mxu0
  %1752 = vmatprep.mubr.f32.mxu0 0.0
  %1753 = vmatmul.mubr.f32.gmra.mrb[0].mxu0 %v1681
  %v1754 = vpop.f32.mrb[0].mxu0
  %v1755 = vadd.f32 0.0, %v1754
  %v1756 = vpop.f32.mrb[0].mxu0
  %1757 = vdwg.mxu0
  %1758 = vmatprep.subr.mxu0 0.0
  %1759 = vmatpush1.msra.mxu0 %v214
  %1760 = vmatprep.subr.mxu0 0.0
  %1761 = vmatpush1.msra.mxu0 0.0
  %1762 = vmatprep.subr.mxu0 0.0
  %1763 = vmatpush1.msra.mxu0 0.0
  %1764 = vmatprep.subr.mxu0 0.0
  %1765 = vmatpush1.msra.mxu0 0.0
  %1766 = vmatprep.subr.mxu0 0.0
  %1767 = vmatpush1.msra.mxu0 0.0
  %1768 = vmatprep.subr.mxu0 0.0
  %1769 = vmatpush1.msra.mxu0 0.0
  %1770 = vmatprep.subr.mxu0 0.0
  %1771 = vmatpush1.msra.mxu0 0.0
  %1772 = vmatprep.subr.mxu0 0.0
  %1773 = vmatpush1.msra.mxu0 0.0
  %1774 = vmatprep.subr.mxu0 0.0
  %1775 = vmatpush1.msra.mxu0 0.0
  %1776 = vmatprep.subr.mxu0 0.0
  %1777 = vmatpush1.msra.mxu0 0.0
  %1778 = vmatprep.subr.mxu0 0.0
  %1779 = vmatpush1.msra.mxu0 0.0
  %1780 = vmatprep.subr.mxu0 0.0
  %1781 = vmatpush1.msra.mxu0 0.0
  %1782 = vmatprep.subr.mxu0 0.0
  %1783 = vmatpush1.msra.mxu0 0.0
  %1784 = vmatprep.subr.mxu0 0.0
  %1785 = vmatpush1.msra.mxu0 0.0
  %1786 = vmatprep.subr.mxu0 0.0
  %1787 = vmatpush1.msra.mxu0 0.0
  %1788 = vmatprep.subr.mxu0 0.0
  %1789 = vmatpush1.msra.mxu0 0.0
  %1790 = vmatprep.subr.mxu0 0.0
  %1791 = vmatpush1.msra.mxu0 0.0
  %1792 = vmatprep.subr.mxu0 0.0
  %1793 = vmatpush1.msra.mxu0 0.0
  %1794 = vmatprep.subr.mxu0 0.0
  %1795 = vmatpush1.msra.mxu0 0.0
  %1796 = vmatprep.subr.mxu0 0.0
  %1797 = vmatpush1.msra.mxu0 0.0
  %1798 = vmatprep.subr.mxu0 0.0
  %1799 = vmatpush1.msra.mxu0 0.0
  %1800 = vmatprep.subr.mxu0 0.0
  %1801 = vmatpush1.msra.mxu0 0.0
  %1802 = vmatprep.subr.mxu0 0.0
  %1803 = vmatpush1.msra.mxu0 0.0
  %1804 = vmatprep.subr.mxu0 0.0
  %1805 = vmatpush1.msra.mxu0 0.0
  %1806 = vmatprep.subr.mxu0 0.0
  %1807 = vmatpush1.msra.mxu0 0.0
  %1808 = vmatprep.subr.mxu0 0.0
  %1809 = vmatpush1.msra.mxu0 0.0
  %1810 = vmatprep.subr.mxu0 0.0
  %1811 = vmatpush1.msra.mxu0 0.0
  %1812 = vmatprep.subr.mxu0 0.0
  %1813 = vmatpush1.msra.mxu0 0.0
  %1814 = vmatprep.subr.mxu0 0.0
  %1815 = vmatpush1.msra.mxu0 0.0
  %1816 = vmatprep.subr.mxu0 0.0
  %1817 = vmatpush1.msra.mxu0 0.0
  %1818 = vmatprep.subr.mxu0 0.0
  %1819 = vmatpush1.msra.mxu0 0.0
  %1820 = vmatprep.subr.mxu0 0.0
  %1821 = vmatpush1.msra.mxu0 0.0
  %1822 = vmatprep.mubr.f32.mxu0 0.0
  %1823 = vmatmul.mubr.f32.gmra.mrb[0].mxu0 %v1678
  %v1824 = vpop.f32.mrb[0].mxu0
  %v1825 = vadd.f32 0.0, %v1824
  %v1826 = vpop.f32.mrb[0].mxu0
  %1827 = vmatprep.mubr.f32.mxu0 0.0
  %1828 = vmatmul.mubr.f32.gmra.mrb[0].mxu0 %v1681
  %v1829 = vpop.f32.mrb[0].mxu0
  %v1830 = vadd.f32 0.0, %v1829
  %v1831 = vpop.f32.mrb[0].mxu0
  %1832 = vdwg.mxu0
  %1833 = vmatprep.subr.mxu0 0.0
  %1834 = vmatpush1.xpose.msra.mxu0 %v1678
  %1835 = vmatprep.subr.mxu0 0.0
  %1836 = vmatpush1.xpose.msra.mxu0 %v1681
  %1837 = vmatprep.subr.mxu0 0.0
  %1838 = vmatpush1.xpose.msra.mxu0 0.0
  %1839 = vmatprep.subr.mxu0 0.0
  %1840 = vmatpush1.xpose.msra.mxu0 0.0
  %1841 = vmatprep.subr.mxu0 0.0
  %1842 = vmatpush1.xpose.msra.mxu0 0.0
  %1843 = vmatprep.subr.mxu0 0.0
  %1844 = vmatpush1.xpose.msra.mxu0 0.0
  %1845 = vmatprep.subr.mxu0 0.0
  %1846 = vmatpush1.xpose.msra.mxu0 0.0
  %1847 = vmatprep.subr.mxu0 0.0
  %1848 = vmatpush1.xpose.msra.mxu0 0.0
  %1849 = vmatprep.subr.mxu0 0.0
  %1850 = vmatpush1.xpose.msra.mxu0 0.0
  %1851 = vmatprep.subr.mxu0 0.0
  %1852 = vmatpush1.xpose.msra.mxu0 0.0
  %1853 = vmatprep.subr.mxu0 0.0
  %1854 = vmatpush1.xpose.msra.mxu0 0.0
  %1855 = vmatprep.subr.mxu0 0.0
  %1856 = vmatpush1.xpose.msra.mxu0 0.0
  %1857 = vmatprep.subr.mxu0 0.0
  %1858 = vmatpush1.xpose.msra.mxu0 0.0
  %1859 = vmatprep.subr.mxu0 0.0
  %1860 = vmatpush1.xpose.msra.mxu0 0.0
  %1861 = vmatprep.subr.mxu0 0.0
  %1862 = vmatpush1.xpose.msra.mxu0 0.0
  %1863 = vmatprep.subr.mxu0 0.0
  %1864 = vmatpush1.xpose.msra.mxu0 0.0
  %1865 = vmatprep.subr.mxu0 0.0
  %1866 = vmatpush1.xpose.msra.mxu0 0.0
  %1867 = vmatprep.subr.mxu0 0.0
  %1868 = vmatpush1.xpose.msra.mxu0 0.0
  %1869 = vmatprep.subr.mxu0 0.0
  %1870 = vmatpush1.xpose.msra.mxu0 0.0
  %1871 = vmatprep.subr.mxu0 0.0
  %1872 = vmatpush1.xpose.msra.mxu0 0.0
  %1873 = vmatprep.subr.mxu0 0.0
  %1874 = vmatpush1.xpose.msra.mxu0 0.0
  %1875 = vmatprep.subr.mxu0 0.0
  %1876 = vmatpush1.xpose.msra.mxu0 0.0
  %1877 = vmatprep.subr.mxu0 0.0
  %1878 = vmatpush1.xpose.msra.mxu0 0.0
  %1879 = vmatprep.subr.mxu0 0.0
  %1880 = vmatpush1.xpose.msra.mxu0 0.0
  %1881 = vmatprep.subr.mxu0 0.0
  %1882 = vmatpush1.xpose.msra.mxu0 0.0
  %1883 = vmatprep.subr.mxu0 0.0
  %1884 = vmatpush1.xpose.msra.mxu0 0.0
  %1885 = vmatprep.subr.mxu0 0.0
  %1886 = vmatpush1.xpose.msra.mxu0 0.0
  %1887 = vmatprep.subr.mxu0 0.0
  %1888 = vmatpush1.xpose.msra.mxu0 0.0
  %1889 = vmatprep.subr.mxu0 0.0
  %1890 = vmatpush1.xpose.msra.mxu0 0.0
  %1891 = vmatprep.subr.mxu0 0.0
  %1892 = vmatpush1.xpose.msra.mxu0 0.0
  %1893 = vmatprep.subr.mxu0 0.0
  %1894 = vmatpush1.xpose.msra.mxu0 0.0
  %1895 = vmatprep.subr.mxu0 0.0
  %1896 = vmatpush1.xpose.msra.mxu0 0.0
  %1897 = vmatprep.mubr.f32.mxu0 0.0
  %1898 = vmatmul.mubr.f32.gmra.mrb[0].mxu0 %v291
  %v1899 = vpop.f32.mrb[0].mxu0
  %v1900 = vadd.f32 0.0, %v1899
  %v1901 = vpop.f32.mrb[0].mxu0
  %1902 = vmatprep.mubr.f32.mxu0 0.0
  %1903 = vmatmul.mubr.f32.gmra.mrb[0].mxu0 %v291
  %v1904 = vpop.f32.mrb[0].mxu0
  %v1905 = vadd.f32 0.0, %v1904
  %v1906 = vpop.f32.mrb[0].mxu0
  %1907 = vdwg.mxu0
  %1909 = vset.pattern.permute.xlu0 0
  %1910 = vperm.xlu0 %1909, %v1825
  %v1911 = vpop.permute.xlu0 %1910
  %1914 = vset.pattern.permute.xlu0 0
  %1915 = vperm.xlu0 %1914, %v1830
  %v1916 = vpop.permute.xlu0 %1915
  %v1918 = vadd.f32 %v1911, %v1900
  %v1919 = vadd.f32 %v1916, %v1905
  %vm1920 = vcmp.ge.f32.partialorder %v1918, 0.0
  %vm1921 = vcmp.ge.f32.partialorder %v1919, 0.0
  %v1922 = vmul.f32 %v1918, 0.2
  %v1923 = vmul.f32 %v1919, 0.2
  %v1924 = vsel %vm1920, %v1918, %v1922
  %v1925 = vsel %vm1921, %v1919, %v1923
  %v1926 = vadd.f32 %v1924, %v68
  %v1927 = vadd.f32 %v1925, %v69
  %v1928 = vsel %vm388, %v1926, -inf
  %1929 = vmax.xlane.f32.xlu0 %v1928
  %v1930 = vpop.xlane.xlu0 %1929
  %v1931 = vsel %vm388, %v1927, -inf
  %1932 = vmax.xlane.f32.xlu0 %v1931
  %v1933 = vpop.xlane.xlu0 %1932
  %v1934 = vsub.f32 %v1926, %v1930
  %v1935 = vsub.f32 %v1927, %v1933
  %v1936 = vmul.f32 %v1934, 1.442695
  %v1937 = vpow.pop %v1936
  %v1938 = vmul.f32 %v1935, 1.442695
  %v1939 = vpow.pop %v1938
  %v1940 = vsel %vm388, %v1937, 0.0
  %1941 = vadd.xlane.f32.xlu0 %v1940
  %v1942 = vpop.xlane.xlu0 %1941
  %v1943 = vsel %vm388, %v1939, 0.0
  %1944 = vadd.xlane.f32.xlu0 %v1943
  %v1945 = vpop.xlane.xlu0 %1944
  %v1946 = vrcp.pop %v1942
  %v1947 = vrcp.pop %v1945
  %v1948 = vmul.f32 %v1937, %v1946
  %v1949 = vmul.f32 %v1939, %v1947
  %v1951 = vsel %vm388, %v1948, 0
  %v1954 = vsel %vm388, %v1949, 0
  %1956 = vmatprep.subr.mxu0 0.0
  %1957 = vmatpush1.msra.mxu0 %v1750
  %1958 = vmatprep.subr.mxu0 0.0
  %1959 = vmatpush1.msra.mxu0 %v1755
  %1960 = vmatprep.subr.mxu0 0.0
  %1961 = vmatpush1.msra.mxu0 0.0
  %1962 = vmatprep.subr.mxu0 0.0
  %1963 = vmatpush1.msra.mxu0 0.0
  %1964 = vmatprep.subr.mxu0 0.0
  %1965 = vmatpush1.msra.mxu0 0.0
  %1966 = vmatprep.subr.mxu0 0.0
  %1967 = vmatpush1.msra.mxu0 0.0
  %1968 = vmatprep.subr.mxu0 0.0
  %1969 = vmatpush1.msra.mxu0 0.0
  %1970 = vmatprep.subr.mxu0 0.0
  %1971 = vmatpush1.msra.mxu0 0.0
  %1972 = vmatprep.subr.mxu0 0.0
  %1973 = vmatpush1.msra.mxu0 0.0
  %1974 = vmatprep.subr.mxu0 0.0
  %1975 = vmatpush1.msra.mxu0 0.0
  %1976 = vmatprep.subr.mxu0 0.0
  %1977 = vmatpush1.msra.mxu0 0.0
  %1978 = vmatprep.subr.mxu0 0.0
  %1979 = vmatpush1.msra.mxu0 0.0
  %1980 = vmatprep.subr.mxu0 0.0
  %1981 = vmatpush1.msra.mxu0 0.0
  %1982 = vmatprep.subr.mxu0 0.0
  %1983 = vmatpush1.msra.mxu0 0.0
  %1984 = vmatprep.subr.mxu0 0.0
  %1985 = vmatpush1.msra.mxu0 0.0
  %1986 = vmatprep.subr.mxu0 0.0
  %1987 = vmatpush1.msra.mxu0 0.0
  %1988 = vmatprep.subr.mxu0 0.0
  %1989 = vmatpush1.msra.mxu0 0.0
  %1990 = vmatprep.subr.mxu0 0.0
  %1991 = vmatpush1.msra.mxu0 0.0
  %1992 = vmatprep.subr.mxu0 0.0
  %1993 = vmatpush1.msra.mxu0 0.0
  %1994 = vmatprep.subr.mxu0 0.0
  %1995 = vmatpush1.msra.mxu0 0.0
  %1996 = vmatprep.subr.mxu0 0.0
  %1997 = vmatpush1.msra.mxu0 0.0
  %1998 = vmatprep.subr.mxu0 0.0
  %1999 = vmatpush1.msra.mxu0 0.0
  %2000 = vmatprep.subr.mxu0 0.0
  %2001 = vmatpush1.msra.mxu0 0.0
  %2002 = vmatprep.subr.mxu0 0.0
  %2003 = vmatpush1.msra.mxu0 0.0
  %2004 = vmatprep.subr.mxu0 0.0
  %2005 = vmatpush1.msra.mxu0 0.0
  %2006 = vmatprep.subr.mxu0 0.0
  %2007 = vmatpush1.msra.mxu0 0.0
  %2008 = vmatprep.subr.mxu0 0.0
  %2009 = vmatpush1.msra.mxu0 0.0
  %2010 = vmatprep.subr.mxu0 0.0
  %2011 = vmatpush1.msra.mxu0 0.0
  %2012 = vmatprep.subr.mxu0 0.0
  %2013 = vmatpush1.msra.mxu0 0.0
  %2014 = vmatprep.subr.mxu0 0.0
  %2015 = vmatpush1.msra.mxu0 0.0
  %2016 = vmatprep.subr.mxu0 0.0
  %2017 = vmatpush1.msra.mxu0 0.0
  %2018 = vmatprep.subr.mxu0 0.0
  %2019 = vmatpush1.msra.mxu0 0.0
  %2020 = vmatprep.mubr.f32.mxu0 0.0
  %2021 = vmatmul.mubr.f32.gmra.mrb[0].mxu0 %v1951
  %v2022 = vpop.f32.mrb[0].mxu0
  %v2023 = vadd.f32 %v415, %v2022
  %v2024 = vpop.f32.mrb[0].mxu0
  %2025 = vmatprep.mubr.f32.mxu0 0.0
  %2026 = vmatmul.mubr.f32.gmra.mrb[0].mxu0 %v1954
  %v2027 = vpop.f32.mrb[0].mxu0
  %v2028 = vadd.f32 %v415, %v2027
  %v2029 = vpop.f32.mrb[0].mxu0
  %2030 = vdwg.mxu0
  %vm2031 = vcmp.ge.f32.partialorder %v2023, 0.0
  %vm2032 = vcmp.ge.f32.partialorder %v2028, 0.0
  %v2033 = vmul.f32 %v2023, 0.01
  %v2034 = vmul.f32 %v2028, 0.01
  %v2035 = vsel %vm2031, %v2023, %v2033
  %v2036 = vsel %vm2032, %v2028, %v2034
  %v2038 = vsel %vm504, %v2035, 0
  %v2041 = vsel %vm504, %v2036, 0
  %2043 = vmatprep.subr.mxu0 0.0
  %2044 = vmatpush1.msra.mxu0 %v84
  %2045 = vmatprep.subr.mxu0 0.0
  %2046 = vmatpush1.msra.mxu0 0.0
  %2047 = vmatprep.subr.mxu0 0.0
  %2048 = vmatpush1.msra.mxu0 0.0
  %2049 = vmatprep.subr.mxu0 0.0
  %2050 = vmatpush1.msra.mxu0 0.0
  %2051 = vmatprep.subr.mxu0 0.0
  %2052 = vmatpush1.msra.mxu0 0.0
  %2053 = vmatprep.subr.mxu0 0.0
  %2054 = vmatpush1.msra.mxu0 0.0
  %2055 = vmatprep.subr.mxu0 0.0
  %2056 = vmatpush1.msra.mxu0 0.0
  %2057 = vmatprep.subr.mxu0 0.0
  %2058 = vmatpush1.msra.mxu0 0.0
  %2059 = vmatprep.subr.mxu0 0.0
  %2060 = vmatpush1.msra.mxu0 0.0
  %2061 = vmatprep.subr.mxu0 0.0
  %2062 = vmatpush1.msra.mxu0 0.0
  %2063 = vmatprep.subr.mxu0 0.0
  %2064 = vmatpush1.msra.mxu0 0.0
  %2065 = vmatprep.subr.mxu0 0.0
  %2066 = vmatpush1.msra.mxu0 0.0
  %2067 = vmatprep.subr.mxu0 0.0
  %2068 = vmatpush1.msra.mxu0 0.0
  %2069 = vmatprep.subr.mxu0 0.0
  %2070 = vmatpush1.msra.mxu0 0.0
  %2071 = vmatprep.subr.mxu0 0.0
  %2072 = vmatpush1.msra.mxu0 0.0
  %2073 = vmatprep.subr.mxu0 0.0
  %2074 = vmatpush1.msra.mxu0 0.0
  %2075 = vmatprep.subr.mxu0 0.0
  %2076 = vmatpush1.msra.mxu0 0.0
  %2077 = vmatprep.subr.mxu0 0.0
  %2078 = vmatpush1.msra.mxu0 0.0
  %2079 = vmatprep.subr.mxu0 0.0
  %2080 = vmatpush1.msra.mxu0 0.0
  %2081 = vmatprep.subr.mxu0 0.0
  %2082 = vmatpush1.msra.mxu0 0.0
  %2083 = vmatprep.subr.mxu0 0.0
  %2084 = vmatpush1.msra.mxu0 0.0
  %2085 = vmatprep.subr.mxu0 0.0
  %2086 = vmatpush1.msra.mxu0 0.0
  %2087 = vmatprep.subr.mxu0 0.0
  %2088 = vmatpush1.msra.mxu0 0.0
  %2089 = vmatprep.subr.mxu0 0.0
  %2090 = vmatpush1.msra.mxu0 0.0
  %2091 = vmatprep.subr.mxu0 0.0
  %2092 = vmatpush1.msra.mxu0 0.0
  %2093 = vmatprep.subr.mxu0 0.0
  %2094 = vmatpush1.msra.mxu0 0.0
  %2095 = vmatprep.subr.mxu0 0.0
  %2096 = vmatpush1.msra.mxu0 0.0
  %2097 = vmatprep.subr.mxu0 0.0
  %2098 = vmatpush1.msra.mxu0 0.0
  %2099 = vmatprep.subr.mxu0 0.0
  %2100 = vmatpush1.msra.mxu0 0.0
  %2101 = vmatprep.subr.mxu0 0.0
  %2102 = vmatpush1.msra.mxu0 0.0
  %2103 = vmatprep.subr.mxu0 0.0
  %2104 = vmatpush1.msra.mxu0 0.0
  %2105 = vmatprep.subr.mxu0 0.0
  %2106 = vmatpush1.msra.mxu0 0.0
  %2107 = vmatprep.mubr.f32.mxu0 0.0
  %2108 = vmatmul.mubr.f32.gmra.mrb[0].mxu0 %v2038
  %v2109 = vpop.f32.mrb[0].mxu0
  %v2110 = vadd.f32 0.0, %v2109
  %v2111 = vpop.f32.mrb[0].mxu0
  %2112 = vmatprep.mubr.f32.mxu0 0.0
  %2113 = vmatmul.mubr.f32.gmra.mrb[0].mxu0 %v2041
  %v2114 = vpop.f32.mrb[0].mxu0
  %v2115 = vadd.f32 0.0, %v2114
  %v2116 = vpop.f32.mrb[0].mxu0
  %2117 = vdwg.mxu0
  %2118 = vmatprep.subr.mxu0 0.0
  %2119 = vmatpush1.msra.mxu0 %v85
  %2120 = vmatprep.subr.mxu0 0.0
  %2121 = vmatpush1.msra.mxu0 0.0
  %2122 = vmatprep.subr.mxu0 0.0
  %2123 = vmatpush1.msra.mxu0 0.0
  %2124 = vmatprep.subr.mxu0 0.0
  %2125 = vmatpush1.msra.mxu0 0.0
  %2126 = vmatprep.subr.mxu0 0.0
  %2127 = vmatpush1.msra.mxu0 0.0
  %2128 = vmatprep.subr.mxu0 0.0
  %2129 = vmatpush1.msra.mxu0 0.0
  %2130 = vmatprep.subr.mxu0 0.0
  %2131 = vmatpush1.msra.mxu0 0.0
  %2132 = vmatprep.subr.mxu0 0.0
  %2133 = vmatpush1.msra.mxu0 0.0
  %2134 = vmatprep.subr.mxu0 0.0
  %2135 = vmatpush1.msra.mxu0 0.0
  %2136 = vmatprep.subr.mxu0 0.0
  %2137 = vmatpush1.msra.mxu0 0.0
  %2138 = vmatprep.subr.mxu0 0.0
  %2139 = vmatpush1.msra.mxu0 0.0
  %2140 = vmatprep.subr.mxu0 0.0
  %2141 = vmatpush1.msra.mxu0 0.0
  %2142 = vmatprep.subr.mxu0 0.0
  %2143 = vmatpush1.msra.mxu0 0.0
  %2144 = vmatprep.subr.mxu0 0.0
  %2145 = vmatpush1.msra.mxu0 0.0
  %2146 = vmatprep.subr.mxu0 0.0
  %2147 = vmatpush1.msra.mxu0 0.0
  %2148 = vmatprep.subr.mxu0 0.0
  %2149 = vmatpush1.msra.mxu0 0.0
  %2150 = vmatprep.subr.mxu0 0.0
  %2151 = vmatpush1.msra.mxu0 0.0
  %2152 = vmatprep.subr.mxu0 0.0
  %2153 = vmatpush1.msra.mxu0 0.0
  %2154 = vmatprep.subr.mxu0 0.0
  %2155 = vmatpush1.msra.mxu0 0.0
  %2156 = vmatprep.subr.mxu0 0.0
  %2157 = vmatpush1.msra.mxu0 0.0
  %2158 = vmatprep.subr.mxu0 0.0
  %2159 = vmatpush1.msra.mxu0 0.0
  %2160 = vmatprep.subr.mxu0 0.0
  %2161 = vmatpush1.msra.mxu0 0.0
  %2162 = vmatprep.subr.mxu0 0.0
  %2163 = vmatpush1.msra.mxu0 0.0
  %2164 = vmatprep.subr.mxu0 0.0
  %2165 = vmatpush1.msra.mxu0 0.0
  %2166 = vmatprep.subr.mxu0 0.0
  %2167 = vmatpush1.msra.mxu0 0.0
  %2168 = vmatprep.subr.mxu0 0.0
  %2169 = vmatpush1.msra.mxu0 0.0
  %2170 = vmatprep.subr.mxu0 0.0
  %2171 = vmatpush1.msra.mxu0 0.0
  %2172 = vmatprep.subr.mxu0 0.0
  %2173 = vmatpush1.msra.mxu0 0.0
  %2174 = vmatprep.subr.mxu0 0.0
  %2175 = vmatpush1.msra.mxu0 0.0
  %2176 = vmatprep.subr.mxu0 0.0
  %2177 = vmatpush1.msra.mxu0 0.0
  %2178 = vmatprep.subr.mxu0 0.0
  %2179 = vmatpush1.msra.mxu0 0.0
  %2180 = vmatprep.subr.mxu0 0.0
  %2181 = vmatpush1.msra.mxu0 0.0
  %2182 = vmatprep.mubr.f32.mxu0 0.0
  %2183 = vmatmul.mubr.f32.gmra.mrb[0].mxu0 %v2038
  %v2184 = vpop.f32.mrb[0].mxu0
  %v2185 = vadd.f32 0.0, %v2184
  %v2186 = vpop.f32.mrb[0].mxu0
  %2187 = vmatprep.mubr.f32.mxu0 0.0
  %2188 = vmatmul.mubr.f32.gmra.mrb[0].mxu0 %v2041
  %v2189 = vpop.f32.mrb[0].mxu0
  %v2190 = vadd.f32 0.0, %v2189
  %v2191 = vpop.f32.mrb[0].mxu0
  %2192 = vdwg.mxu0
  %2193 = vmatprep.subr.mxu0 0.0
  %2194 = vmatpush1.xpose.msra.mxu0 %v2038
  %2195 = vmatprep.subr.mxu0 0.0
  %2196 = vmatpush1.xpose.msra.mxu0 %v2041
  %2197 = vmatprep.subr.mxu0 0.0
  %2198 = vmatpush1.xpose.msra.mxu0 0.0
  %2199 = vmatprep.subr.mxu0 0.0
  %2200 = vmatpush1.xpose.msra.mxu0 0.0
  %2201 = vmatprep.subr.mxu0 0.0
  %2202 = vmatpush1.xpose.msra.mxu0 0.0
  %2203 = vmatprep.subr.mxu0 0.0
  %2204 = vmatpush1.xpose.msra.mxu0 0.0
  %2205 = vmatprep.subr.mxu0 0.0
  %2206 = vmatpush1.xpose.msra.mxu0 0.0
  %2207 = vmatprep.subr.mxu0 0.0
  %2208 = vmatpush1.xpose.msra.mxu0 0.0
  %2209 = vmatprep.subr.mxu0 0.0
  %2210 = vmatpush1.xpose.msra.mxu0 0.0
  %2211 = vmatprep.subr.mxu0 0.0
  %2212 = vmatpush1.xpose.msra.mxu0 0.0
  %2213 = vmatprep.subr.mxu0 0.0
  %2214 = vmatpush1.xpose.msra.mxu0 0.0
  %2215 = vmatprep.subr.mxu0 0.0
  %2216 = vmatpush1.xpose.msra.mxu0 0.0
  %2217 = vmatprep.subr.mxu0 0.0
  %2218 = vmatpush1.xpose.msra.mxu0 0.0
  %2219 = vmatprep.subr.mxu0 0.0
  %2220 = vmatpush1.xpose.msra.mxu0 0.0
  %2221 = vmatprep.subr.mxu0 0.0
  %2222 = vmatpush1.xpose.msra.mxu0 0.0
  %2223 = vmatprep.subr.mxu0 0.0
  %2224 = vmatpush1.xpose.msra.mxu0 0.0
  %2225 = vmatprep.subr.mxu0 0.0
  %2226 = vmatpush1.xpose.msra.mxu0 0.0
  %2227 = vmatprep.subr.mxu0 0.0
  %2228 = vmatpush1.xpose.msra.mxu0 0.0
  %2229 = vmatprep.subr.mxu0 0.0
  %2230 = vmatpush1.xpose.msra.mxu0 0.0
  %2231 = vmatprep.subr.mxu0 0.0
  %2232 = vmatpush1.xpose.msra.mxu0 0.0
  %2233 = vmatprep.subr.mxu0 0.0
  %2234 = vmatpush1.xpose.msra.mxu0 0.0
  %2235 = vmatprep.subr.mxu0 0.0
  %2236 = vmatpush1.xpose.msra.mxu0 0.0
  %2237 = vmatprep.subr.mxu0 0.0
  %2238 = vmatpush1.xpose.msra.mxu0 0.0
  %2239 = vmatprep.subr.mxu0 0.0
  %2240 = vmatpush1.xpose.msra.mxu0 0.0
  %2241 = vmatprep.subr.mxu0 0.0
  %2242 = vmatpush1.xpose.msra.mxu0 0.0
  %2243 = vmatprep.subr.mxu0 0.0
  %2244 = vmatpush1.xpose.msra.mxu0 0.0
  %2245 = vmatprep.subr.mxu0 0.0
  %2246 = vmatpush1.xpose.msra.mxu0 0.0
  %2247 = vmatprep.subr.mxu0 0.0
  %2248 = vmatpush1.xpose.msra.mxu0 0.0
  %2249 = vmatprep.subr.mxu0 0.0
  %2250 = vmatpush1.xpose.msra.mxu0 0.0
  %2251 = vmatprep.subr.mxu0 0.0
  %2252 = vmatpush1.xpose.msra.mxu0 0.0
  %2253 = vmatprep.subr.mxu0 0.0
  %2254 = vmatpush1.xpose.msra.mxu0 0.0
  %2255 = vmatprep.subr.mxu0 0.0
  %2256 = vmatpush1.xpose.msra.mxu0 0.0
  %2257 = vmatprep.mubr.f32.mxu0 0.0
  %2258 = vmatmul.mubr.f32.gmra.mrb[0].mxu0 %v661
  %v2259 = vpop.f32.mrb[0].mxu0
  %v2260 = vadd.f32 0.0, %v2259
  %v2261 = vpop.f32.mrb[0].mxu0
  %2262 = vmatprep.mubr.f32.mxu0 0.0
  %2263 = vmatmul.mubr.f32.gmra.mrb[0].mxu0 %v661
  %v2264 = vpop.f32.mrb[0].mxu0
  %v2265 = vadd.f32 0.0, %v2264
  %v2266 = vpop.f32.mrb[0].mxu0
  %2267 = vdwg.mxu0
  %2269 = vset.pattern.permute.xlu0 0
  %2270 = vperm.xlu0 %2269, %v2185
  %v2271 = vpop.permute.xlu0 %2270
  %2274 = vset.pattern.permute.xlu0 0
  %2275 = vperm.xlu0 %2274, %v2190
  %v2276 = vpop.permute.xlu0 %2275
  %v2278 = vadd.f32 %v2271, %v2260
  %v2279 = vadd.f32 %v2276, %v2265
  %vm2280 = vcmp.ge.f32.partialorder %v2278, 0.0
  %vm2281 = vcmp.ge.f32.partialorder %v2279, 0.0
  %v2282 = vmul.f32 %v2278, 0.2
  %v2283 = vmul.f32 %v2279, 0.2
  %v2284 = vsel %vm2280, %v2278, %v2282
  %v2285 = vsel %vm2281, %v2279, %v2283
  %v2286 = vadd.f32 %v2284, %v68
  %v2287 = vadd.f32 %v2285, %v69
  %v2288 = vsel %vm388, %v2286, -inf
  %2289 = vmax.xlane.f32.xlu0 %v2288
  %v2290 = vpop.xlane.xlu0 %2289
  %v2291 = vsel %vm388, %v2287, -inf
  %2292 = vmax.xlane.f32.xlu0 %v2291
  %v2293 = vpop.xlane.xlu0 %2292
  %v2294 = vsub.f32 %v2286, %v2290
  %v2295 = vsub.f32 %v2287, %v2293
  %v2296 = vmul.f32 %v2294, 1.442695
  %v2297 = vpow.pop %v2296
  %v2298 = vmul.f32 %v2295, 1.442695
  %v2299 = vpow.pop %v2298
  %v2300 = vsel %vm388, %v2297, 0.0
  %2301 = vadd.xlane.f32.xlu0 %v2300
  %v2302 = vpop.xlane.xlu0 %2301
  %v2303 = vsel %vm388, %v2299, 0.0
  %2304 = vadd.xlane.f32.xlu0 %v2303
  %v2305 = vpop.xlane.xlu0 %2304
  %v2306 = vrcp.pop %v2302
  %v2307 = vrcp.pop %v2305
  %v2308 = vmul.f32 %v2297, %v2306
  %v2309 = vmul.f32 %v2299, %v2307
  %v2311 = vsel %vm388, %v2308, 0
  %v2314 = vsel %vm388, %v2309, 0
  %2316 = vmatprep.subr.mxu0 0.0
  %2317 = vmatpush1.msra.mxu0 %v2110
  %2318 = vmatprep.subr.mxu0 0.0
  %2319 = vmatpush1.msra.mxu0 %v2115
  %2320 = vmatprep.subr.mxu0 0.0
  %2321 = vmatpush1.msra.mxu0 0.0
  %2322 = vmatprep.subr.mxu0 0.0
  %2323 = vmatpush1.msra.mxu0 0.0
  %2324 = vmatprep.subr.mxu0 0.0
  %2325 = vmatpush1.msra.mxu0 0.0
  %2326 = vmatprep.subr.mxu0 0.0
  %2327 = vmatpush1.msra.mxu0 0.0
  %2328 = vmatprep.subr.mxu0 0.0
  %2329 = vmatpush1.msra.mxu0 0.0
  %2330 = vmatprep.subr.mxu0 0.0
  %2331 = vmatpush1.msra.mxu0 0.0
  %2332 = vmatprep.subr.mxu0 0.0
  %2333 = vmatpush1.msra.mxu0 0.0
  %2334 = vmatprep.subr.mxu0 0.0
  %2335 = vmatpush1.msra.mxu0 0.0
  %2336 = vmatprep.subr.mxu0 0.0
  %2337 = vmatpush1.msra.mxu0 0.0
  %2338 = vmatprep.subr.mxu0 0.0
  %2339 = vmatpush1.msra.mxu0 0.0
  %2340 = vmatprep.subr.mxu0 0.0
  %2341 = vmatpush1.msra.mxu0 0.0
  %2342 = vmatprep.subr.mxu0 0.0
  %2343 = vmatpush1.msra.mxu0 0.0
  %2344 = vmatprep.subr.mxu0 0.0
  %2345 = vmatpush1.msra.mxu0 0.0
  %2346 = vmatprep.subr.mxu0 0.0
  %2347 = vmatpush1.msra.mxu0 0.0
  %2348 = vmatprep.subr.mxu0 0.0
  %2349 = vmatpush1.msra.mxu0 0.0
  %2350 = vmatprep.subr.mxu0 0.0
  %2351 = vmatpush1.msra.mxu0 0.0
  %2352 = vmatprep.subr.mxu0 0.0
  %2353 = vmatpush1.msra.mxu0 0.0
  %2354 = vmatprep.subr.mxu0 0.0
  %2355 = vmatpush1.msra.mxu0 0.0
  %2356 = vmatprep.subr.mxu0 0.0
  %2357 = vmatpush1.msra.mxu0 0.0
  %2358 = vmatprep.subr.mxu0 0.0
  %2359 = vmatpush1.msra.mxu0 0.0
  %2360 = vmatprep.subr.mxu0 0.0
  %2361 = vmatpush1.msra.mxu0 0.0
  %2362 = vmatprep.subr.mxu0 0.0
  %2363 = vmatpush1.msra.mxu0 0.0
  %2364 = vmatprep.subr.mxu0 0.0
  %2365 = vmatpush1.msra.mxu0 0.0
  %2366 = vmatprep.subr.mxu0 0.0
  %2367 = vmatpush1.msra.mxu0 0.0
  %2368 = vmatprep.subr.mxu0 0.0
  %2369 = vmatpush1.msra.mxu0 0.0
  %2370 = vmatprep.subr.mxu0 0.0
  %2371 = vmatpush1.msra.mxu0 0.0
  %2372 = vmatprep.subr.mxu0 0.0
  %2373 = vmatpush1.msra.mxu0 0.0
  %2374 = vmatprep.subr.mxu0 0.0
  %2375 = vmatpush1.msra.mxu0 0.0
  %2376 = vmatprep.subr.mxu0 0.0
  %2377 = vmatpush1.msra.mxu0 0.0
  %2378 = vmatprep.subr.mxu0 0.0
  %2379 = vmatpush1.msra.mxu0 0.0
  %2380 = vmatprep.mubr.f32.mxu0 0.0
  %2381 = vmatmul.mubr.f32.gmra.mrb[0].mxu0 %v2311
  %v2382 = vpop.f32.mrb[0].mxu0
  %v2383 = vadd.f32 %v784, %v2382
  %v2384 = vpop.f32.mrb[0].mxu0
  %2385 = vmatprep.mubr.f32.mxu0 0.0
  %2386 = vmatmul.mubr.f32.gmra.mrb[0].mxu0 %v2314
  %v2387 = vpop.f32.mrb[0].mxu0
  %v2388 = vadd.f32 %v784, %v2387
  %v2389 = vpop.f32.mrb[0].mxu0
  %2390 = vdwg.mxu0
  %vm2391 = vcmp.ge.f32.partialorder %v2383, 0.0
  %vm2392 = vcmp.ge.f32.partialorder %v2388, 0.0
  %v2393 = vmul.f32 %v2383, 0.01
  %v2394 = vmul.f32 %v2388, 0.01
  %v2395 = vsel %vm2391, %v2383, %v2393
  %v2396 = vsel %vm2392, %v2388, %v2394
  %2397 = vmatprep.subr.mxu0 0.0
  %2398 = vmatpush1.msra.mxu0 %v88
  %2399 = vmatprep.subr.mxu0 0.0
  %2400 = vmatpush1.msra.mxu0 0.0
  %2401 = vmatprep.subr.mxu0 0.0
  %2402 = vmatpush1.msra.mxu0 0.0
  %2403 = vmatprep.subr.mxu0 0.0
  %2404 = vmatpush1.msra.mxu0 0.0
  %2405 = vmatprep.subr.mxu0 0.0
  %2406 = vmatpush1.msra.mxu0 0.0
  %2407 = vmatprep.subr.mxu0 0.0
  %2408 = vmatpush1.msra.mxu0 0.0
  %2409 = vmatprep.subr.mxu0 0.0
  %2410 = vmatpush1.msra.mxu0 0.0
  %2411 = vmatprep.subr.mxu0 0.0
  %2412 = vmatpush1.msra.mxu0 0.0
  %2413 = vmatprep.subr.mxu0 0.0
  %2414 = vmatpush1.msra.mxu0 0.0
  %2415 = vmatprep.subr.mxu0 0.0
  %2416 = vmatpush1.msra.mxu0 0.0
  %2417 = vmatprep.subr.mxu0 0.0
  %2418 = vmatpush1.msra.mxu0 0.0
  %2419 = vmatprep.subr.mxu0 0.0
  %2420 = vmatpush1.msra.mxu0 0.0
  %2421 = vmatprep.subr.mxu0 0.0
  %2422 = vmatpush1.msra.mxu0 0.0
  %2423 = vmatprep.subr.mxu0 0.0
  %2424 = vmatpush1.msra.mxu0 0.0
  %2425 = vmatprep.subr.mxu0 0.0
  %2426 = vmatpush1.msra.mxu0 0.0
  %2427 = vmatprep.subr.mxu0 0.0
  %2428 = vmatpush1.msra.mxu0 0.0
  %2429 = vmatprep.subr.mxu0 0.0
  %2430 = vmatpush1.msra.mxu0 0.0
  %2431 = vmatprep.subr.mxu0 0.0
  %2432 = vmatpush1.msra.mxu0 0.0
  %2433 = vmatprep.subr.mxu0 0.0
  %2434 = vmatpush1.msra.mxu0 0.0
  %2435 = vmatprep.subr.mxu0 0.0
  %2436 = vmatpush1.msra.mxu0 0.0
  %2437 = vmatprep.subr.mxu0 0.0
  %2438 = vmatpush1.msra.mxu0 0.0
  %2439 = vmatprep.subr.mxu0 0.0
  %2440 = vmatpush1.msra.mxu0 0.0
  %2441 = vmatprep.subr.mxu0 0.0
  %2442 = vmatpush1.msra.mxu0 0.0
  %2443 = vmatprep.subr.mxu0 0.0
  %2444 = vmatpush1.msra.mxu0 0.0
  %2445 = vmatprep.subr.mxu0 0.0
  %2446 = vmatpush1.msra.mxu0 0.0
  %2447 = vmatprep.subr.mxu0 0.0
  %2448 = vmatpush1.msra.mxu0 0.0
  %2449 = vmatprep.subr.mxu0 0.0
  %2450 = vmatpush1.msra.mxu0 0.0
  %2451 = vmatprep.subr.mxu0 0.0
  %2452 = vmatpush1.msra.mxu0 0.0
  %2453 = vmatprep.subr.mxu0 0.0
  %2454 = vmatpush1.msra.mxu0 0.0
  %2455 = vmatprep.subr.mxu0 0.0
  %2456 = vmatpush1.msra.mxu0 0.0
  %2457 = vmatprep.subr.mxu0 0.0
  %2458 = vmatpush1.msra.mxu0 0.0
  %2459 = vmatprep.subr.mxu0 0.0
  %2460 = vmatpush1.msra.mxu0 0.0
  %2461 = vmatprep.mubr.f32.mxu0 0.0
  %2462 = vmatmul.mubr.f32.gmra.mrb[0].mxu0 %v2038
  %v2463 = vpop.f32.mrb[0].mxu0
  %v2464 = vadd.f32 0.0, %v2463
  %v2465 = vpop.f32.mrb[0].mxu0
  %2466 = vmatprep.mubr.f32.mxu0 0.0
  %2467 = vmatmul.mubr.f32.gmra.mrb[0].mxu0 %v2041
  %v2468 = vpop.f32.mrb[0].mxu0
  %v2469 = vadd.f32 0.0, %v2468
  %v2470 = vpop.f32.mrb[0].mxu0
  %2471 = vdwg.mxu0
  %2472 = vmatprep.subr.mxu0 0.0
  %2473 = vmatpush1.msra.mxu0 %v949
  %2474 = vmatprep.subr.mxu0 0.0
  %2475 = vmatpush1.msra.mxu0 0.0
  %2476 = vmatprep.subr.mxu0 0.0
  %2477 = vmatpush1.msra.mxu0 0.0
  %2478 = vmatprep.subr.mxu0 0.0
  %2479 = vmatpush1.msra.mxu0 0.0
  %2480 = vmatprep.subr.mxu0 0.0
  %2481 = vmatpush1.msra.mxu0 0.0
  %2482 = vmatprep.subr.mxu0 0.0
  %2483 = vmatpush1.msra.mxu0 0.0
  %2484 = vmatprep.subr.mxu0 0.0
  %2485 = vmatpush1.msra.mxu0 0.0
  %2486 = vmatprep.subr.mxu0 0.0
  %2487 = vmatpush1.msra.mxu0 0.0
  %2488 = vmatprep.subr.mxu0 0.0
  %2489 = vmatpush1.msra.mxu0 0.0
  %2490 = vmatprep.subr.mxu0 0.0
  %2491 = vmatpush1.msra.mxu0 0.0
  %2492 = vmatprep.subr.mxu0 0.0
  %2493 = vmatpush1.msra.mxu0 0.0
  %2494 = vmatprep.subr.mxu0 0.0
  %2495 = vmatpush1.msra.mxu0 0.0
  %2496 = vmatprep.subr.mxu0 0.0
  %2497 = vmatpush1.msra.mxu0 0.0
  %2498 = vmatprep.subr.mxu0 0.0
  %2499 = vmatpush1.msra.mxu0 0.0
  %2500 = vmatprep.subr.mxu0 0.0
  %2501 = vmatpush1.msra.mxu0 0.0
  %2502 = vmatprep.subr.mxu0 0.0
  %2503 = vmatpush1.msra.mxu0 0.0
  %2504 = vmatprep.subr.mxu0 0.0
  %2505 = vmatpush1.msra.mxu0 0.0
  %2506 = vmatprep.subr.mxu0 0.0
  %2507 = vmatpush1.msra.mxu0 0.0
  %2508 = vmatprep.subr.mxu0 0.0
  %2509 = vmatpush1.msra.mxu0 0.0
  %2510 = vmatprep.subr.mxu0 0.0
  %2511 = vmatpush1.msra.mxu0 0.0
  %2512 = vmatprep.subr.mxu0 0.0
  %2513 = vmatpush1.msra.mxu0 0.0
  %2514 = vmatprep.subr.mxu0 0.0
  %2515 = vmatpush1.msra.mxu0 0.0
  %2516 = vmatprep.subr.mxu0 0.0
  %2517 = vmatpush1.msra.mxu0 0.0
  %2518 = vmatprep.subr.mxu0 0.0
  %2519 = vmatpush1.msra.mxu0 0.0
  %2520 = vmatprep.subr.mxu0 0.0
  %2521 = vmatpush1.msra.mxu0 0.0
  %2522 = vmatprep.subr.mxu0 0.0
  %2523 = vmatpush1.msra.mxu0 0.0
  %2524 = vmatprep.subr.mxu0 0.0
  %2525 = vmatpush1.msra.mxu0 0.0
  %2526 = vmatprep.subr.mxu0 0.0
  %2527 = vmatpush1.msra.mxu0 0.0
  %2528 = vmatprep.subr.mxu0 0.0
  %2529 = vmatpush1.msra.mxu0 0.0
  %2530 = vmatprep.subr.mxu0 0.0
  %2531 = vmatpush1.msra.mxu0 0.0
  %2532 = vmatprep.subr.mxu0 0.0
  %2533 = vmatpush1.msra.mxu0 0.0
  %2534 = vmatprep.subr.mxu0 0.0
  %2535 = vmatpush1.msra.mxu0 0.0
  %2536 = vmatprep.mubr.f32.mxu0 0.0
  %2537 = vmatmul.mubr.f32.gmra.mrb[0].mxu0 %v1678
  %v2538 = vpop.f32.mrb[0].mxu0
  %v2539 = vadd.f32 %v2464, %v2538
  %v2540 = vpop.f32.mrb[0].mxu0
  %2541 = vmatprep.mubr.f32.mxu0 0.0
  %2542 = vmatmul.mubr.f32.gmra.mrb[0].mxu0 %v1681
  %v2543 = vpop.f32.mrb[0].mxu0
  %v2544 = vadd.f32 %v2469, %v2543
  %v2545 = vpop.f32.mrb[0].mxu0
  %2546 = vdwg.mxu0
  %v2548 = vsel %vm504, %v2395, 0
  %v2551 = vsel %vm504, %v2396, 0
  %2553 = vmatprep.subr.mxu0 0.0
  %2554 = vmatpush1.msra.mxu0 %v89
  %2555 = vmatprep.subr.mxu0 0.0
  %2556 = vmatpush1.msra.mxu0 0.0
  %2557 = vmatprep.subr.mxu0 0.0
  %2558 = vmatpush1.msra.mxu0 0.0
  %2559 = vmatprep.subr.mxu0 0.0
  %2560 = vmatpush1.msra.mxu0 0.0
  %2561 = vmatprep.subr.mxu0 0.0
  %2562 = vmatpush1.msra.mxu0 0.0
  %2563 = vmatprep.subr.mxu0 0.0
  %2564 = vmatpush1.msra.mxu0 0.0
  %2565 = vmatprep.subr.mxu0 0.0
  %2566 = vmatpush1.msra.mxu0 0.0
  %2567 = vmatprep.subr.mxu0 0.0
  %2568 = vmatpush1.msra.mxu0 0.0
  %2569 = vmatprep.subr.mxu0 0.0
  %2570 = vmatpush1.msra.mxu0 0.0
  %2571 = vmatprep.subr.mxu0 0.0
  %2572 = vmatpush1.msra.mxu0 0.0
  %2573 = vmatprep.subr.mxu0 0.0
  %2574 = vmatpush1.msra.mxu0 0.0
  %2575 = vmatprep.subr.mxu0 0.0
  %2576 = vmatpush1.msra.mxu0 0.0
  %2577 = vmatprep.subr.mxu0 0.0
  %2578 = vmatpush1.msra.mxu0 0.0
  %2579 = vmatprep.subr.mxu0 0.0
  %2580 = vmatpush1.msra.mxu0 0.0
  %2581 = vmatprep.subr.mxu0 0.0
  %2582 = vmatpush1.msra.mxu0 0.0
  %2583 = vmatprep.subr.mxu0 0.0
  %2584 = vmatpush1.msra.mxu0 0.0
  %2585 = vmatprep.subr.mxu0 0.0
  %2586 = vmatpush1.msra.mxu0 0.0
  %2587 = vmatprep.subr.mxu0 0.0
  %2588 = vmatpush1.msra.mxu0 0.0
  %2589 = vmatprep.subr.mxu0 0.0
  %2590 = vmatpush1.msra.mxu0 0.0
  %2591 = vmatprep.subr.mxu0 0.0
  %2592 = vmatpush1.msra.mxu0 0.0
  %2593 = vmatprep.subr.mxu0 0.0
  %2594 = vmatpush1.msra.mxu0 0.0
  %2595 = vmatprep.subr.mxu0 0.0
  %2596 = vmatpush1.msra.mxu0 0.0
  %2597 = vmatprep.subr.mxu0 0.0
  %2598 = vmatpush1.msra.mxu0 0.0
  %2599 = vmatprep.subr.mxu0 0.0
  %2600 = vmatpush1.msra.mxu0 0.0
  %2601 = vmatprep.subr.mxu0 0.0
  %2602 = vmatpush1.msra.mxu0 0.0
  %2603 = vmatprep.subr.mxu0 0.0
  %2604 = vmatpush1.msra.mxu0 0.0
  %2605 = vmatprep.subr.mxu0 0.0
  %2606 = vmatpush1.msra.mxu0 0.0
  %2607 = vmatprep.subr.mxu0 0.0
  %2608 = vmatpush1.msra.mxu0 0.0
  %2609 = vmatprep.subr.mxu0 0.0
  %2610 = vmatpush1.msra.mxu0 0.0
  %2611 = vmatprep.subr.mxu0 0.0
  %2612 = vmatpush1.msra.mxu0 0.0
  %2613 = vmatprep.subr.mxu0 0.0
  %2614 = vmatpush1.msra.mxu0 0.0
  %2615 = vmatprep.subr.mxu0 0.0
  %2616 = vmatpush1.msra.mxu0 0.0
  %2617 = vmatprep.mubr.f32.mxu0 0.0
  %2618 = vmatmul.mubr.f32.gmra.mrb[0].mxu0 %v2548
  %v2619 = vpop.f32.mrb[0].mxu0
  %v2620 = vadd.f32 0.0, %v2619
  %v2621 = vpop.f32.mrb[0].mxu0
  %2622 = vmatprep.mubr.f32.mxu0 0.0
  %2623 = vmatmul.mubr.f32.gmra.mrb[0].mxu0 %v2551
  %v2624 = vpop.f32.mrb[0].mxu0
  %v2625 = vadd.f32 0.0, %v2624
  %v2626 = vpop.f32.mrb[0].mxu0
  %2627 = vdwg.mxu0
  %v2628 = vadd.f32 %v2539, %v2620
  %v2629 = vadd.f32 %v2544, %v2625
  %2630 = vmatprep.subr.mxu0 0.0
  %2631 = vmatpush1.msra.mxu0 %v2628
  %2632 = vmatprep.subr.mxu0 0.0
  %2633 = vmatpush1.msra.mxu0 %v2629
  %2634 = vmatprep.subr.mxu0 0.0
  %2635 = vmatpush1.msra.mxu0 0.0
  %2636 = vmatprep.subr.mxu0 0.0
  %2637 = vmatpush1.msra.mxu0 0.0
  %2638 = vmatprep.subr.mxu0 0.0
  %2639 = vmatpush1.msra.mxu0 0.0
  %2640 = vmatprep.subr.mxu0 0.0
  %2641 = vmatpush1.msra.mxu0 0.0
  %2642 = vmatprep.subr.mxu0 0.0
  %2643 = vmatpush1.msra.mxu0 0.0
  %2644 = vmatprep.subr.mxu0 0.0
  %2645 = vmatpush1.msra.mxu0 0.0
  %2646 = vmatprep.subr.mxu0 0.0
  %2647 = vmatpush1.msra.mxu0 0.0
  %2648 = vmatprep.subr.mxu0 0.0
  %2649 = vmatpush1.msra.mxu0 0.0
  %2650 = vmatprep.subr.mxu0 0.0
  %2651 = vmatpush1.msra.mxu0 0.0
  %2652 = vmatprep.subr.mxu0 0.0
  %2653 = vmatpush1.msra.mxu0 0.0
  %2654 = vmatprep.subr.mxu0 0.0
  %2655 = vmatpush1.msra.mxu0 0.0
  %2656 = vmatprep.subr.mxu0 0.0
  %2657 = vmatpush1.msra.mxu0 0.0
  %2658 = vmatprep.subr.mxu0 0.0
  %2659 = vmatpush1.msra.mxu0 0.0
  %2660 = vmatprep.subr.mxu0 0.0
  %2661 = vmatpush1.msra.mxu0 0.0
  %2662 = vmatprep.subr.mxu0 0.0
  %2663 = vmatpush1.msra.mxu0 0.0
  %2664 = vmatprep.subr.mxu0 0.0
  %2665 = vmatpush1.msra.mxu0 0.0
  %2666 = vmatprep.subr.mxu0 0.0
  %2667 = vmatpush1.msra.mxu0 0.0
  %2668 = vmatprep.subr.mxu0 0.0
  %2669 = vmatpush1.msra.mxu0 0.0
  %2670 = vmatprep.subr.mxu0 0.0
  %2671 = vmatpush1.msra.mxu0 0.0
  %2672 = vmatprep.subr.mxu0 0.0
  %2673 = vmatpush1.msra.mxu0 0.0
  %2674 = vmatprep.subr.mxu0 0.0
  %2675 = vmatpush1.msra.mxu0 0.0
  %2676 = vmatprep.subr.mxu0 0.0
  %2677 = vmatpush1.msra.mxu0 0.0
  %2678 = vmatprep.subr.mxu0 0.0
  %2679 = vmatpush1.msra.mxu0 0.0
  %2680 = vmatprep.subr.mxu0 0.0
  %2681 = vmatpush1.msra.mxu0 0.0
  %2682 = vmatprep.subr.mxu0 0.0
  %2683 = vmatpush1.msra.mxu0 0.0
  %2684 = vmatprep.subr.mxu0 0.0
  %2685 = vmatpush1.msra.mxu0 0.0
  %2686 = vmatprep.subr.mxu0 0.0
  %2687 = vmatpush1.msra.mxu0 0.0
  %2688 = vmatprep.subr.mxu0 0.0
  %2689 = vmatpush1.msra.mxu0 0.0
  %2690 = vmatprep.subr.mxu0 0.0
  %2691 = vmatpush1.msra.mxu0 0.0
  %2692 = vmatprep.subr.mxu0 0.0
  %2693 = vmatpush1.msra.mxu0 0.0
  %2694 = vmatprep.mubr.f32.mxu0 0.0
  %2695 = vmatmul.mubr.f32.gmra.mrb[0].mxu0 %v1116
  %v2696 = vpop.f32.mrb[0].mxu0
  %v2697 = vadd.f32 %v1113, %v2696
  %v2698 = vpop.f32.mrb[0].mxu0
  %2699 = vmatprep.mubr.f32.mxu0 0.0
  %2700 = vmatmul.mubr.f32.gmra.mrb[0].mxu0 %v1119
  %v2701 = vpop.f32.mrb[0].mxu0
  %v2702 = vadd.f32 %v1113, %v2701
  %v2703 = vpop.f32.mrb[0].mxu0
  %2704 = vdwg.mxu0
  %vm2705 = vcmp.ge.f32.partialorder %v2697, 0.0
  %vm2706 = vcmp.ge.f32.partialorder %v2702, 0.0
  %v2707 = vmul.f32 %v2697, 0.01
  %v2708 = vmul.f32 %v2702, 0.01
  %v2709 = vsel %vm2705, %v2697, %v2707
  %v2710 = vsel %vm2706, %v2702, %v2708
  %v2712 = vsel %vm1202, %v2709, 0
  %v2715 = vsel %vm1202, %v2710, 0
  %2717 = vmatprep.subr.mxu0 0.0
  %2718 = vmatpush1.msra.mxu0 %v91
  %2719 = vmatprep.subr.mxu0 0.0
  %2720 = vmatpush1.msra.mxu0 %v92
  %2721 = vmatprep.subr.mxu0 0.0
  %2722 = vmatpush1.msra.mxu0 %v1210
  %2723 = vmatprep.subr.mxu0 0.0
  %2724 = vmatpush1.msra.mxu0 0.0
  %2725 = vmatprep.subr.mxu0 0.0
  %2726 = vmatpush1.msra.mxu0 0.0
  %2727 = vmatprep.subr.mxu0 0.0
  %2728 = vmatpush1.msra.mxu0 0.0
  %2729 = vmatprep.subr.mxu0 0.0
  %2730 = vmatpush1.msra.mxu0 0.0
  %2731 = vmatprep.subr.mxu0 0.0
  %2732 = vmatpush1.msra.mxu0 0.0
  %2733 = vmatprep.subr.mxu0 0.0
  %2734 = vmatpush1.msra.mxu0 0.0
  %2735 = vmatprep.subr.mxu0 0.0
  %2736 = vmatpush1.msra.mxu0 0.0
  %2737 = vmatprep.subr.mxu0 0.0
  %2738 = vmatpush1.msra.mxu0 0.0
  %2739 = vmatprep.subr.mxu0 0.0
  %2740 = vmatpush1.msra.mxu0 0.0
  %2741 = vmatprep.subr.mxu0 0.0
  %2742 = vmatpush1.msra.mxu0 0.0
  %2743 = vmatprep.subr.mxu0 0.0
  %2744 = vmatpush1.msra.mxu0 0.0
  %2745 = vmatprep.subr.mxu0 0.0
  %2746 = vmatpush1.msra.mxu0 0.0
  %2747 = vmatprep.subr.mxu0 0.0
  %2748 = vmatpush1.msra.mxu0 0.0
  %2749 = vmatprep.subr.mxu0 0.0
  %2750 = vmatpush1.msra.mxu0 0.0
  %2751 = vmatprep.subr.mxu0 0.0
  %2752 = vmatpush1.msra.mxu0 0.0
  %2753 = vmatprep.subr.mxu0 0.0
  %2754 = vmatpush1.msra.mxu0 0.0
  %2755 = vmatprep.subr.mxu0 0.0
  %2756 = vmatpush1.msra.mxu0 0.0
  %2757 = vmatprep.subr.mxu0 0.0
  %2758 = vmatpush1.msra.mxu0 0.0
  %2759 = vmatprep.subr.mxu0 0.0
  %2760 = vmatpush1.msra.mxu0 0.0
  %2761 = vmatprep.subr.mxu0 0.0
  %2762 = vmatpush1.msra.mxu0 0.0
  %2763 = vmatprep.subr.mxu0 0.0
  %2764 = vmatpush1.msra.mxu0 0.0
  %2765 = vmatprep.subr.mxu0 0.0
  %2766 = vmatpush1.msra.mxu0 0.0
  %2767 = vmatprep.subr.mxu0 0.0
  %2768 = vmatpush1.msra.mxu0 0.0
  %2769 = vmatprep.subr.mxu0 0.0
  %2770 = vmatpush1.msra.mxu0 0.0
  %2771 = vmatprep.subr.mxu0 0.0
  %2772 = vmatpush1.msra.mxu0 0.0
  %2773 = vmatprep.subr.mxu0 0.0
  %2774 = vmatpush1.msra.mxu0 0.0
  %2775 = vmatprep.subr.mxu0 0.0
  %2776 = vmatpush1.msra.mxu0 0.0
  %2777 = vmatprep.subr.mxu0 0.0
  %2778 = vmatpush1.msra.mxu0 0.0
  %2779 = vmatprep.subr.mxu0 0.0
  %2780 = vmatpush1.msra.mxu0 0.0
  %2781 = vmatprep.mubr.f32.mxu0 0.0
  %2782 = vmatmul.mubr.f32.gmra.mrb[0].mxu0 %v2712
  %v2783 = vpop.f32.mrb[0].mxu0
  %v2784 = vadd.f32 0.0, %v2783
  %v2785 = vpop.f32.mrb[0].mxu0
  %2786 = vmatprep.mubr.f32.mxu0 0.0
  %2787 = vmatmul.mubr.f32.gmra.mrb[0].mxu0 %v2715
  %v2788 = vpop.f32.mrb[0].mxu0
  %v2789 = vadd.f32 0.0, %v2788
  %v2790 = vpop.f32.mrb[0].mxu0
  %2791 = vdwg.mxu0
  %2792 = vmatprep.subr.mxu0 0.0
  %2793 = vmatpush1.msra.mxu0 %v94
  %2794 = vmatprep.subr.mxu0 0.0
  %2795 = vmatpush1.msra.mxu0 %v95
  %2796 = vmatprep.subr.mxu0 0.0
  %2797 = vmatpush1.msra.mxu0 %v1288
  %2798 = vmatprep.subr.mxu0 0.0
  %2799 = vmatpush1.msra.mxu0 0.0
  %2800 = vmatprep.subr.mxu0 0.0
  %2801 = vmatpush1.msra.mxu0 0.0
  %2802 = vmatprep.subr.mxu0 0.0
  %2803 = vmatpush1.msra.mxu0 0.0
  %2804 = vmatprep.subr.mxu0 0.0
  %2805 = vmatpush1.msra.mxu0 0.0
  %2806 = vmatprep.subr.mxu0 0.0
  %2807 = vmatpush1.msra.mxu0 0.0
  %2808 = vmatprep.subr.mxu0 0.0
  %2809 = vmatpush1.msra.mxu0 0.0
  %2810 = vmatprep.subr.mxu0 0.0
  %2811 = vmatpush1.msra.mxu0 0.0
  %2812 = vmatprep.subr.mxu0 0.0
  %2813 = vmatpush1.msra.mxu0 0.0
  %2814 = vmatprep.subr.mxu0 0.0
  %2815 = vmatpush1.msra.mxu0 0.0
  %2816 = vmatprep.subr.mxu0 0.0
  %2817 = vmatpush1.msra.mxu0 0.0
  %2818 = vmatprep.subr.mxu0 0.0
  %2819 = vmatpush1.msra.mxu0 0.0
  %2820 = vmatprep.subr.mxu0 0.0
  %2821 = vmatpush1.msra.mxu0 0.0
  %2822 = vmatprep.subr.mxu0 0.0
  %2823 = vmatpush1.msra.mxu0 0.0
  %2824 = vmatprep.subr.mxu0 0.0
  %2825 = vmatpush1.msra.mxu0 0.0
  %2826 = vmatprep.subr.mxu0 0.0
  %2827 = vmatpush1.msra.mxu0 0.0
  %2828 = vmatprep.subr.mxu0 0.0
  %2829 = vmatpush1.msra.mxu0 0.0
  %2830 = vmatprep.subr.mxu0 0.0
  %2831 = vmatpush1.msra.mxu0 0.0
  %2832 = vmatprep.subr.mxu0 0.0
  %2833 = vmatpush1.msra.mxu0 0.0
  %2834 = vmatprep.subr.mxu0 0.0
  %2835 = vmatpush1.msra.mxu0 0.0
  %2836 = vmatprep.subr.mxu0 0.0
  %2837 = vmatpush1.msra.mxu0 0.0
  %2838 = vmatprep.subr.mxu0 0.0
  %2839 = vmatpush1.msra.mxu0 0.0
  %2840 = vmatprep.subr.mxu0 0.0
  %2841 = vmatpush1.msra.mxu0 0.0
  %2842 = vmatprep.subr.mxu0 0.0
  %2843 = vmatpush1.msra.mxu0 0.0
  %2844 = vmatprep.subr.mxu0 0.0
  %2845 = vmatpush1.msra.mxu0 0.0
  %2846 = vmatprep.subr.mxu0 0.0
  %2847 = vmatpush1.msra.mxu0 0.0
  %2848 = vmatprep.subr.mxu0 0.0
  %2849 = vmatpush1.msra.mxu0 0.0
  %2850 = vmatprep.subr.mxu0 0.0
  %2851 = vmatpush1.msra.mxu0 0.0
  %2852 = vmatprep.subr.mxu0 0.0
  %2853 = vmatpush1.msra.mxu0 0.0
  %2854 = vmatprep.subr.mxu0 0.0
  %2855 = vmatpush1.msra.mxu0 0.0
  %2856 = vmatprep.mubr.f32.mxu0 0.0
  %2857 = vmatmul.mubr.f32.gmra.mrb[0].mxu0 %v2712
  %v2858 = vpop.f32.mrb[0].mxu0
  %v2859 = vadd.f32 0.0, %v2858
  %v2860 = vpop.f32.mrb[0].mxu0
  %2861 = vmatprep.mubr.f32.mxu0 0.0
  %2862 = vmatmul.mubr.f32.gmra.mrb[0].mxu0 %v2715
  %v2863 = vpop.f32.mrb[0].mxu0
  %v2864 = vadd.f32 0.0, %v2863
  %v2865 = vpop.f32.mrb[0].mxu0
  %2866 = vdwg.mxu0
  %2867 = vmatprep.subr.mxu0 0.0
  %2868 = vmatpush1.xpose.msra.mxu0 %v2712
  %2869 = vmatprep.subr.mxu0 0.0
  %2870 = vmatpush1.xpose.msra.mxu0 %v2715
  %2871 = vmatprep.subr.mxu0 0.0
  %2872 = vmatpush1.xpose.msra.mxu0 0.0
  %2873 = vmatprep.subr.mxu0 0.0
  %2874 = vmatpush1.xpose.msra.mxu0 0.0
  %2875 = vmatprep.subr.mxu0 0.0
  %2876 = vmatpush1.xpose.msra.mxu0 0.0
  %2877 = vmatprep.subr.mxu0 0.0
  %2878 = vmatpush1.xpose.msra.mxu0 0.0
  %2879 = vmatprep.subr.mxu0 0.0
  %2880 = vmatpush1.xpose.msra.mxu0 0.0
  %2881 = vmatprep.subr.mxu0 0.0
  %2882 = vmatpush1.xpose.msra.mxu0 0.0
  %2883 = vmatprep.subr.mxu0 0.0
  %2884 = vmatpush1.xpose.msra.mxu0 0.0
  %2885 = vmatprep.subr.mxu0 0.0
  %2886 = vmatpush1.xpose.msra.mxu0 0.0
  %2887 = vmatprep.subr.mxu0 0.0
  %2888 = vmatpush1.xpose.msra.mxu0 0.0
  %2889 = vmatprep.subr.mxu0 0.0
  %2890 = vmatpush1.xpose.msra.mxu0 0.0
  %2891 = vmatprep.subr.mxu0 0.0
  %2892 = vmatpush1.xpose.msra.mxu0 0.0
  %2893 = vmatprep.subr.mxu0 0.0
  %2894 = vmatpush1.xpose.msra.mxu0 0.0
  %2895 = vmatprep.subr.mxu0 0.0
  %2896 = vmatpush1.xpose.msra.mxu0 0.0
  %2897 = vmatprep.subr.mxu0 0.0
  %2898 = vmatpush1.xpose.msra.mxu0 0.0
  %2899 = vmatprep.subr.mxu0 0.0
  %2900 = vmatpush1.xpose.msra.mxu0 0.0
  %2901 = vmatprep.subr.mxu0 0.0
  %2902 = vmatpush1.xpose.msra.mxu0 0.0
  %2903 = vmatprep.subr.mxu0 0.0
  %2904 = vmatpush1.xpose.msra.mxu0 0.0
  %2905 = vmatprep.subr.mxu0 0.0
  %2906 = vmatpush1.xpose.msra.mxu0 0.0
  %2907 = vmatprep.subr.mxu0 0.0
  %2908 = vmatpush1.xpose.msra.mxu0 0.0
  %2909 = vmatprep.subr.mxu0 0.0
  %2910 = vmatpush1.xpose.msra.mxu0 0.0
  %2911 = vmatprep.subr.mxu0 0.0
  %2912 = vmatpush1.xpose.msra.mxu0 0.0
  %2913 = vmatprep.subr.mxu0 0.0
  %2914 = vmatpush1.xpose.msra.mxu0 0.0
  %2915 = vmatprep.subr.mxu0 0.0
  %2916 = vmatpush1.xpose.msra.mxu0 0.0
  %2917 = vmatprep.subr.mxu0 0.0
  %2918 = vmatpush1.xpose.msra.mxu0 0.0
  %2919 = vmatprep.subr.mxu0 0.0
  %2920 = vmatpush1.xpose.msra.mxu0 0.0
  %2921 = vmatprep.subr.mxu0 0.0
  %2922 = vmatpush1.xpose.msra.mxu0 0.0
  %2923 = vmatprep.subr.mxu0 0.0
  %2924 = vmatpush1.xpose.msra.mxu0 0.0
  %2925 = vmatprep.subr.mxu0 0.0
  %2926 = vmatpush1.xpose.msra.mxu0 0.0
  %2927 = vmatprep.subr.mxu0 0.0
  %2928 = vmatpush1.xpose.msra.mxu0 0.0
  %2929 = vmatprep.subr.mxu0 0.0
  %2930 = vmatpush1.xpose.msra.mxu0 0.0
  %2931 = vmatprep.mubr.f32.mxu0 0.0
  %2932 = vmatmul.mubr.f32.gmra.mrb[0].mxu0 %v1365
  %v2933 = vpop.f32.mrb[0].mxu0
  %v2934 = vadd.f32 0.0, %v2933
  %v2935 = vpop.f32.mrb[0].mxu0
  %2936 = vmatprep.mubr.f32.mxu0 0.0
  %2937 = vmatmul.mubr.f32.gmra.mrb[0].mxu0 %v1365
  %v2938 = vpop.f32.mrb[0].mxu0
  %v2939 = vadd.f32 0.0, %v2938
  %v2940 = vpop.f32.mrb[0].mxu0
  %2941 = vdwg.mxu0
  %2943 = vset.pattern.permute.xlu0 0
  %2944 = vperm.xlu0 %2943, %v2859
  %v2945 = vpop.permute.xlu0 %2944
  %2948 = vset.pattern.permute.xlu0 0
  %2949 = vperm.xlu0 %2948, %v2864
  %v2950 = vpop.permute.xlu0 %2949
  %v2952 = vadd.f32 %v2945, %v2934
  %v2953 = vadd.f32 %v2950, %v2939
  %vm2954 = vcmp.ge.f32.partialorder %v2952, 0.0
  %vm2955 = vcmp.ge.f32.partialorder %v2953, 0.0
  %v2956 = vmul.f32 %v2952, 0.2
  %v2957 = vmul.f32 %v2953, 0.2
  %v2958 = vsel %vm2954, %v2952, %v2956
  %v2959 = vsel %vm2955, %v2953, %v2957
  %v2960 = vadd.f32 %v2958, %v68
  %v2961 = vadd.f32 %v2959, %v69
  %v2962 = vsel %vm388, %v2960, -inf
  %2963 = vmax.xlane.f32.xlu0 %v2962
  %v2964 = vpop.xlane.xlu0 %2963
  %v2965 = vsel %vm388, %v2961, -inf
  %2966 = vmax.xlane.f32.xlu0 %v2965
  %v2967 = vpop.xlane.xlu0 %2966
  %v2968 = vsub.f32 %v2960, %v2964
  %v2969 = vsub.f32 %v2961, %v2967
  %v2970 = vmul.f32 %v2968, 1.442695
  %v2971 = vpow.pop %v2970
  %v2972 = vmul.f32 %v2969, 1.442695
  %v2973 = vpow.pop %v2972
  %v2974 = vsel %vm388, %v2971, 0.0
  %2975 = vadd.xlane.f32.xlu0 %v2974
  %v2976 = vpop.xlane.xlu0 %2975
  %v2977 = vsel %vm388, %v2973, 0.0
  %2978 = vadd.xlane.f32.xlu0 %v2977
  %v2979 = vpop.xlane.xlu0 %2978
  %v2980 = vrcp.pop %v2976
  %v2981 = vrcp.pop %v2979
  %v2982 = vmul.f32 %v2971, %v2980
  %v2983 = vmul.f32 %v2973, %v2981
  %v2985 = vsel %vm388, %v2982, 0
  %v2988 = vsel %vm388, %v2983, 0
  %2990 = vmatprep.subr.mxu0 0.0
  %2991 = vmatpush1.msra.mxu0 %v2784
  %2992 = vmatprep.subr.mxu0 0.0
  %2993 = vmatpush1.msra.mxu0 %v2789
  %2994 = vmatprep.subr.mxu0 0.0
  %2995 = vmatpush1.msra.mxu0 0.0
  %2996 = vmatprep.subr.mxu0 0.0
  %2997 = vmatpush1.msra.mxu0 0.0
  %2998 = vmatprep.subr.mxu0 0.0
  %2999 = vmatpush1.msra.mxu0 0.0
  %3000 = vmatprep.subr.mxu0 0.0
  %3001 = vmatpush1.msra.mxu0 0.0
  %3002 = vmatprep.subr.mxu0 0.0
  %3003 = vmatpush1.msra.mxu0 0.0
  %3004 = vmatprep.subr.mxu0 0.0
  %3005 = vmatpush1.msra.mxu0 0.0
  %3006 = vmatprep.subr.mxu0 0.0
  %3007 = vmatpush1.msra.mxu0 0.0
  %3008 = vmatprep.subr.mxu0 0.0
  %3009 = vmatpush1.msra.mxu0 0.0
  %3010 = vmatprep.subr.mxu0 0.0
  %3011 = vmatpush1.msra.mxu0 0.0
  %3012 = vmatprep.subr.mxu0 0.0
  %3013 = vmatpush1.msra.mxu0 0.0
  %3014 = vmatprep.subr.mxu0 0.0
  %3015 = vmatpush1.msra.mxu0 0.0
  %3016 = vmatprep.subr.mxu0 0.0
  %3017 = vmatpush1.msra.mxu0 0.0
  %3018 = vmatprep.subr.mxu0 0.0
  %3019 = vmatpush1.msra.mxu0 0.0
  %3020 = vmatprep.subr.mxu0 0.0
  %3021 = vmatpush1.msra.mxu0 0.0
  %3022 = vmatprep.subr.mxu0 0.0
  %3023 = vmatpush1.msra.mxu0 0.0
  %3024 = vmatprep.subr.mxu0 0.0
  %3025 = vmatpush1.msra.mxu0 0.0
  %3026 = vmatprep.subr.mxu0 0.0
  %3027 = vmatpush1.msra.mxu0 0.0
  %3028 = vmatprep.subr.mxu0 0.0
  %3029 = vmatpush1.msra.mxu0 0.0
  %3030 = vmatprep.subr.mxu0 0.0
  %3031 = vmatpush1.msra.mxu0 0.0
  %3032 = vmatprep.subr.mxu0 0.0
  %3033 = vmatpush1.msra.mxu0 0.0
  %3034 = vmatprep.subr.mxu0 0.0
  %3035 = vmatpush1.msra.mxu0 0.0
  %3036 = vmatprep.subr.mxu0 0.0
  %3037 = vmatpush1.msra.mxu0 0.0
  %3038 = vmatprep.subr.mxu0 0.0
  %3039 = vmatpush1.msra.mxu0 0.0
  %3040 = vmatprep.subr.mxu0 0.0
  %3041 = vmatpush1.msra.mxu0 0.0
  %3042 = vmatprep.subr.mxu0 0.0
  %3043 = vmatpush1.msra.mxu0 0.0
  %3044 = vmatprep.subr.mxu0 0.0
  %3045 = vmatpush1.msra.mxu0 0.0
  %3046 = vmatprep.subr.mxu0 0.0
  %3047 = vmatpush1.msra.mxu0 0.0
  %3048 = vmatprep.subr.mxu0 0.0
  %3049 = vmatpush1.msra.mxu0 0.0
  %3050 = vmatprep.subr.mxu0 0.0
  %3051 = vmatpush1.msra.mxu0 0.0
  %3052 = vmatprep.subr.mxu0 0.0
  %3053 = vmatpush1.msra.mxu0 0.0
  %3054 = vmatprep.mubr.f32.mxu0 0.0
  %3055 = vmatmul.mubr.f32.gmra.mrb[0].mxu0 %v2985
  %v3056 = vpop.f32.mrb[0].mxu0
  %v3057 = vadd.f32 %v1488, %v3056
  %v3058 = vpop.f32.mrb[0].mxu0
  %3059 = vmatprep.mubr.f32.mxu0 0.0
  %3060 = vmatmul.mubr.f32.gmra.mrb[0].mxu0 %v2988
  %v3061 = vpop.f32.mrb[0].mxu0
  %v3062 = vadd.f32 %v1488, %v3061
  %v3063 = vpop.f32.mrb[0].mxu0
  %3064 = vdwg.mxu0
  %v3065 = vadd.f32 %v1675, %v3057
  %v3066 = vadd.f32 %v1676, %v3062
  %vm3067 = vcmp.eq.s32.totalorder %v75, 1
  %v3068 = vsel %vm3067, 1.0, 0.0
  %3070 = vset.pattern.permute.xlu0 0
  %3071 = vperm.xlu0 %3070, %v3065
  %v3072 = vpop.permute.xlu0 %3071
  %3075 = vset.pattern.permute.xlu0 0
  %3076 = vperm.xlu0 %3075, %v3066
  %v3077 = vpop.permute.xlu0 %3076
  %v3079 = vmul.f32 %v3072, %v3068
  %v3080 = vmul.f32 %v3077, %v3068
  %v3081 = vadd.f32 %v1587, %v3079
  %v3082 = vadd.f32 %v1588, %v3080
  %v3083 = vmul.f32 %v3072, %v80
  %v3084 = vmul.f32 %v3077, %v80
  %3085 = vmatprep.subr.mxu0 0.0
  %3086 = vmatpush1.msra.mxu0 %v1592
  %3087 = vmatprep.subr.mxu0 0.0
  %3088 = vmatpush1.msra.mxu0 0.0
  %3089 = vmatprep.subr.mxu0 0.0
  %3090 = vmatpush1.msra.mxu0 0.0
  %3091 = vmatprep.subr.mxu0 0.0
  %3092 = vmatpush1.msra.mxu0 0.0
  %3093 = vmatprep.subr.mxu0 0.0
  %3094 = vmatpush1.msra.mxu0 0.0
  %3095 = vmatprep.subr.mxu0 0.0
  %3096 = vmatpush1.msra.mxu0 0.0
  %3097 = vmatprep.subr.mxu0 0.0
  %3098 = vmatpush1.msra.mxu0 0.0
  %3099 = vmatprep.subr.mxu0 0.0
  %3100 = vmatpush1.msra.mxu0 0.0
  %3101 = vmatprep.subr.mxu0 0.0
  %3102 = vmatpush1.msra.mxu0 0.0
  %3103 = vmatprep.subr.mxu0 0.0
  %3104 = vmatpush1.msra.mxu0 0.0
  %3105 = vmatprep.subr.mxu0 0.0
  %3106 = vmatpush1.msra.mxu0 0.0
  %3107 = vmatprep.subr.mxu0 0.0
  %3108 = vmatpush1.msra.mxu0 0.0
  %3109 = vmatprep.subr.mxu0 0.0
  %3110 = vmatpush1.msra.mxu0 0.0
  %3111 = vmatprep.subr.mxu0 0.0
  %3112 = vmatpush1.msra.mxu0 0.0
  %3113 = vmatprep.subr.mxu0 0.0
  %3114 = vmatpush1.msra.mxu0 0.0
  %3115 = vmatprep.subr.mxu0 0.0
  %3116 = vmatpush1.msra.mxu0 0.0
  %3117 = vmatprep.subr.mxu0 0.0
  %3118 = vmatpush1.msra.mxu0 0.0
  %3119 = vmatprep.subr.mxu0 0.0
  %3120 = vmatpush1.msra.mxu0 0.0
  %3121 = vmatprep.subr.mxu0 0.0
  %3122 = vmatpush1.msra.mxu0 0.0
  %3123 = vmatprep.subr.mxu0 0.0
  %3124 = vmatpush1.msra.mxu0 0.0
  %3125 = vmatprep.subr.mxu0 0.0
  %3126 = vmatpush1.msra.mxu0 0.0
  %3127 = vmatprep.subr.mxu0 0.0
  %3128 = vmatpush1.msra.mxu0 0.0
  %3129 = vmatprep.subr.mxu0 0.0
  %3130 = vmatpush1.msra.mxu0 0.0
  %3131 = vmatprep.subr.mxu0 0.0
  %3132 = vmatpush1.msra.mxu0 0.0
  %3133 = vmatprep.subr.mxu0 0.0
  %3134 = vmatpush1.msra.mxu0 0.0
  %3135 = vmatprep.subr.mxu0 0.0
  %3136 = vmatpush1.msra.mxu0 0.0
  %3137 = vmatprep.subr.mxu0 0.0
  %3138 = vmatpush1.msra.mxu0 0.0
  %3139 = vmatprep.subr.mxu0 0.0
  %3140 = vmatpush1.msra.mxu0 0.0
  %3141 = vmatprep.subr.mxu0 0.0
  %3142 = vmatpush1.msra.mxu0 0.0
  %3143 = vmatprep.subr.mxu0 0.0
  %3144 = vmatpush1.msra.mxu0 0.0
  %3145 = vmatprep.subr.mxu0 0.0
  %3146 = vmatpush1.msra.mxu0 0.0
  %3147 = vmatprep.subr.mxu0 0.0
  %3148 = vmatpush1.msra.mxu0 0.0
  %3149 = vmatprep.mubr.f32.mxu0 0.0
  %3150 = vmatmul.mubr.f32.gmra.mrb[0].mxu0 %v1678
  %v3151 = vpop.f32.mrb[0].mxu0
  %v3152 = vadd.f32 %v3083, %v3151
  %v3153 = vpop.f32.mrb[0].mxu0
  %3154 = vmatprep.mubr.f32.mxu0 0.0
  %3155 = vmatmul.mubr.f32.gmra.mrb[0].mxu0 %v1681
  %v3156 = vpop.f32.mrb[0].mxu0
  %v3157 = vadd.f32 %v3084, %v3156
  %v3158 = vpop.f32.mrb[0].mxu0
  %3159 = vdwg.mxu0
  %v3160 = vsel %vm118, %v3152, 0.0
  %3161 = vadd.xlane.f32.xlu0 %v3160
  %v3162 = vpop.xlane.xlu0 %3161
  %v3163 = vsel %vm118, %v3157, 0.0
  %3164 = vadd.xlane.f32.xlu0 %v3163
  %v3165 = vpop.xlane.xlu0 %3164
  %v3166 = vmul.f32 %v3162, %v125
  %v3167 = vmul.f32 %v3165, %v125
  %v3169 = vsel %vm118, %v3152, 0
  %v3172 = vsel %vm118, %v3157, 0
  %3174 = vmatprep.subr.mxu0 0.0
  %3175 = vmatpush1.msra.mxu0 %v136
  %3176 = vmatprep.subr.mxu0 0.0
  %3177 = vmatpush1.msra.mxu0 0.0
  %3178 = vmatprep.subr.mxu0 0.0
  %3179 = vmatpush1.msra.mxu0 0.0
  %3180 = vmatprep.subr.mxu0 0.0
  %3181 = vmatpush1.msra.mxu0 0.0
  %3182 = vmatprep.subr.mxu0 0.0
  %3183 = vmatpush1.msra.mxu0 0.0
  %3184 = vmatprep.subr.mxu0 0.0
  %3185 = vmatpush1.msra.mxu0 0.0
  %3186 = vmatprep.subr.mxu0 0.0
  %3187 = vmatpush1.msra.mxu0 0.0
  %3188 = vmatprep.subr.mxu0 0.0
  %3189 = vmatpush1.msra.mxu0 0.0
  %3190 = vmatprep.subr.mxu0 0.0
  %3191 = vmatpush1.msra.mxu0 0.0
  %3192 = vmatprep.subr.mxu0 0.0
  %3193 = vmatpush1.msra.mxu0 0.0
  %3194 = vmatprep.subr.mxu0 0.0
  %3195 = vmatpush1.msra.mxu0 0.0
  %3196 = vmatprep.subr.mxu0 0.0
  %3197 = vmatpush1.msra.mxu0 0.0
  %3198 = vmatprep.subr.mxu0 0.0
  %3199 = vmatpush1.msra.mxu0 0.0
  %3200 = vmatprep.subr.mxu0 0.0
  %3201 = vmatpush1.msra.mxu0 0.0
  %3202 = vmatprep.subr.mxu0 0.0
  %3203 = vmatpush1.msra.mxu0 0.0
  %3204 = vmatprep.subr.mxu0 0.0
  %3205 = vmatpush1.msra.mxu0 0.0
  %3206 = vmatprep.subr.mxu0 0.0
  %3207 = vmatpush1.msra.mxu0 0.0
  %3208 = vmatprep.subr.mxu0 0.0
  %3209 = vmatpush1.msra.mxu0 0.0
  %3210 = vmatprep.subr.mxu0 0.0
  %3211 = vmatpush1.msra.mxu0 0.0
  %3212 = vmatprep.subr.mxu0 0.0
  %3213 = vmatpush1.msra.mxu0 0.0
  %3214 = vmatprep.subr.mxu0 0.0
  %3215 = vmatpush1.msra.mxu0 0.0
  %3216 = vmatprep.subr.mxu0 0.0
  %3217 = vmatpush1.msra.mxu0 0.0
  %3218 = vmatprep.subr.mxu0 0.0
  %3219 = vmatpush1.msra.mxu0 0.0
  %3220 = vmatprep.subr.mxu0 0.0
  %3221 = vmatpush1.msra.mxu0 0.0
  %3222 = vmatprep.subr.mxu0 0.0
  %3223 = vmatpush1.msra.mxu0 0.0
  %3224 = vmatprep.subr.mxu0 0.0
  %3225 = vmatpush1.msra.mxu0 0.0
  %3226 = vmatprep.subr.mxu0 0.0
  %3227 = vmatpush1.msra.mxu0 0.0
  %3228 = vmatprep.subr.mxu0 0.0
  %3229 = vmatpush1.msra.mxu0 0.0
  %3230 = vmatprep.subr.mxu0 0.0
  %3231 = vmatpush1.msra.mxu0 0.0
  %3232 = vmatprep.subr.mxu0 0.0
  %3233 = vmatpush1.msra.mxu0 0.0
  %3234 = vmatprep.subr.mxu0 0.0
  %3235 = vmatpush1.msra.mxu0 0.0
  %3236 = vmatprep.subr.mxu0 0.0
  %3237 = vmatpush1.msra.mxu0 0.0
  %3238 = vmatprep.mubr.f32.mxu0 0.0
  %3239 = vmatmul.mubr.f32.gmra.mrb[0].mxu0 %v3169
  %v3240 = vpop.f32.mrb[0].mxu0
  %v3241 = vadd.f32 0.0, %v3240
  %v3242 = vpop.f32.mrb[0].mxu0
  %3243 = vmatprep.mubr.f32.mxu0 0.0
  %3244 = vmatmul.mubr.f32.gmra.mrb[0].mxu0 %v3172
  %v3245 = vpop.f32.mrb[0].mxu0
  %v3246 = vadd.f32 0.0, %v3245
  %v3247 = vpop.f32.mrb[0].mxu0
  %3248 = vdwg.mxu0
  %3249 = vmatprep.subr.mxu0 0.0
  %3250 = vmatpush1.msra.mxu0 %v214
  %3251 = vmatprep.subr.mxu0 0.0
  %3252 = vmatpush1.msra.mxu0 0.0
  %3253 = vmatprep.subr.mxu0 0.0
  %3254 = vmatpush1.msra.mxu0 0.0
  %3255 = vmatprep.subr.mxu0 0.0
  %3256 = vmatpush1.msra.mxu0 0.0
  %3257 = vmatprep.subr.mxu0 0.0
  %3258 = vmatpush1.msra.mxu0 0.0
  %3259 = vmatprep.subr.mxu0 0.0
  %3260 = vmatpush1.msra.mxu0 0.0
  %3261 = vmatprep.subr.mxu0 0.0
  %3262 = vmatpush1.msra.mxu0 0.0
  %3263 = vmatprep.subr.mxu0 0.0
  %3264 = vmatpush1.msra.mxu0 0.0
  %3265 = vmatprep.subr.mxu0 0.0
  %3266 = vmatpush1.msra.mxu0 0.0
  %3267 = vmatprep.subr.mxu0 0.0
  %3268 = vmatpush1.msra.mxu0 0.0
  %3269 = vmatprep.subr.mxu0 0.0
  %3270 = vmatpush1.msra.mxu0 0.0
  %3271 = vmatprep.subr.mxu0 0.0
  %3272 = vmatpush1.msra.mxu0 0.0
  %3273 = vmatprep.subr.mxu0 0.0
  %3274 = vmatpush1.msra.mxu0 0.0
  %3275 = vmatprep.subr.mxu0 0.0
  %3276 = vmatpush1.msra.mxu0 0.0
  %3277 = vmatprep.subr.mxu0 0.0
  %3278 = vmatpush1.msra.mxu0 0.0
  %3279 = vmatprep.subr.mxu0 0.0
  %3280 = vmatpush1.msra.mxu0 0.0
  %3281 = vmatprep.subr.mxu0 0.0
  %3282 = vmatpush1.msra.mxu0 0.0
  %3283 = vmatprep.subr.mxu0 0.0
  %3284 = vmatpush1.msra.mxu0 0.0
  %3285 = vmatprep.subr.mxu0 0.0
  %3286 = vmatpush1.msra.mxu0 0.0
  %3287 = vmatprep.subr.mxu0 0.0
  %3288 = vmatpush1.msra.mxu0 0.0
  %3289 = vmatprep.subr.mxu0 0.0
  %3290 = vmatpush1.msra.mxu0 0.0
  %3291 = vmatprep.subr.mxu0 0.0
  %3292 = vmatpush1.msra.mxu0 0.0
  %3293 = vmatprep.subr.mxu0 0.0
  %3294 = vmatpush1.msra.mxu0 0.0
  %3295 = vmatprep.subr.mxu0 0.0
  %3296 = vmatpush1.msra.mxu0 0.0
  %3297 = vmatprep.subr.mxu0 0.0
  %3298 = vmatpush1.msra.mxu0 0.0
  %3299 = vmatprep.subr.mxu0 0.0
  %3300 = vmatpush1.msra.mxu0 0.0
  %3301 = vmatprep.subr.mxu0 0.0
  %3302 = vmatpush1.msra.mxu0 0.0
  %3303 = vmatprep.subr.mxu0 0.0
  %3304 = vmatpush1.msra.mxu0 0.0
  %3305 = vmatprep.subr.mxu0 0.0
  %3306 = vmatpush1.msra.mxu0 0.0
  %3307 = vmatprep.subr.mxu0 0.0
  %3308 = vmatpush1.msra.mxu0 0.0
  %3309 = vmatprep.subr.mxu0 0.0
  %3310 = vmatpush1.msra.mxu0 0.0
  %3311 = vmatprep.subr.mxu0 0.0
  %3312 = vmatpush1.msra.mxu0 0.0
  %3313 = vmatprep.mubr.f32.mxu0 0.0
  %3314 = vmatmul.mubr.f32.gmra.mrb[0].mxu0 %v3169
  %v3315 = vpop.f32.mrb[0].mxu0
  %v3316 = vadd.f32 0.0, %v3315
  %v3317 = vpop.f32.mrb[0].mxu0
  %3318 = vmatprep.mubr.f32.mxu0 0.0
  %3319 = vmatmul.mubr.f32.gmra.mrb[0].mxu0 %v3172
  %v3320 = vpop.f32.mrb[0].mxu0
  %v3321 = vadd.f32 0.0, %v3320
  %v3322 = vpop.f32.mrb[0].mxu0
  %3323 = vdwg.mxu0
  %3324 = vmatprep.subr.mxu0 0.0
  %3325 = vmatpush1.xpose.msra.mxu0 %v3169
  %3326 = vmatprep.subr.mxu0 0.0
  %3327 = vmatpush1.xpose.msra.mxu0 %v3172
  %3328 = vmatprep.subr.mxu0 0.0
  %3329 = vmatpush1.xpose.msra.mxu0 0.0
  %3330 = vmatprep.subr.mxu0 0.0
  %3331 = vmatpush1.xpose.msra.mxu0 0.0
  %3332 = vmatprep.subr.mxu0 0.0
  %3333 = vmatpush1.xpose.msra.mxu0 0.0
  %3334 = vmatprep.subr.mxu0 0.0
  %3335 = vmatpush1.xpose.msra.mxu0 0.0
  %3336 = vmatprep.subr.mxu0 0.0
  %3337 = vmatpush1.xpose.msra.mxu0 0.0
  %3338 = vmatprep.subr.mxu0 0.0
  %3339 = vmatpush1.xpose.msra.mxu0 0.0
  %3340 = vmatprep.subr.mxu0 0.0
  %3341 = vmatpush1.xpose.msra.mxu0 0.0
  %3342 = vmatprep.subr.mxu0 0.0
  %3343 = vmatpush1.xpose.msra.mxu0 0.0
  %3344 = vmatprep.subr.mxu0 0.0
  %3345 = vmatpush1.xpose.msra.mxu0 0.0
  %3346 = vmatprep.subr.mxu0 0.0
  %3347 = vmatpush1.xpose.msra.mxu0 0.0
  %3348 = vmatprep.subr.mxu0 0.0
  %3349 = vmatpush1.xpose.msra.mxu0 0.0
  %3350 = vmatprep.subr.mxu0 0.0
  %3351 = vmatpush1.xpose.msra.mxu0 0.0
  %3352 = vmatprep.subr.mxu0 0.0
  %3353 = vmatpush1.xpose.msra.mxu0 0.0
  %3354 = vmatprep.subr.mxu0 0.0
  %3355 = vmatpush1.xpose.msra.mxu0 0.0
  %3356 = vmatprep.subr.mxu0 0.0
  %3357 = vmatpush1.xpose.msra.mxu0 0.0
  %3358 = vmatprep.subr.mxu0 0.0
  %3359 = vmatpush1.xpose.msra.mxu0 0.0
  %3360 = vmatprep.subr.mxu0 0.0
  %3361 = vmatpush1.xpose.msra.mxu0 0.0
  %3362 = vmatprep.subr.mxu0 0.0
  %3363 = vmatpush1.xpose.msra.mxu0 0.0
  %3364 = vmatprep.subr.mxu0 0.0
  %3365 = vmatpush1.xpose.msra.mxu0 0.0
  %3366 = vmatprep.subr.mxu0 0.0
  %3367 = vmatpush1.xpose.msra.mxu0 0.0
  %3368 = vmatprep.subr.mxu0 0.0
  %3369 = vmatpush1.xpose.msra.mxu0 0.0
  %3370 = vmatprep.subr.mxu0 0.0
  %3371 = vmatpush1.xpose.msra.mxu0 0.0
  %3372 = vmatprep.subr.mxu0 0.0
  %3373 = vmatpush1.xpose.msra.mxu0 0.0
  %3374 = vmatprep.subr.mxu0 0.0
  %3375 = vmatpush1.xpose.msra.mxu0 0.0
  %3376 = vmatprep.subr.mxu0 0.0
  %3377 = vmatpush1.xpose.msra.mxu0 0.0
  %3378 = vmatprep.subr.mxu0 0.0
  %3379 = vmatpush1.xpose.msra.mxu0 0.0
  %3380 = vmatprep.subr.mxu0 0.0
  %3381 = vmatpush1.xpose.msra.mxu0 0.0
  %3382 = vmatprep.subr.mxu0 0.0
  %3383 = vmatpush1.xpose.msra.mxu0 0.0
  %3384 = vmatprep.subr.mxu0 0.0
  %3385 = vmatpush1.xpose.msra.mxu0 0.0
  %3386 = vmatprep.subr.mxu0 0.0
  %3387 = vmatpush1.xpose.msra.mxu0 0.0
  %3388 = vmatprep.mubr.f32.mxu0 0.0
  %3389 = vmatmul.mubr.f32.gmra.mrb[0].mxu0 %v291
  %v3390 = vpop.f32.mrb[0].mxu0
  %v3391 = vadd.f32 0.0, %v3390
  %v3392 = vpop.f32.mrb[0].mxu0
  %3393 = vmatprep.mubr.f32.mxu0 0.0
  %3394 = vmatmul.mubr.f32.gmra.mrb[0].mxu0 %v291
  %v3395 = vpop.f32.mrb[0].mxu0
  %v3396 = vadd.f32 0.0, %v3395
  %v3397 = vpop.f32.mrb[0].mxu0
  %3398 = vdwg.mxu0
  %3400 = vset.pattern.permute.xlu0 0
  %3401 = vperm.xlu0 %3400, %v3316
  %v3402 = vpop.permute.xlu0 %3401
  %3405 = vset.pattern.permute.xlu0 0
  %3406 = vperm.xlu0 %3405, %v3321
  %v3407 = vpop.permute.xlu0 %3406
  %v3409 = vadd.f32 %v3402, %v3391
  %v3410 = vadd.f32 %v3407, %v3396
  %vm3411 = vcmp.ge.f32.partialorder %v3409, 0.0
  %vm3412 = vcmp.ge.f32.partialorder %v3410, 0.0
  %v3413 = vmul.f32 %v3409, 0.2
  %v3414 = vmul.f32 %v3410, 0.2
  %v3415 = vsel %vm3411, %v3409, %v3413
  %v3416 = vsel %vm3412, %v3410, %v3414
  %v3417 = vadd.f32 %v3415, %v68
  %v3418 = vadd.f32 %v3416, %v69
  %v3419 = vsel %vm388, %v3417, -inf
  %3420 = vmax.xlane.f32.xlu0 %v3419
  %v3421 = vpop.xlane.xlu0 %3420
  %v3422 = vsel %vm388, %v3418, -inf
  %3423 = vmax.xlane.f32.xlu0 %v3422
  %v3424 = vpop.xlane.xlu0 %3423
  %v3425 = vsub.f32 %v3417, %v3421
  %v3426 = vsub.f32 %v3418, %v3424
  %v3427 = vmul.f32 %v3425, 1.442695
  %v3428 = vpow.pop %v3427
  %v3429 = vmul.f32 %v3426, 1.442695
  %v3430 = vpow.pop %v3429
  %v3431 = vsel %vm388, %v3428, 0.0
  %3432 = vadd.xlane.f32.xlu0 %v3431
  %v3433 = vpop.xlane.xlu0 %3432
  %v3434 = vsel %vm388, %v3430, 0.0
  %3435 = vadd.xlane.f32.xlu0 %v3434
  %v3436 = vpop.xlane.xlu0 %3435
  %v3437 = vrcp.pop %v3433
  %v3438 = vrcp.pop %v3436
  %v3439 = vmul.f32 %v3428, %v3437
  %v3440 = vmul.f32 %v3430, %v3438
  %v3442 = vsel %vm388, %v3439, 0
  %v3445 = vsel %vm388, %v3440, 0
  %3447 = vmatprep.subr.mxu0 0.0
  %3448 = vmatpush1.msra.mxu0 %v3241
  %3449 = vmatprep.subr.mxu0 0.0
  %3450 = vmatpush1.msra.mxu0 %v3246
  %3451 = vmatprep.subr.mxu0 0.0
  %3452 = vmatpush1.msra.mxu0 0.0
  %3453 = vmatprep.subr.mxu0 0.0
  %3454 = vmatpush1.msra.mxu0 0.0
  %3455 = vmatprep.subr.mxu0 0.0
  %3456 = vmatpush1.msra.mxu0 0.0
  %3457 = vmatprep.subr.mxu0 0.0
  %3458 = vmatpush1.msra.mxu0 0.0
  %3459 = vmatprep.subr.mxu0 0.0
  %3460 = vmatpush1.msra.mxu0 0.0
  %3461 = vmatprep.subr.mxu0 0.0
  %3462 = vmatpush1.msra.mxu0 0.0
  %3463 = vmatprep.subr.mxu0 0.0
  %3464 = vmatpush1.msra.mxu0 0.0
  %3465 = vmatprep.subr.mxu0 0.0
  %3466 = vmatpush1.msra.mxu0 0.0
  %3467 = vmatprep.subr.mxu0 0.0
  %3468 = vmatpush1.msra.mxu0 0.0
  %3469 = vmatprep.subr.mxu0 0.0
  %3470 = vmatpush1.msra.mxu0 0.0
  %3471 = vmatprep.subr.mxu0 0.0
  %3472 = vmatpush1.msra.mxu0 0.0
  %3473 = vmatprep.subr.mxu0 0.0
  %3474 = vmatpush1.msra.mxu0 0.0
  %3475 = vmatprep.subr.mxu0 0.0
  %3476 = vmatpush1.msra.mxu0 0.0
  %3477 = vmatprep.subr.mxu0 0.0
  %3478 = vmatpush1.msra.mxu0 0.0
  %3479 = vmatprep.subr.mxu0 0.0
  %3480 = vmatpush1.msra.mxu0 0.0
  %3481 = vmatprep.subr.mxu0 0.0
  %3482 = vmatpush1.msra.mxu0 0.0
  %3483 = vmatprep.subr.mxu0 0.0
  %3484 = vmatpush1.msra.mxu0 0.0
  %3485 = vmatprep.subr.mxu0 0.0
  %3486 = vmatpush1.msra.mxu0 0.0
  %3487 = vmatprep.subr.mxu0 0.0
  %3488 = vmatpush1.msra.mxu0 0.0
  %3489 = vmatprep.subr.mxu0 0.0
  %3490 = vmatpush1.msra.mxu0 0.0
  %3491 = vmatprep.subr.mxu0 0.0
  %3492 = vmatpush1.msra.mxu0 0.0
  %3493 = vmatprep.subr.mxu0 0.0
  %3494 = vmatpush1.msra.mxu0 0.0
  %3495 = vmatprep.subr.mxu0 0.0
  %3496 = vmatpush1.msra.mxu0 0.0
  %3497 = vmatprep.subr.mxu0 0.0
  %3498 = vmatpush1.msra.mxu0 0.0
  %3499 = vmatprep.subr.mxu0 0.0
  %3500 = vmatpush1.msra.mxu0 0.0
  %3501 = vmatprep.subr.mxu0 0.0
  %3502 = vmatpush1.msra.mxu0 0.0
  %3503 = vmatprep.subr.mxu0 0.0
  %3504 = vmatpush1.msra.mxu0 0.0
  %3505 = vmatprep.subr.mxu0 0.0
  %3506 = vmatpush1.msra.mxu0 0.0
  %3507 = vmatprep.subr.mxu0 0.0
  %3508 = vmatpush1.msra.mxu0 0.0
  %3509 = vmatprep.subr.mxu0 0.0
  %3510 = vmatpush1.msra.mxu0 0.0
  %3511 = vmatprep.mubr.f32.mxu0 0.0
  %3512 = vmatmul.mubr.f32.gmra.mrb[0].mxu0 %v3442
  %v3513 = vpop.f32.mrb[0].mxu0
  %v3514 = vadd.f32 %v415, %v3513
  %v3515 = vpop.f32.mrb[0].mxu0
  %3516 = vmatprep.mubr.f32.mxu0 0.0
  %3517 = vmatmul.mubr.f32.gmra.mrb[0].mxu0 %v3445
  %v3518 = vpop.f32.mrb[0].mxu0
  %v3519 = vadd.f32 %v415, %v3518
  %v3520 = vpop.f32.mrb[0].mxu0
  %3521 = vdwg.mxu0
  %vm3522 = vcmp.ge.f32.partialorder %v3514, 0.0
  %vm3523 = vcmp.ge.f32.partialorder %v3519, 0.0
  %v3524 = vmul.f32 %v3514, 0.01
  %v3525 = vmul.f32 %v3519, 0.01
  %v3526 = vsel %vm3522, %v3514, %v3524
  %v3527 = vsel %vm3523, %v3519, %v3525
  %v3529 = vsel %vm504, %v3526, 0
  %v3532 = vsel %vm504, %v3527, 0
  %3534 = vmatprep.subr.mxu0 0.0
  %3535 = vmatpush1.msra.mxu0 %v84
  %3536 = vmatprep.subr.mxu0 0.0
  %3537 = vmatpush1.msra.mxu0 0.0
  %3538 = vmatprep.subr.mxu0 0.0
  %3539 = vmatpush1.msra.mxu0 0.0
  %3540 = vmatprep.subr.mxu0 0.0
  %3541 = vmatpush1.msra.mxu0 0.0
  %3542 = vmatprep.subr.mxu0 0.0
  %3543 = vmatpush1.msra.mxu0 0.0
  %3544 = vmatprep.subr.mxu0 0.0
  %3545 = vmatpush1.msra.mxu0 0.0
  %3546 = vmatprep.subr.mxu0 0.0
  %3547 = vmatpush1.msra.mxu0 0.0
  %3548 = vmatprep.subr.mxu0 0.0
  %3549 = vmatpush1.msra.mxu0 0.0
  %3550 = vmatprep.subr.mxu0 0.0
  %3551 = vmatpush1.msra.mxu0 0.0
  %3552 = vmatprep.subr.mxu0 0.0
  %3553 = vmatpush1.msra.mxu0 0.0
  %3554 = vmatprep.subr.mxu0 0.0
  %3555 = vmatpush1.msra.mxu0 0.0
  %3556 = vmatprep.subr.mxu0 0.0
  %3557 = vmatpush1.msra.mxu0 0.0
  %3558 = vmatprep.subr.mxu0 0.0
  %3559 = vmatpush1.msra.mxu0 0.0
  %3560 = vmatprep.subr.mxu0 0.0
  %3561 = vmatpush1.msra.mxu0 0.0
  %3562 = vmatprep.subr.mxu0 0.0
  %3563 = vmatpush1.msra.mxu0 0.0
  %3564 = vmatprep.subr.mxu0 0.0
  %3565 = vmatpush1.msra.mxu0 0.0
  %3566 = vmatprep.subr.mxu0 0.0
  %3567 = vmatpush1.msra.mxu0 0.0
  %3568 = vmatprep.subr.mxu0 0.0
  %3569 = vmatpush1.msra.mxu0 0.0
  %3570 = vmatprep.subr.mxu0 0.0
  %3571 = vmatpush1.msra.mxu0 0.0
  %3572 = vmatprep.subr.mxu0 0.0
  %3573 = vmatpush1.msra.mxu0 0.0
  %3574 = vmatprep.subr.mxu0 0.0
  %3575 = vmatpush1.msra.mxu0 0.0
  %3576 = vmatprep.subr.mxu0 0.0
  %3577 = vmatpush1.msra.mxu0 0.0
  %3578 = vmatprep.subr.mxu0 0.0
  %3579 = vmatpush1.msra.mxu0 0.0
  %3580 = vmatprep.subr.mxu0 0.0
  %3581 = vmatpush1.msra.mxu0 0.0
  %3582 = vmatprep.subr.mxu0 0.0
  %3583 = vmatpush1.msra.mxu0 0.0
  %3584 = vmatprep.subr.mxu0 0.0
  %3585 = vmatpush1.msra.mxu0 0.0
  %3586 = vmatprep.subr.mxu0 0.0
  %3587 = vmatpush1.msra.mxu0 0.0
  %3588 = vmatprep.subr.mxu0 0.0
  %3589 = vmatpush1.msra.mxu0 0.0
  %3590 = vmatprep.subr.mxu0 0.0
  %3591 = vmatpush1.msra.mxu0 0.0
  %3592 = vmatprep.subr.mxu0 0.0
  %3593 = vmatpush1.msra.mxu0 0.0
  %3594 = vmatprep.subr.mxu0 0.0
  %3595 = vmatpush1.msra.mxu0 0.0
  %3596 = vmatprep.subr.mxu0 0.0
  %3597 = vmatpush1.msra.mxu0 0.0
  %3598 = vmatprep.mubr.f32.mxu0 0.0
  %3599 = vmatmul.mubr.f32.gmra.mrb[0].mxu0 %v3529
  %v3600 = vpop.f32.mrb[0].mxu0
  %v3601 = vadd.f32 0.0, %v3600
  %v3602 = vpop.f32.mrb[0].mxu0
  %3603 = vmatprep.mubr.f32.mxu0 0.0
  %3604 = vmatmul.mubr.f32.gmra.mrb[0].mxu0 %v3532
  %v3605 = vpop.f32.mrb[0].mxu0
  %v3606 = vadd.f32 0.0, %v3605
  %v3607 = vpop.f32.mrb[0].mxu0
  %3608 = vdwg.mxu0
  %3609 = vmatprep.subr.mxu0 0.0
  %3610 = vmatpush1.msra.mxu0 %v85
  %3611 = vmatprep.subr.mxu0 0.0
  %3612 = vmatpush1.msra.mxu0 0.0
  %3613 = vmatprep.subr.mxu0 0.0
  %3614 = vmatpush1.msra.mxu0 0.0
  %3615 = vmatprep.subr.mxu0 0.0
  %3616 = vmatpush1.msra.mxu0 0.0
  %3617 = vmatprep.subr.mxu0 0.0
  %3618 = vmatpush1.msra.mxu0 0.0
  %3619 = vmatprep.subr.mxu0 0.0
  %3620 = vmatpush1.msra.mxu0 0.0
  %3621 = vmatprep.subr.mxu0 0.0
  %3622 = vmatpush1.msra.mxu0 0.0
  %3623 = vmatprep.subr.mxu0 0.0
  %3624 = vmatpush1.msra.mxu0 0.0
  %3625 = vmatprep.subr.mxu0 0.0
  %3626 = vmatpush1.msra.mxu0 0.0
  %3627 = vmatprep.subr.mxu0 0.0
  %3628 = vmatpush1.msra.mxu0 0.0
  %3629 = vmatprep.subr.mxu0 0.0
  %3630 = vmatpush1.msra.mxu0 0.0
  %3631 = vmatprep.subr.mxu0 0.0
  %3632 = vmatpush1.msra.mxu0 0.0
  %3633 = vmatprep.subr.mxu0 0.0
  %3634 = vmatpush1.msra.mxu0 0.0
  %3635 = vmatprep.subr.mxu0 0.0
  %3636 = vmatpush1.msra.mxu0 0.0
  %3637 = vmatprep.subr.mxu0 0.0
  %3638 = vmatpush1.msra.mxu0 0.0
  %3639 = vmatprep.subr.mxu0 0.0
  %3640 = vmatpush1.msra.mxu0 0.0
  %3641 = vmatprep.subr.mxu0 0.0
  %3642 = vmatpush1.msra.mxu0 0.0
  %3643 = vmatprep.subr.mxu0 0.0
  %3644 = vmatpush1.msra.mxu0 0.0
  %3645 = vmatprep.subr.mxu0 0.0
  %3646 = vmatpush1.msra.mxu0 0.0
  %3647 = vmatprep.subr.mxu0 0.0
  %3648 = vmatpush1.msra.mxu0 0.0
  %3649 = vmatprep.subr.mxu0 0.0
  %3650 = vmatpush1.msra.mxu0 0.0
  %3651 = vmatprep.subr.mxu0 0.0
  %3652 = vmatpush1.msra.mxu0 0.0
  %3653 = vmatprep.subr.mxu0 0.0
  %3654 = vmatpush1.msra.mxu0 0.0
  %3655 = vmatprep.subr.mxu0 0.0
  %3656 = vmatpush1.msra.mxu0 0.0
  %3657 = vmatprep.subr.mxu0 0.0
  %3658 = vmatpush1.msra.mxu0 0.0
  %3659 = vmatprep.subr.mxu0 0.0
  %3660 = vmatpush1.msra.mxu0 0.0
  %3661 = vmatprep.subr.mxu0 0.0
  %3662 = vmatpush1.msra.mxu0 0.0
  %3663 = vmatprep.subr.mxu0 0.0
  %3664 = vmatpush1.msra.mxu0 0.0
  %3665 = vmatprep.subr.mxu0 0.0
  %3666 = vmatpush1.msra.mxu0 0.0
  %3667 = vmatprep.subr.mxu0 0.0
  %3668 = vmatpush1.msra.mxu0 0.0
  %3669 = vmatprep.subr.mxu0 0.0
  %3670 = vmatpush1.msra.mxu0 0.0
  %3671 = vmatprep.subr.mxu0 0.0
  %3672 = vmatpush1.msra.mxu0 0.0
  %3673 = vmatprep.mubr.f32.mxu0 0.0
  %3674 = vmatmul.mubr.f32.gmra.mrb[0].mxu0 %v3529
  %v3675 = vpop.f32.mrb[0].mxu0
  %v3676 = vadd.f32 0.0, %v3675
  %v3677 = vpop.f32.mrb[0].mxu0
  %3678 = vmatprep.mubr.f32.mxu0 0.0
  %3679 = vmatmul.mubr.f32.gmra.mrb[0].mxu0 %v3532
  %v3680 = vpop.f32.mrb[0].mxu0
  %v3681 = vadd.f32 0.0, %v3680
  %v3682 = vpop.f32.mrb[0].mxu0
  %3683 = vdwg.mxu0
  %3684 = vmatprep.subr.mxu0 0.0
  %3685 = vmatpush1.xpose.msra.mxu0 %v3529
  %3686 = vmatprep.subr.mxu0 0.0
  %3687 = vmatpush1.xpose.msra.mxu0 %v3532
  %3688 = vmatprep.subr.mxu0 0.0
  %3689 = vmatpush1.xpose.msra.mxu0 0.0
  %3690 = vmatprep.subr.mxu0 0.0
  %3691 = vmatpush1.xpose.msra.mxu0 0.0
  %3692 = vmatprep.subr.mxu0 0.0
  %3693 = vmatpush1.xpose.msra.mxu0 0.0
  %3694 = vmatprep.subr.mxu0 0.0
  %3695 = vmatpush1.xpose.msra.mxu0 0.0
  %3696 = vmatprep.subr.mxu0 0.0
  %3697 = vmatpush1.xpose.msra.mxu0 0.0
  %3698 = vmatprep.subr.mxu0 0.0
  %3699 = vmatpush1.xpose.msra.mxu0 0.0
  %3700 = vmatprep.subr.mxu0 0.0
  %3701 = vmatpush1.xpose.msra.mxu0 0.0
  %3702 = vmatprep.subr.mxu0 0.0
  %3703 = vmatpush1.xpose.msra.mxu0 0.0
  %3704 = vmatprep.subr.mxu0 0.0
  %3705 = vmatpush1.xpose.msra.mxu0 0.0
  %3706 = vmatprep.subr.mxu0 0.0
  %3707 = vmatpush1.xpose.msra.mxu0 0.0
  %3708 = vmatprep.subr.mxu0 0.0
  %3709 = vmatpush1.xpose.msra.mxu0 0.0
  %3710 = vmatprep.subr.mxu0 0.0
  %3711 = vmatpush1.xpose.msra.mxu0 0.0
  %3712 = vmatprep.subr.mxu0 0.0
  %3713 = vmatpush1.xpose.msra.mxu0 0.0
  %3714 = vmatprep.subr.mxu0 0.0
  %3715 = vmatpush1.xpose.msra.mxu0 0.0
  %3716 = vmatprep.subr.mxu0 0.0
  %3717 = vmatpush1.xpose.msra.mxu0 0.0
  %3718 = vmatprep.subr.mxu0 0.0
  %3719 = vmatpush1.xpose.msra.mxu0 0.0
  %3720 = vmatprep.subr.mxu0 0.0
  %3721 = vmatpush1.xpose.msra.mxu0 0.0
  %3722 = vmatprep.subr.mxu0 0.0
  %3723 = vmatpush1.xpose.msra.mxu0 0.0
  %3724 = vmatprep.subr.mxu0 0.0
  %3725 = vmatpush1.xpose.msra.mxu0 0.0
  %3726 = vmatprep.subr.mxu0 0.0
  %3727 = vmatpush1.xpose.msra.mxu0 0.0
  %3728 = vmatprep.subr.mxu0 0.0
  %3729 = vmatpush1.xpose.msra.mxu0 0.0
  %3730 = vmatprep.subr.mxu0 0.0
  %3731 = vmatpush1.xpose.msra.mxu0 0.0
  %3732 = vmatprep.subr.mxu0 0.0
  %3733 = vmatpush1.xpose.msra.mxu0 0.0
  %3734 = vmatprep.subr.mxu0 0.0
  %3735 = vmatpush1.xpose.msra.mxu0 0.0
  %3736 = vmatprep.subr.mxu0 0.0
  %3737 = vmatpush1.xpose.msra.mxu0 0.0
  %3738 = vmatprep.subr.mxu0 0.0
  %3739 = vmatpush1.xpose.msra.mxu0 0.0
  %3740 = vmatprep.subr.mxu0 0.0
  %3741 = vmatpush1.xpose.msra.mxu0 0.0
  %3742 = vmatprep.subr.mxu0 0.0
  %3743 = vmatpush1.xpose.msra.mxu0 0.0
  %3744 = vmatprep.subr.mxu0 0.0
  %3745 = vmatpush1.xpose.msra.mxu0 0.0
  %3746 = vmatprep.subr.mxu0 0.0
  %3747 = vmatpush1.xpose.msra.mxu0 0.0
  %3748 = vmatprep.mubr.f32.mxu0 0.0
  %3749 = vmatmul.mubr.f32.gmra.mrb[0].mxu0 %v661
  %v3750 = vpop.f32.mrb[0].mxu0
  %v3751 = vadd.f32 0.0, %v3750
  %v3752 = vpop.f32.mrb[0].mxu0
  %3753 = vmatprep.mubr.f32.mxu0 0.0
  %3754 = vmatmul.mubr.f32.gmra.mrb[0].mxu0 %v661
  %v3755 = vpop.f32.mrb[0].mxu0
  %v3756 = vadd.f32 0.0, %v3755
  %v3757 = vpop.f32.mrb[0].mxu0
  %3758 = vdwg.mxu0
  %3760 = vset.pattern.permute.xlu0 0
  %3761 = vperm.xlu0 %3760, %v3676
  %v3762 = vpop.permute.xlu0 %3761
  %3765 = vset.pattern.permute.xlu0 0
  %3766 = vperm.xlu0 %3765, %v3681
  %v3767 = vpop.permute.xlu0 %3766
  %v3769 = vadd.f32 %v3762, %v3751
  %v3770 = vadd.f32 %v3767, %v3756
  %vm3771 = vcmp.ge.f32.partialorder %v3769, 0.0
  %vm3772 = vcmp.ge.f32.partialorder %v3770, 0.0
  %v3773 = vmul.f32 %v3769, 0.2
  %v3774 = vmul.f32 %v3770, 0.2
  %v3775 = vsel %vm3771, %v3769, %v3773
  %v3776 = vsel %vm3772, %v3770, %v3774
  %v3777 = vadd.f32 %v3775, %v68
  %v3778 = vadd.f32 %v3776, %v69
  %v3779 = vsel %vm388, %v3777, -inf
  %3780 = vmax.xlane.f32.xlu0 %v3779
  %v3781 = vpop.xlane.xlu0 %3780
  %v3782 = vsel %vm388, %v3778, -inf
  %3783 = vmax.xlane.f32.xlu0 %v3782
  %v3784 = vpop.xlane.xlu0 %3783
  %v3785 = vsub.f32 %v3777, %v3781
  %v3786 = vsub.f32 %v3778, %v3784
  %v3787 = vmul.f32 %v3785, 1.442695
  %v3788 = vpow.pop %v3787
  %v3789 = vmul.f32 %v3786, 1.442695
  %v3790 = vpow.pop %v3789
  %v3791 = vsel %vm388, %v3788, 0.0
  %3792 = vadd.xlane.f32.xlu0 %v3791
  %v3793 = vpop.xlane.xlu0 %3792
  %v3794 = vsel %vm388, %v3790, 0.0
  %3795 = vadd.xlane.f32.xlu0 %v3794
  %v3796 = vpop.xlane.xlu0 %3795
  %v3797 = vrcp.pop %v3793
  %v3798 = vrcp.pop %v3796
  %v3799 = vmul.f32 %v3788, %v3797
  %v3800 = vmul.f32 %v3790, %v3798
  %v3802 = vsel %vm388, %v3799, 0
  %v3805 = vsel %vm388, %v3800, 0
  %3807 = vmatprep.subr.mxu0 0.0
  %3808 = vmatpush1.msra.mxu0 %v3601
  %3809 = vmatprep.subr.mxu0 0.0
  %3810 = vmatpush1.msra.mxu0 %v3606
  %3811 = vmatprep.subr.mxu0 0.0
  %3812 = vmatpush1.msra.mxu0 0.0
  %3813 = vmatprep.subr.mxu0 0.0
  %3814 = vmatpush1.msra.mxu0 0.0
  %3815 = vmatprep.subr.mxu0 0.0
  %3816 = vmatpush1.msra.mxu0 0.0
  %3817 = vmatprep.subr.mxu0 0.0
  %3818 = vmatpush1.msra.mxu0 0.0
  %3819 = vmatprep.subr.mxu0 0.0
  %3820 = vmatpush1.msra.mxu0 0.0
  %3821 = vmatprep.subr.mxu0 0.0
  %3822 = vmatpush1.msra.mxu0 0.0
  %3823 = vmatprep.subr.mxu0 0.0
  %3824 = vmatpush1.msra.mxu0 0.0
  %3825 = vmatprep.subr.mxu0 0.0
  %3826 = vmatpush1.msra.mxu0 0.0
  %3827 = vmatprep.subr.mxu0 0.0
  %3828 = vmatpush1.msra.mxu0 0.0
  %3829 = vmatprep.subr.mxu0 0.0
  %3830 = vmatpush1.msra.mxu0 0.0
  %3831 = vmatprep.subr.mxu0 0.0
  %3832 = vmatpush1.msra.mxu0 0.0
  %3833 = vmatprep.subr.mxu0 0.0
  %3834 = vmatpush1.msra.mxu0 0.0
  %3835 = vmatprep.subr.mxu0 0.0
  %3836 = vmatpush1.msra.mxu0 0.0
  %3837 = vmatprep.subr.mxu0 0.0
  %3838 = vmatpush1.msra.mxu0 0.0
  %3839 = vmatprep.subr.mxu0 0.0
  %3840 = vmatpush1.msra.mxu0 0.0
  %3841 = vmatprep.subr.mxu0 0.0
  %3842 = vmatpush1.msra.mxu0 0.0
  %3843 = vmatprep.subr.mxu0 0.0
  %3844 = vmatpush1.msra.mxu0 0.0
  %3845 = vmatprep.subr.mxu0 0.0
  %3846 = vmatpush1.msra.mxu0 0.0
  %3847 = vmatprep.subr.mxu0 0.0
  %3848 = vmatpush1.msra.mxu0 0.0
  %3849 = vmatprep.subr.mxu0 0.0
  %3850 = vmatpush1.msra.mxu0 0.0
  %3851 = vmatprep.subr.mxu0 0.0
  %3852 = vmatpush1.msra.mxu0 0.0
  %3853 = vmatprep.subr.mxu0 0.0
  %3854 = vmatpush1.msra.mxu0 0.0
  %3855 = vmatprep.subr.mxu0 0.0
  %3856 = vmatpush1.msra.mxu0 0.0
  %3857 = vmatprep.subr.mxu0 0.0
  %3858 = vmatpush1.msra.mxu0 0.0
  %3859 = vmatprep.subr.mxu0 0.0
  %3860 = vmatpush1.msra.mxu0 0.0
  %3861 = vmatprep.subr.mxu0 0.0
  %3862 = vmatpush1.msra.mxu0 0.0
  %3863 = vmatprep.subr.mxu0 0.0
  %3864 = vmatpush1.msra.mxu0 0.0
  %3865 = vmatprep.subr.mxu0 0.0
  %3866 = vmatpush1.msra.mxu0 0.0
  %3867 = vmatprep.subr.mxu0 0.0
  %3868 = vmatpush1.msra.mxu0 0.0
  %3869 = vmatprep.subr.mxu0 0.0
  %3870 = vmatpush1.msra.mxu0 0.0
  %3871 = vmatprep.mubr.f32.mxu0 0.0
  %3872 = vmatmul.mubr.f32.gmra.mrb[0].mxu0 %v3802
  %v3873 = vpop.f32.mrb[0].mxu0
  %v3874 = vadd.f32 %v784, %v3873
  %v3875 = vpop.f32.mrb[0].mxu0
  %3876 = vmatprep.mubr.f32.mxu0 0.0
  %3877 = vmatmul.mubr.f32.gmra.mrb[0].mxu0 %v3805
  %v3878 = vpop.f32.mrb[0].mxu0
  %v3879 = vadd.f32 %v784, %v3878
  %v3880 = vpop.f32.mrb[0].mxu0
  %3881 = vdwg.mxu0
  %vm3882 = vcmp.ge.f32.partialorder %v3874, 0.0
  %vm3883 = vcmp.ge.f32.partialorder %v3879, 0.0
  %v3884 = vmul.f32 %v3874, 0.01
  %v3885 = vmul.f32 %v3879, 0.01
  %v3886 = vsel %vm3882, %v3874, %v3884
  %v3887 = vsel %vm3883, %v3879, %v3885
  %3888 = vmatprep.subr.mxu0 0.0
  %3889 = vmatpush1.msra.mxu0 %v88
  %3890 = vmatprep.subr.mxu0 0.0
  %3891 = vmatpush1.msra.mxu0 0.0
  %3892 = vmatprep.subr.mxu0 0.0
  %3893 = vmatpush1.msra.mxu0 0.0
  %3894 = vmatprep.subr.mxu0 0.0
  %3895 = vmatpush1.msra.mxu0 0.0
  %3896 = vmatprep.subr.mxu0 0.0
  %3897 = vmatpush1.msra.mxu0 0.0
  %3898 = vmatprep.subr.mxu0 0.0
  %3899 = vmatpush1.msra.mxu0 0.0
  %3900 = vmatprep.subr.mxu0 0.0
  %3901 = vmatpush1.msra.mxu0 0.0
  %3902 = vmatprep.subr.mxu0 0.0
  %3903 = vmatpush1.msra.mxu0 0.0
  %3904 = vmatprep.subr.mxu0 0.0
  %3905 = vmatpush1.msra.mxu0 0.0
  %3906 = vmatprep.subr.mxu0 0.0
  %3907 = vmatpush1.msra.mxu0 0.0
  %3908 = vmatprep.subr.mxu0 0.0
  %3909 = vmatpush1.msra.mxu0 0.0
  %3910 = vmatprep.subr.mxu0 0.0
  %3911 = vmatpush1.msra.mxu0 0.0
  %3912 = vmatprep.subr.mxu0 0.0
  %3913 = vmatpush1.msra.mxu0 0.0
  %3914 = vmatprep.subr.mxu0 0.0
  %3915 = vmatpush1.msra.mxu0 0.0
  %3916 = vmatprep.subr.mxu0 0.0
  %3917 = vmatpush1.msra.mxu0 0.0
  %3918 = vmatprep.subr.mxu0 0.0
  %3919 = vmatpush1.msra.mxu0 0.0
  %3920 = vmatprep.subr.mxu0 0.0
  %3921 = vmatpush1.msra.mxu0 0.0
  %3922 = vmatprep.subr.mxu0 0.0
  %3923 = vmatpush1.msra.mxu0 0.0
  %3924 = vmatprep.subr.mxu0 0.0
  %3925 = vmatpush1.msra.mxu0 0.0
  %3926 = vmatprep.subr.mxu0 0.0
  %3927 = vmatpush1.msra.mxu0 0.0
  %3928 = vmatprep.subr.mxu0 0.0
  %3929 = vmatpush1.msra.mxu0 0.0
  %3930 = vmatprep.subr.mxu0 0.0
  %3931 = vmatpush1.msra.mxu0 0.0
  %3932 = vmatprep.subr.mxu0 0.0
  %3933 = vmatpush1.msra.mxu0 0.0
  %3934 = vmatprep.subr.mxu0 0.0
  %3935 = vmatpush1.msra.mxu0 0.0
  %3936 = vmatprep.subr.mxu0 0.0
  %3937 = vmatpush1.msra.mxu0 0.0
  %3938 = vmatprep.subr.mxu0 0.0
  %3939 = vmatpush1.msra.mxu0 0.0
  %3940 = vmatprep.subr.mxu0 0.0
  %3941 = vmatpush1.msra.mxu0 0.0
  %3942 = vmatprep.subr.mxu0 0.0
  %3943 = vmatpush1.msra.mxu0 0.0
  %3944 = vmatprep.subr.mxu0 0.0
  %3945 = vmatpush1.msra.mxu0 0.0
  %3946 = vmatprep.subr.mxu0 0.0
  %3947 = vmatpush1.msra.mxu0 0.0
  %3948 = vmatprep.subr.mxu0 0.0
  %3949 = vmatpush1.msra.mxu0 0.0
  %3950 = vmatprep.subr.mxu0 0.0
  %3951 = vmatpush1.msra.mxu0 0.0
  %3952 = vmatprep.mubr.f32.mxu0 0.0
  %3953 = vmatmul.mubr.f32.gmra.mrb[0].mxu0 %v3529
  %v3954 = vpop.f32.mrb[0].mxu0
  %v3955 = vadd.f32 0.0, %v3954
  %v3956 = vpop.f32.mrb[0].mxu0
  %3957 = vmatprep.mubr.f32.mxu0 0.0
  %3958 = vmatmul.mubr.f32.gmra.mrb[0].mxu0 %v3532
  %v3959 = vpop.f32.mrb[0].mxu0
  %v3960 = vadd.f32 0.0, %v3959
  %v3961 = vpop.f32.mrb[0].mxu0
  %3962 = vdwg.mxu0
  %3963 = vmatprep.subr.mxu0 0.0
  %3964 = vmatpush1.msra.mxu0 %v949
  %3965 = vmatprep.subr.mxu0 0.0
  %3966 = vmatpush1.msra.mxu0 0.0
  %3967 = vmatprep.subr.mxu0 0.0
  %3968 = vmatpush1.msra.mxu0 0.0
  %3969 = vmatprep.subr.mxu0 0.0
  %3970 = vmatpush1.msra.mxu0 0.0
  %3971 = vmatprep.subr.mxu0 0.0
  %3972 = vmatpush1.msra.mxu0 0.0
  %3973 = vmatprep.subr.mxu0 0.0
  %3974 = vmatpush1.msra.mxu0 0.0
  %3975 = vmatprep.subr.mxu0 0.0
  %3976 = vmatpush1.msra.mxu0 0.0
  %3977 = vmatprep.subr.mxu0 0.0
  %3978 = vmatpush1.msra.mxu0 0.0
  %3979 = vmatprep.subr.mxu0 0.0
  %3980 = vmatpush1.msra.mxu0 0.0
  %3981 = vmatprep.subr.mxu0 0.0
  %3982 = vmatpush1.msra.mxu0 0.0
  %3983 = vmatprep.subr.mxu0 0.0
  %3984 = vmatpush1.msra.mxu0 0.0
  %3985 = vmatprep.subr.mxu0 0.0
  %3986 = vmatpush1.msra.mxu0 0.0
  %3987 = vmatprep.subr.mxu0 0.0
  %3988 = vmatpush1.msra.mxu0 0.0
  %3989 = vmatprep.subr.mxu0 0.0
  %3990 = vmatpush1.msra.mxu0 0.0
  %3991 = vmatprep.subr.mxu0 0.0
  %3992 = vmatpush1.msra.mxu0 0.0
  %3993 = vmatprep.subr.mxu0 0.0
  %3994 = vmatpush1.msra.mxu0 0.0
  %3995 = vmatprep.subr.mxu0 0.0
  %3996 = vmatpush1.msra.mxu0 0.0
  %3997 = vmatprep.subr.mxu0 0.0
  %3998 = vmatpush1.msra.mxu0 0.0
  %3999 = vmatprep.subr.mxu0 0.0
  %4000 = vmatpush1.msra.mxu0 0.0
  %4001 = vmatprep.subr.mxu0 0.0
  %4002 = vmatpush1.msra.mxu0 0.0
  %4003 = vmatprep.subr.mxu0 0.0
  %4004 = vmatpush1.msra.mxu0 0.0
  %4005 = vmatprep.subr.mxu0 0.0
  %4006 = vmatpush1.msra.mxu0 0.0
  %4007 = vmatprep.subr.mxu0 0.0
  %4008 = vmatpush1.msra.mxu0 0.0
  %4009 = vmatprep.subr.mxu0 0.0
  %4010 = vmatpush1.msra.mxu0 0.0
  %4011 = vmatprep.subr.mxu0 0.0
  %4012 = vmatpush1.msra.mxu0 0.0
  %4013 = vmatprep.subr.mxu0 0.0
  %4014 = vmatpush1.msra.mxu0 0.0
  %4015 = vmatprep.subr.mxu0 0.0
  %4016 = vmatpush1.msra.mxu0 0.0
  %4017 = vmatprep.subr.mxu0 0.0
  %4018 = vmatpush1.msra.mxu0 0.0
  %4019 = vmatprep.subr.mxu0 0.0
  %4020 = vmatpush1.msra.mxu0 0.0
  %4021 = vmatprep.subr.mxu0 0.0
  %4022 = vmatpush1.msra.mxu0 0.0
  %4023 = vmatprep.subr.mxu0 0.0
  %4024 = vmatpush1.msra.mxu0 0.0
  %4025 = vmatprep.subr.mxu0 0.0
  %4026 = vmatpush1.msra.mxu0 0.0
  %4027 = vmatprep.mubr.f32.mxu0 0.0
  %4028 = vmatmul.mubr.f32.gmra.mrb[0].mxu0 %v3169
  %v4029 = vpop.f32.mrb[0].mxu0
  %v4030 = vadd.f32 %v3955, %v4029
  %v4031 = vpop.f32.mrb[0].mxu0
  %4032 = vmatprep.mubr.f32.mxu0 0.0
  %4033 = vmatmul.mubr.f32.gmra.mrb[0].mxu0 %v3172
  %v4034 = vpop.f32.mrb[0].mxu0
  %v4035 = vadd.f32 %v3960, %v4034
  %v4036 = vpop.f32.mrb[0].mxu0
  %4037 = vdwg.mxu0
  %v4039 = vsel %vm504, %v3886, 0
  %v4042 = vsel %vm504, %v3887, 0
  %4044 = vmatprep.subr.mxu0 0.0
  %4045 = vmatpush1.msra.mxu0 %v89
  %4046 = vmatprep.subr.mxu0 0.0
  %4047 = vmatpush1.msra.mxu0 0.0
  %4048 = vmatprep.subr.mxu0 0.0
  %4049 = vmatpush1.msra.mxu0 0.0
  %4050 = vmatprep.subr.mxu0 0.0
  %4051 = vmatpush1.msra.mxu0 0.0
  %4052 = vmatprep.subr.mxu0 0.0
  %4053 = vmatpush1.msra.mxu0 0.0
  %4054 = vmatprep.subr.mxu0 0.0
  %4055 = vmatpush1.msra.mxu0 0.0
  %4056 = vmatprep.subr.mxu0 0.0
  %4057 = vmatpush1.msra.mxu0 0.0
  %4058 = vmatprep.subr.mxu0 0.0
  %4059 = vmatpush1.msra.mxu0 0.0
  %4060 = vmatprep.subr.mxu0 0.0
  %4061 = vmatpush1.msra.mxu0 0.0
  %4062 = vmatprep.subr.mxu0 0.0
  %4063 = vmatpush1.msra.mxu0 0.0
  %4064 = vmatprep.subr.mxu0 0.0
  %4065 = vmatpush1.msra.mxu0 0.0
  %4066 = vmatprep.subr.mxu0 0.0
  %4067 = vmatpush1.msra.mxu0 0.0
  %4068 = vmatprep.subr.mxu0 0.0
  %4069 = vmatpush1.msra.mxu0 0.0
  %4070 = vmatprep.subr.mxu0 0.0
  %4071 = vmatpush1.msra.mxu0 0.0
  %4072 = vmatprep.subr.mxu0 0.0
  %4073 = vmatpush1.msra.mxu0 0.0
  %4074 = vmatprep.subr.mxu0 0.0
  %4075 = vmatpush1.msra.mxu0 0.0
  %4076 = vmatprep.subr.mxu0 0.0
  %4077 = vmatpush1.msra.mxu0 0.0
  %4078 = vmatprep.subr.mxu0 0.0
  %4079 = vmatpush1.msra.mxu0 0.0
  %4080 = vmatprep.subr.mxu0 0.0
  %4081 = vmatpush1.msra.mxu0 0.0
  %4082 = vmatprep.subr.mxu0 0.0
  %4083 = vmatpush1.msra.mxu0 0.0
  %4084 = vmatprep.subr.mxu0 0.0
  %4085 = vmatpush1.msra.mxu0 0.0
  %4086 = vmatprep.subr.mxu0 0.0
  %4087 = vmatpush1.msra.mxu0 0.0
  %4088 = vmatprep.subr.mxu0 0.0
  %4089 = vmatpush1.msra.mxu0 0.0
  %4090 = vmatprep.subr.mxu0 0.0
  %4091 = vmatpush1.msra.mxu0 0.0
  %4092 = vmatprep.subr.mxu0 0.0
  %4093 = vmatpush1.msra.mxu0 0.0
  %4094 = vmatprep.subr.mxu0 0.0
  %4095 = vmatpush1.msra.mxu0 0.0
  %4096 = vmatprep.subr.mxu0 0.0
  %4097 = vmatpush1.msra.mxu0 0.0
  %4098 = vmatprep.subr.mxu0 0.0
  %4099 = vmatpush1.msra.mxu0 0.0
  %4100 = vmatprep.subr.mxu0 0.0
  %4101 = vmatpush1.msra.mxu0 0.0
  %4102 = vmatprep.subr.mxu0 0.0
  %4103 = vmatpush1.msra.mxu0 0.0
  %4104 = vmatprep.subr.mxu0 0.0
  %4105 = vmatpush1.msra.mxu0 0.0
  %4106 = vmatprep.subr.mxu0 0.0
  %4107 = vmatpush1.msra.mxu0 0.0
  %4108 = vmatprep.mubr.f32.mxu0 0.0
  %4109 = vmatmul.mubr.f32.gmra.mrb[0].mxu0 %v4039
  %v4110 = vpop.f32.mrb[0].mxu0
  %v4111 = vadd.f32 0.0, %v4110
  %v4112 = vpop.f32.mrb[0].mxu0
  %4113 = vmatprep.mubr.f32.mxu0 0.0
  %4114 = vmatmul.mubr.f32.gmra.mrb[0].mxu0 %v4042
  %v4115 = vpop.f32.mrb[0].mxu0
  %v4116 = vadd.f32 0.0, %v4115
  %v4117 = vpop.f32.mrb[0].mxu0
  %4118 = vdwg.mxu0
  %v4119 = vadd.f32 %v4030, %v4111
  %v4120 = vadd.f32 %v4035, %v4116
  %4121 = vmatprep.subr.mxu0 0.0
  %4122 = vmatpush1.msra.mxu0 %v4119
  %4123 = vmatprep.subr.mxu0 0.0
  %4124 = vmatpush1.msra.mxu0 %v4120
  %4125 = vmatprep.subr.mxu0 0.0
  %4126 = vmatpush1.msra.mxu0 0.0
  %4127 = vmatprep.subr.mxu0 0.0
  %4128 = vmatpush1.msra.mxu0 0.0
  %4129 = vmatprep.subr.mxu0 0.0
  %4130 = vmatpush1.msra.mxu0 0.0
  %4131 = vmatprep.subr.mxu0 0.0
  %4132 = vmatpush1.msra.mxu0 0.0
  %4133 = vmatprep.subr.mxu0 0.0
  %4134 = vmatpush1.msra.mxu0 0.0
  %4135 = vmatprep.subr.mxu0 0.0
  %4136 = vmatpush1.msra.mxu0 0.0
  %4137 = vmatprep.subr.mxu0 0.0
  %4138 = vmatpush1.msra.mxu0 0.0
  %4139 = vmatprep.subr.mxu0 0.0
  %4140 = vmatpush1.msra.mxu0 0.0
  %4141 = vmatprep.subr.mxu0 0.0
  %4142 = vmatpush1.msra.mxu0 0.0
  %4143 = vmatprep.subr.mxu0 0.0
  %4144 = vmatpush1.msra.mxu0 0.0
  %4145 = vmatprep.subr.mxu0 0.0
  %4146 = vmatpush1.msra.mxu0 0.0
  %4147 = vmatprep.subr.mxu0 0.0
  %4148 = vmatpush1.msra.mxu0 0.0
  %4149 = vmatprep.subr.mxu0 0.0
  %4150 = vmatpush1.msra.mxu0 0.0
  %4151 = vmatprep.subr.mxu0 0.0
  %4152 = vmatpush1.msra.mxu0 0.0
  %4153 = vmatprep.subr.mxu0 0.0
  %4154 = vmatpush1.msra.mxu0 0.0
  %4155 = vmatprep.subr.mxu0 0.0
  %4156 = vmatpush1.msra.mxu0 0.0
  %4157 = vmatprep.subr.mxu0 0.0
  %4158 = vmatpush1.msra.mxu0 0.0
  %4159 = vmatprep.subr.mxu0 0.0
  %4160 = vmatpush1.msra.mxu0 0.0
  %4161 = vmatprep.subr.mxu0 0.0
  %4162 = vmatpush1.msra.mxu0 0.0
  %4163 = vmatprep.subr.mxu0 0.0
  %4164 = vmatpush1.msra.mxu0 0.0
  %4165 = vmatprep.subr.mxu0 0.0
  %4166 = vmatpush1.msra.mxu0 0.0
  %4167 = vmatprep.subr.mxu0 0.0
  %4168 = vmatpush1.msra.mxu0 0.0
  %4169 = vmatprep.subr.mxu0 0.0
  %4170 = vmatpush1.msra.mxu0 0.0
  %4171 = vmatprep.subr.mxu0 0.0
  %4172 = vmatpush1.msra.mxu0 0.0
  %4173 = vmatprep.subr.mxu0 0.0
  %4174 = vmatpush1.msra.mxu0 0.0
  %4175 = vmatprep.subr.mxu0 0.0
  %4176 = vmatpush1.msra.mxu0 0.0
  %4177 = vmatprep.subr.mxu0 0.0
  %4178 = vmatpush1.msra.mxu0 0.0
  %4179 = vmatprep.subr.mxu0 0.0
  %4180 = vmatpush1.msra.mxu0 0.0
  %4181 = vmatprep.subr.mxu0 0.0
  %4182 = vmatpush1.msra.mxu0 0.0
  %4183 = vmatprep.subr.mxu0 0.0
  %4184 = vmatpush1.msra.mxu0 0.0
  %4185 = vmatprep.mubr.f32.mxu0 0.0
  %4186 = vmatmul.mubr.f32.gmra.mrb[0].mxu0 %v1116
  %v4187 = vpop.f32.mrb[0].mxu0
  %v4188 = vadd.f32 %v1113, %v4187
  %v4189 = vpop.f32.mrb[0].mxu0
  %4190 = vmatprep.mubr.f32.mxu0 0.0
  %4191 = vmatmul.mubr.f32.gmra.mrb[0].mxu0 %v1119
  %v4192 = vpop.f32.mrb[0].mxu0
  %v4193 = vadd.f32 %v1113, %v4192
  %v4194 = vpop.f32.mrb[0].mxu0
  %4195 = vdwg.mxu0
  %vm4196 = vcmp.ge.f32.partialorder %v4188, 0.0
  %vm4197 = vcmp.ge.f32.partialorder %v4193, 0.0
  %v4198 = vmul.f32 %v4188, 0.01
  %v4199 = vmul.f32 %v4193, 0.01
  %v4200 = vsel %vm4196, %v4188, %v4198
  %v4201 = vsel %vm4197, %v4193, %v4199
  %v4203 = vsel %vm1202, %v4200, 0
  %v4206 = vsel %vm1202, %v4201, 0
  %4208 = vmatprep.subr.mxu0 0.0
  %4209 = vmatpush1.msra.mxu0 %v91
  %4210 = vmatprep.subr.mxu0 0.0
  %4211 = vmatpush1.msra.mxu0 %v92
  %4212 = vmatprep.subr.mxu0 0.0
  %4213 = vmatpush1.msra.mxu0 %v1210
  %4214 = vmatprep.subr.mxu0 0.0
  %4215 = vmatpush1.msra.mxu0 0.0
  %4216 = vmatprep.subr.mxu0 0.0
  %4217 = vmatpush1.msra.mxu0 0.0
  %4218 = vmatprep.subr.mxu0 0.0
  %4219 = vmatpush1.msra.mxu0 0.0
  %4220 = vmatprep.subr.mxu0 0.0
  %4221 = vmatpush1.msra.mxu0 0.0
  %4222 = vmatprep.subr.mxu0 0.0
  %4223 = vmatpush1.msra.mxu0 0.0
  %4224 = vmatprep.subr.mxu0 0.0
  %4225 = vmatpush1.msra.mxu0 0.0
  %4226 = vmatprep.subr.mxu0 0.0
  %4227 = vmatpush1.msra.mxu0 0.0
  %4228 = vmatprep.subr.mxu0 0.0
  %4229 = vmatpush1.msra.mxu0 0.0
  %4230 = vmatprep.subr.mxu0 0.0
  %4231 = vmatpush1.msra.mxu0 0.0
  %4232 = vmatprep.subr.mxu0 0.0
  %4233 = vmatpush1.msra.mxu0 0.0
  %4234 = vmatprep.subr.mxu0 0.0
  %4235 = vmatpush1.msra.mxu0 0.0
  %4236 = vmatprep.subr.mxu0 0.0
  %4237 = vmatpush1.msra.mxu0 0.0
  %4238 = vmatprep.subr.mxu0 0.0
  %4239 = vmatpush1.msra.mxu0 0.0
  %4240 = vmatprep.subr.mxu0 0.0
  %4241 = vmatpush1.msra.mxu0 0.0
  %4242 = vmatprep.subr.mxu0 0.0
  %4243 = vmatpush1.msra.mxu0 0.0
  %4244 = vmatprep.subr.mxu0 0.0
  %4245 = vmatpush1.msra.mxu0 0.0
  %4246 = vmatprep.subr.mxu0 0.0
  %4247 = vmatpush1.msra.mxu0 0.0
  %4248 = vmatprep.subr.mxu0 0.0
  %4249 = vmatpush1.msra.mxu0 0.0
  %4250 = vmatprep.subr.mxu0 0.0
  %4251 = vmatpush1.msra.mxu0 0.0
  %4252 = vmatprep.subr.mxu0 0.0
  %4253 = vmatpush1.msra.mxu0 0.0
  %4254 = vmatprep.subr.mxu0 0.0
  %4255 = vmatpush1.msra.mxu0 0.0
  %4256 = vmatprep.subr.mxu0 0.0
  %4257 = vmatpush1.msra.mxu0 0.0
  %4258 = vmatprep.subr.mxu0 0.0
  %4259 = vmatpush1.msra.mxu0 0.0
  %4260 = vmatprep.subr.mxu0 0.0
  %4261 = vmatpush1.msra.mxu0 0.0
  %4262 = vmatprep.subr.mxu0 0.0
  %4263 = vmatpush1.msra.mxu0 0.0
  %4264 = vmatprep.subr.mxu0 0.0
  %4265 = vmatpush1.msra.mxu0 0.0
  %4266 = vmatprep.subr.mxu0 0.0
  %4267 = vmatpush1.msra.mxu0 0.0
  %4268 = vmatprep.subr.mxu0 0.0
  %4269 = vmatpush1.msra.mxu0 0.0
  %4270 = vmatprep.subr.mxu0 0.0
  %4271 = vmatpush1.msra.mxu0 0.0
  %4272 = vmatprep.mubr.f32.mxu0 0.0
  %4273 = vmatmul.mubr.f32.gmra.mrb[0].mxu0 %v4203
  %v4274 = vpop.f32.mrb[0].mxu0
  %v4275 = vadd.f32 0.0, %v4274
  %v4276 = vpop.f32.mrb[0].mxu0
  %4277 = vmatprep.mubr.f32.mxu0 0.0
  %4278 = vmatmul.mubr.f32.gmra.mrb[0].mxu0 %v4206
  %v4279 = vpop.f32.mrb[0].mxu0
  %v4280 = vadd.f32 0.0, %v4279
  %v4281 = vpop.f32.mrb[0].mxu0
  %4282 = vdwg.mxu0
  %4283 = vmatprep.subr.mxu0 0.0
  %4284 = vmatpush1.msra.mxu0 %v94
  %4285 = vmatprep.subr.mxu0 0.0
  %4286 = vmatpush1.msra.mxu0 %v95
  %4287 = vmatprep.subr.mxu0 0.0
  %4288 = vmatpush1.msra.mxu0 %v1288
  %4289 = vmatprep.subr.mxu0 0.0
  %4290 = vmatpush1.msra.mxu0 0.0
  %4291 = vmatprep.subr.mxu0 0.0
  %4292 = vmatpush1.msra.mxu0 0.0
  %4293 = vmatprep.subr.mxu0 0.0
  %4294 = vmatpush1.msra.mxu0 0.0
  %4295 = vmatprep.subr.mxu0 0.0
  %4296 = vmatpush1.msra.mxu0 0.0
  %4297 = vmatprep.subr.mxu0 0.0
  %4298 = vmatpush1.msra.mxu0 0.0
  %4299 = vmatprep.subr.mxu0 0.0
  %4300 = vmatpush1.msra.mxu0 0.0
  %4301 = vmatprep.subr.mxu0 0.0
  %4302 = vmatpush1.msra.mxu0 0.0
  %4303 = vmatprep.subr.mxu0 0.0
  %4304 = vmatpush1.msra.mxu0 0.0
  %4305 = vmatprep.subr.mxu0 0.0
  %4306 = vmatpush1.msra.mxu0 0.0
  %4307 = vmatprep.subr.mxu0 0.0
  %4308 = vmatpush1.msra.mxu0 0.0
  %4309 = vmatprep.subr.mxu0 0.0
  %4310 = vmatpush1.msra.mxu0 0.0
  %4311 = vmatprep.subr.mxu0 0.0
  %4312 = vmatpush1.msra.mxu0 0.0
  %4313 = vmatprep.subr.mxu0 0.0
  %4314 = vmatpush1.msra.mxu0 0.0
  %4315 = vmatprep.subr.mxu0 0.0
  %4316 = vmatpush1.msra.mxu0 0.0
  %4317 = vmatprep.subr.mxu0 0.0
  %4318 = vmatpush1.msra.mxu0 0.0
  %4319 = vmatprep.subr.mxu0 0.0
  %4320 = vmatpush1.msra.mxu0 0.0
  %4321 = vmatprep.subr.mxu0 0.0
  %4322 = vmatpush1.msra.mxu0 0.0
  %4323 = vmatprep.subr.mxu0 0.0
  %4324 = vmatpush1.msra.mxu0 0.0
  %4325 = vmatprep.subr.mxu0 0.0
  %4326 = vmatpush1.msra.mxu0 0.0
  %4327 = vmatprep.subr.mxu0 0.0
  %4328 = vmatpush1.msra.mxu0 0.0
  %4329 = vmatprep.subr.mxu0 0.0
  %4330 = vmatpush1.msra.mxu0 0.0
  %4331 = vmatprep.subr.mxu0 0.0
  %4332 = vmatpush1.msra.mxu0 0.0
  %4333 = vmatprep.subr.mxu0 0.0
  %4334 = vmatpush1.msra.mxu0 0.0
  %4335 = vmatprep.subr.mxu0 0.0
  %4336 = vmatpush1.msra.mxu0 0.0
  %4337 = vmatprep.subr.mxu0 0.0
  %4338 = vmatpush1.msra.mxu0 0.0
  %4339 = vmatprep.subr.mxu0 0.0
  %4340 = vmatpush1.msra.mxu0 0.0
  %4341 = vmatprep.subr.mxu0 0.0
  %4342 = vmatpush1.msra.mxu0 0.0
  %4343 = vmatprep.subr.mxu0 0.0
  %4344 = vmatpush1.msra.mxu0 0.0
  %4345 = vmatprep.subr.mxu0 0.0
  %4346 = vmatpush1.msra.mxu0 0.0
  %4347 = vmatprep.mubr.f32.mxu0 0.0
  %4348 = vmatmul.mubr.f32.gmra.mrb[0].mxu0 %v4203
  %v4349 = vpop.f32.mrb[0].mxu0
  %v4350 = vadd.f32 0.0, %v4349
  %v4351 = vpop.f32.mrb[0].mxu0
  %4352 = vmatprep.mubr.f32.mxu0 0.0
  %4353 = vmatmul.mubr.f32.gmra.mrb[0].mxu0 %v4206
  %v4354 = vpop.f32.mrb[0].mxu0
  %v4355 = vadd.f32 0.0, %v4354
  %v4356 = vpop.f32.mrb[0].mxu0
  %4357 = vdwg.mxu0
  %4358 = vmatprep.subr.mxu0 0.0
  %4359 = vmatpush1.xpose.msra.mxu0 %v4203
  %4360 = vmatprep.subr.mxu0 0.0
  %4361 = vmatpush1.xpose.msra.mxu0 %v4206
  %4362 = vmatprep.subr.mxu0 0.0
  %4363 = vmatpush1.xpose.msra.mxu0 0.0
  %4364 = vmatprep.subr.mxu0 0.0
  %4365 = vmatpush1.xpose.msra.mxu0 0.0
  %4366 = vmatprep.subr.mxu0 0.0
  %4367 = vmatpush1.xpose.msra.mxu0 0.0
  %4368 = vmatprep.subr.mxu0 0.0
  %4369 = vmatpush1.xpose.msra.mxu0 0.0
  %4370 = vmatprep.subr.mxu0 0.0
  %4371 = vmatpush1.xpose.msra.mxu0 0.0
  %4372 = vmatprep.subr.mxu0 0.0
  %4373 = vmatpush1.xpose.msra.mxu0 0.0
  %4374 = vmatprep.subr.mxu0 0.0
  %4375 = vmatpush1.xpose.msra.mxu0 0.0
  %4376 = vmatprep.subr.mxu0 0.0
  %4377 = vmatpush1.xpose.msra.mxu0 0.0
  %4378 = vmatprep.subr.mxu0 0.0
  %4379 = vmatpush1.xpose.msra.mxu0 0.0
  %4380 = vmatprep.subr.mxu0 0.0
  %4381 = vmatpush1.xpose.msra.mxu0 0.0
  %4382 = vmatprep.subr.mxu0 0.0
  %4383 = vmatpush1.xpose.msra.mxu0 0.0
  %4384 = vmatprep.subr.mxu0 0.0
  %4385 = vmatpush1.xpose.msra.mxu0 0.0
  %4386 = vmatprep.subr.mxu0 0.0
  %4387 = vmatpush1.xpose.msra.mxu0 0.0
  %4388 = vmatprep.subr.mxu0 0.0
  %4389 = vmatpush1.xpose.msra.mxu0 0.0
  %4390 = vmatprep.subr.mxu0 0.0
  %4391 = vmatpush1.xpose.msra.mxu0 0.0
  %4392 = vmatprep.subr.mxu0 0.0
  %4393 = vmatpush1.xpose.msra.mxu0 0.0
  %4394 = vmatprep.subr.mxu0 0.0
  %4395 = vmatpush1.xpose.msra.mxu0 0.0
  %4396 = vmatprep.subr.mxu0 0.0
  %4397 = vmatpush1.xpose.msra.mxu0 0.0
  %4398 = vmatprep.subr.mxu0 0.0
  %4399 = vmatpush1.xpose.msra.mxu0 0.0
  %4400 = vmatprep.subr.mxu0 0.0
  %4401 = vmatpush1.xpose.msra.mxu0 0.0
  %4402 = vmatprep.subr.mxu0 0.0
  %4403 = vmatpush1.xpose.msra.mxu0 0.0
  %4404 = vmatprep.subr.mxu0 0.0
  %4405 = vmatpush1.xpose.msra.mxu0 0.0
  %4406 = vmatprep.subr.mxu0 0.0
  %4407 = vmatpush1.xpose.msra.mxu0 0.0
  %4408 = vmatprep.subr.mxu0 0.0
  %4409 = vmatpush1.xpose.msra.mxu0 0.0
  %4410 = vmatprep.subr.mxu0 0.0
  %4411 = vmatpush1.xpose.msra.mxu0 0.0
  %4412 = vmatprep.subr.mxu0 0.0
  %4413 = vmatpush1.xpose.msra.mxu0 0.0
  %4414 = vmatprep.subr.mxu0 0.0
  %4415 = vmatpush1.xpose.msra.mxu0 0.0
  %4416 = vmatprep.subr.mxu0 0.0
  %4417 = vmatpush1.xpose.msra.mxu0 0.0
  %4418 = vmatprep.subr.mxu0 0.0
  %4419 = vmatpush1.xpose.msra.mxu0 0.0
  %4420 = vmatprep.subr.mxu0 0.0
  %4421 = vmatpush1.xpose.msra.mxu0 0.0
  %4422 = vmatprep.mubr.f32.mxu0 0.0
  %4423 = vmatmul.mubr.f32.gmra.mrb[0].mxu0 %v1365
  %v4424 = vpop.f32.mrb[0].mxu0
  %v4425 = vadd.f32 0.0, %v4424
  %v4426 = vpop.f32.mrb[0].mxu0
  %4427 = vmatprep.mubr.f32.mxu0 0.0
  %4428 = vmatmul.mubr.f32.gmra.mrb[0].mxu0 %v1365
  %v4429 = vpop.f32.mrb[0].mxu0
  %v4430 = vadd.f32 0.0, %v4429
  %v4431 = vpop.f32.mrb[0].mxu0
  %4432 = vdwg.mxu0
  %4434 = vset.pattern.permute.xlu0 0
  %4435 = vperm.xlu0 %4434, %v4350
  %v4436 = vpop.permute.xlu0 %4435
  %4439 = vset.pattern.permute.xlu0 0
  %4440 = vperm.xlu0 %4439, %v4355
  %v4441 = vpop.permute.xlu0 %4440
  %v4443 = vadd.f32 %v4436, %v4425
  %v4444 = vadd.f32 %v4441, %v4430
  %vm4445 = vcmp.ge.f32.partialorder %v4443, 0.0
  %vm4446 = vcmp.ge.f32.partialorder %v4444, 0.0
  %v4447 = vmul.f32 %v4443, 0.2
  %v4448 = vmul.f32 %v4444, 0.2
  %v4449 = vsel %vm4445, %v4443, %v4447
  %v4450 = vsel %vm4446, %v4444, %v4448
  %v4451 = vadd.f32 %v4449, %v68
  %v4452 = vadd.f32 %v4450, %v69
  %v4453 = vsel %vm388, %v4451, -inf
  %4454 = vmax.xlane.f32.xlu0 %v4453
  %v4455 = vpop.xlane.xlu0 %4454
  %v4456 = vsel %vm388, %v4452, -inf
  %4457 = vmax.xlane.f32.xlu0 %v4456
  %v4458 = vpop.xlane.xlu0 %4457
  %v4459 = vsub.f32 %v4451, %v4455
  %v4460 = vsub.f32 %v4452, %v4458
  %v4461 = vmul.f32 %v4459, 1.442695
  %v4462 = vpow.pop %v4461
  %v4463 = vmul.f32 %v4460, 1.442695
  %v4464 = vpow.pop %v4463
  %v4465 = vsel %vm388, %v4462, 0.0
  %4466 = vadd.xlane.f32.xlu0 %v4465
  %v4467 = vpop.xlane.xlu0 %4466
  %v4468 = vsel %vm388, %v4464, 0.0
  %4469 = vadd.xlane.f32.xlu0 %v4468
  %v4470 = vpop.xlane.xlu0 %4469
  %v4471 = vrcp.pop %v4467
  %v4472 = vrcp.pop %v4470
  %v4473 = vmul.f32 %v4462, %v4471
  %v4474 = vmul.f32 %v4464, %v4472
  %v4476 = vsel %vm388, %v4473, 0
  %v4479 = vsel %vm388, %v4474, 0
  %4481 = vmatprep.subr.mxu0 0.0
  %4482 = vmatpush1.msra.mxu0 %v4275
  %4483 = vmatprep.subr.mxu0 0.0
  %4484 = vmatpush1.msra.mxu0 %v4280
  %4485 = vmatprep.subr.mxu0 0.0
  %4486 = vmatpush1.msra.mxu0 0.0
  %4487 = vmatprep.subr.mxu0 0.0
  %4488 = vmatpush1.msra.mxu0 0.0
  %4489 = vmatprep.subr.mxu0 0.0
  %4490 = vmatpush1.msra.mxu0 0.0
  %4491 = vmatprep.subr.mxu0 0.0
  %4492 = vmatpush1.msra.mxu0 0.0
  %4493 = vmatprep.subr.mxu0 0.0
  %4494 = vmatpush1.msra.mxu0 0.0
  %4495 = vmatprep.subr.mxu0 0.0
  %4496 = vmatpush1.msra.mxu0 0.0
  %4497 = vmatprep.subr.mxu0 0.0
  %4498 = vmatpush1.msra.mxu0 0.0
  %4499 = vmatprep.subr.mxu0 0.0
  %4500 = vmatpush1.msra.mxu0 0.0
  %4501 = vmatprep.subr.mxu0 0.0
  %4502 = vmatpush1.msra.mxu0 0.0
  %4503 = vmatprep.subr.mxu0 0.0
  %4504 = vmatpush1.msra.mxu0 0.0
  %4505 = vmatprep.subr.mxu0 0.0
  %4506 = vmatpush1.msra.mxu0 0.0
  %4507 = vmatprep.subr.mxu0 0.0
  %4508 = vmatpush1.msra.mxu0 0.0
  %4509 = vmatprep.subr.mxu0 0.0
  %4510 = vmatpush1.msra.mxu0 0.0
  %4511 = vmatprep.subr.mxu0 0.0
  %4512 = vmatpush1.msra.mxu0 0.0
  %4513 = vmatprep.subr.mxu0 0.0
  %4514 = vmatpush1.msra.mxu0 0.0
  %4515 = vmatprep.subr.mxu0 0.0
  %4516 = vmatpush1.msra.mxu0 0.0
  %4517 = vmatprep.subr.mxu0 0.0
  %4518 = vmatpush1.msra.mxu0 0.0
  %4519 = vmatprep.subr.mxu0 0.0
  %4520 = vmatpush1.msra.mxu0 0.0
  %4521 = vmatprep.subr.mxu0 0.0
  %4522 = vmatpush1.msra.mxu0 0.0
  %4523 = vmatprep.subr.mxu0 0.0
  %4524 = vmatpush1.msra.mxu0 0.0
  %4525 = vmatprep.subr.mxu0 0.0
  %4526 = vmatpush1.msra.mxu0 0.0
  %4527 = vmatprep.subr.mxu0 0.0
  %4528 = vmatpush1.msra.mxu0 0.0
  %4529 = vmatprep.subr.mxu0 0.0
  %4530 = vmatpush1.msra.mxu0 0.0
  %4531 = vmatprep.subr.mxu0 0.0
  %4532 = vmatpush1.msra.mxu0 0.0
  %4533 = vmatprep.subr.mxu0 0.0
  %4534 = vmatpush1.msra.mxu0 0.0
  %4535 = vmatprep.subr.mxu0 0.0
  %4536 = vmatpush1.msra.mxu0 0.0
  %4537 = vmatprep.subr.mxu0 0.0
  %4538 = vmatpush1.msra.mxu0 0.0
  %4539 = vmatprep.subr.mxu0 0.0
  %4540 = vmatpush1.msra.mxu0 0.0
  %4541 = vmatprep.subr.mxu0 0.0
  %4542 = vmatpush1.msra.mxu0 0.0
  %4543 = vmatprep.subr.mxu0 0.0
  %4544 = vmatpush1.msra.mxu0 0.0
  %4545 = vmatprep.mubr.f32.mxu0 0.0
  %4546 = vmatmul.mubr.f32.gmra.mrb[0].mxu0 %v4476
  %v4547 = vpop.f32.mrb[0].mxu0
  %v4548 = vadd.f32 %v1488, %v4547
  %v4549 = vpop.f32.mrb[0].mxu0
  %4550 = vmatprep.mubr.f32.mxu0 0.0
  %4551 = vmatmul.mubr.f32.gmra.mrb[0].mxu0 %v4479
  %v4552 = vpop.f32.mrb[0].mxu0
  %v4553 = vadd.f32 %v1488, %v4552
  %v4554 = vpop.f32.mrb[0].mxu0
  %4555 = vdwg.mxu0
  %v4556 = vadd.f32 %v3166, %v4548
  %v4557 = vadd.f32 %v3167, %v4553
  %vm4558 = vcmp.eq.s32.totalorder %v75, 2
  %v4559 = vsel %vm4558, 1.0, 0.0
  %4561 = vset.pattern.permute.xlu0 0
  %4562 = vperm.xlu0 %4561, %v4556
  %v4563 = vpop.permute.xlu0 %4562
  %4566 = vset.pattern.permute.xlu0 0
  %4567 = vperm.xlu0 %4566, %v4557
  %v4568 = vpop.permute.xlu0 %4567
  %v4570 = vmul.f32 %v4563, %v4559
  %v4571 = vmul.f32 %v4568, %v4559
  %v4572 = vadd.f32 %v3081, %v4570
  %v4573 = vadd.f32 %v3082, %v4571
  %v4574 = vmax.f32 %v4572, 0.0
  %v4575 = vmax.f32 %v4573, 0.0
  %v4576 = vmin.f32 %v4574, 90.0
  %v4577 = vmin.f32 %v4575, 90.0
  %vm4578 = vcmask 23552
  %4579 = vst.msk [vmem:[%s19] sm:$0xff] %vm4578, %v4576
  %4580 = vst.msk [vmem:[%s19 + $0x8] sm:$0xff] %vm4578, %v4577
  // Predicated region
  $region78: #{gnn2_forward.1} parent=0 // pred_check
    _
  $region79: #{gnn2_forward.1} parent=0 // pred_check_branch
    %4582 = sbr.rel (0) target = $region81
  $region80: #{gnn2_forward.1} parent=0 // pred_region
    _
  $region81: #{gnn2_forward.1} parent=0 // pred_fallthru
    _
  // Predicated region
  $region82: #{gnn2_forward.1} parent=0 // pred_check
    _
  $region83: #{gnn2_forward.1} parent=0 // pred_check_branch
    %4584 = sbr.rel (0) target = $region85
  $region84: #{gnn2_forward.1} parent=0 // pred_region
    _
  $region85: #{gnn2_forward.1} parent=0 // pred_fallthru
    _

</llo_original>
